<compile_context>
chip_gen: v5e
topology: v5e:2x2
jax: 0.10.0
libtpu: 0.0.40
codegen_flags: <defaults>
</compile_context>

<pallas_src>
import functools

import jax
import jax.numpy as jnp
from jax.experimental import pallas as pl
from jax.experimental.pallas import tpu as pltpu


# --------------------------- per-generation budgets ---------------------------


def _round_up(n, m):
    return ((n + m - 1) // m) * m


@functools.lru_cache(maxsize=1)
def _vmem_budgets():
    """(vmem_limit_bytes, fused_path_cutoff_bytes) tuned per TPU generation."""
    cap = 64 * 1024 * 1024  # conservative default (v7x per-TC VMEM)
    try:
        cap = int(getattr(pltpu.get_tpu_info(), "vmem_capacity_bytes", cap))
    except Exception:
        pass
    cap = max(32 * 1024 * 1024, min(cap, 128 * 1024 * 1024))
    # 3/4 of physical VMEM as the scoped limit, 3/8 as the fused-path cutoff:
    #   v5e/v6e (128 MiB): 96 MiB limit / 48 MiB cutoff
    #   v7x      (64 MiB): 48 MiB limit / 24 MiB cutoff
    return (cap * 3) // 4, (cap * 3) // 8


# ----------------------------- Pallas kernels -------------------------------


def _fused_deconv_bn_relu_kernel(x_ref, w_ref, gamma_ref, beta_ref, o_ref, y_ref, *,
                                 cout, inv_count, eps):
    """Whole forward in one kernel; y stays in an explicit VMEM scratch."""
    c = cout
    # (M, Cin) @ (Cin, 4*Cout) on the MXU, f32 accumulation, stored once to scratch.
    y_ref[...] = jnp.dot(x_ref[...], w_ref[...], preferred_element_type=jnp.float32)

    # Single-pass per-channel sum / sum-of-squares, combining the four (kh, kw)
    # column groups (BN statistics are pixel-permutation invariant).
    s = jnp.zeros((1, c), jnp.float32)
    sq = jnp.zeros((1, c), jnp.float32)
    for g in range(4):
        yg = y_ref[:, g * c:(g + 1) * c]
        s = s + jnp.sum(yg, axis=0, keepdims=True)
        sq = sq + jnp.sum(yg * yg, axis=0, keepdims=True)
    mean = s * inv_count
    # TODO(synk): single-pass E[y^2]-E[y]^2 variance in f32; acceptable under the bf16
    # matmul-input tolerance, switch to a shifted/Welford accumulation if |mean| >> std.
    var = jnp.maximum(sq * inv_count - mean * mean, 0.0)
    inv_std = jax.lax.rsqrt(var + eps)
    scale = gamma_ref[...] * inv_std
    shift = beta_ref[...] - mean * scale

    for g in range(4):
        yg = y_ref[:, g * c:(g + 1) * c]
        o_ref[:, g * c:(g + 1) * c] = jnp.maximum(
            yg * scale + shift, 0.0).astype(o_ref.dtype)


def _stats_kernel(x_ref, w_ref, sum_ref, sq_ref):
    """Pass 1 (stats only): per-row-tile partial BN sums; y never written to HBM."""
    y = jnp.dot(x_ref[...], w_ref[...], preferred_element_type=jnp.float32)
    sum_ref[...] = jnp.sum(y, axis=0, keepdims=True).reshape(sum_ref.shape)
    sq_ref[...] = jnp.sum(y * y, axis=0, keepdims=True).reshape(sq_ref.shape)


def _deconv_bn_relu_kernel(x_ref, w_ref, scale_ref, shift_ref, o_ref):
    """Pass 2: recompute the matmul tile, fused with normalize + affine + ReLU."""
    y = jnp.dot(x_ref[...], w_ref[...], preferred_element_type=jnp.float32)
    o_ref[...] = jnp.maximum(
        y * scale_ref[...] + shift_ref[...], 0.0).astype(o_ref.dtype)


# ------------------------------ pallas_call wrappers -------------------------


def _fused_forward_cols(x_flat, w_cat, gamma, beta, *, cout, count, eps, vmem_limit):
    M = x_flat.shape[0]
    kernel = functools.partial(
        _fused_deconv_bn_relu_kernel,
        cout=cout, inv_count=1.0 / float(count), eps=float(eps))
    return pl.pallas_call(
        kernel,
        out_shape=jax.ShapeDtypeStruct((M, 4 * cout), jnp.float32),
        scratch_shapes=[pltpu.VMEM((M, 4 * cout), jnp.float32)],
        compiler_params=pltpu.CompilerParams(vmem_limit_bytes=vmem_limit),
    )(x_flat, w_cat,
      gamma.reshape(1, cout).astype(jnp.float32),
      beta.reshape(1, cout).astype(jnp.float32))


def _tiled_forward_cols(x_flat, w_cat, gamma, beta, *, cout, count, eps, row_tile,
                        vmem_limit):
    M, cin = x_flat.shape
    ncols = 4 * cout

    # Pad rows up to a multiple of the row tile (zero rows add 0 to both BN sums,
    # `count` is the real element count, and the padding is sliced off below).
    tm = min(int(row_tile), _round_up(M, 8))
    m_pad = _round_up(M, tm)
    if m_pad != M:
        x_flat = jnp.pad(x_flat, ((0, m_pad - M), (0, 0)))
    ntiles = m_pad // tm

    cparams = pltpu.CompilerParams(
        dimension_semantics=("parallel",), vmem_limit_bytes=vmem_limit)

    # Pass 1: stats only. Per-tile partial outputs keep the grid axis embarrassingly
    # parallel (v7x shards it across both TensorCores); the tiny partials are reduced
    # in plain JAX below.
    psum, psq = pl.pallas_call(
        _stats_kernel,
        out_shape=(jax.ShapeDtypeStruct((ntiles, 1, ncols), jnp.float32),
                   jax.ShapeDtypeStruct((ntiles, 1, ncols), jnp.float32)),
        grid=(ntiles,),
        in_specs=[pl.BlockSpec((tm, cin), lambda i: (i, 0)),
                  pl.BlockSpec((cin, ncols), lambda i: (0, 0))],
        out_specs=(pl.BlockSpec((1, 1, ncols), lambda i: (i, 0, 0)),
                   pl.BlockSpec((1, 1, ncols), lambda i: (i, 0, 0))),
        compiler_params=cparams,
    )(x_flat, w_cat)

    # Tiny per-channel scalar math in JAX (reduce tile partials + the 4 (kh,kw) groups).
    fcount = jnp.float32(count)
    s = psum.sum(axis=0).reshape(4, cout).sum(axis=0, keepdims=True)   # (1, Cout)
    sq = psq.sum(axis=0).reshape(4, cout).sum(axis=0, keepdims=True)   # (1, Cout)
    mean = s / fcount
    # TODO(synk): single-pass variance (accepted precision tradeoff with bf16 inputs).
    var = jnp.maximum(sq / fcount - mean * mean, 0.0)
    inv_std = jax.lax.rsqrt(var + eps)
    scale = gamma.reshape(1, cout).astype(jnp.float32) * inv_std
    shift = beta.reshape(1, cout).astype(jnp.float32) - mean * scale
    scale4 = jnp.tile(scale, (1, 4))
    shift4 = jnp.tile(shift, (1, 4))

    # Pass 2: recompute the matmul tile (weight block is grid-invariant -> fetched once)
    # fused with normalize + affine + ReLU.  No f32 y HBM round trip anywhere.
    out = pl.pallas_call(
        _deconv_bn_relu_kernel,
        out_shape=jax.ShapeDtypeStruct((m_pad, ncols), jnp.float32),
        grid=(ntiles,),
        in_specs=[pl.BlockSpec((tm, cin), lambda i: (i, 0)),
                  pl.BlockSpec((cin, ncols), lambda i: (0, 0)),
                  pl.BlockSpec((1, ncols), lambda i: (0, 0)),
                  pl.BlockSpec((1, ncols), lambda i: (0, 0))],
        out_specs=pl.BlockSpec((tm, ncols), lambda i: (i, 0)),
        compiler_params=cparams,
    )(x_flat, w_cat, scale4, shift4)
    return out[:M] if m_pad != M else out


# ------------------------------ forward pass ---------------------------------


def prepare_weights(w):
    """PyTorch ConvTranspose2d weight (Cin, Cout, 2, 2) -> (Cin, 4*Cout) bf16.

    Call once and reuse across forwards (avoids a 4 MiB transpose + cast per call).
    """
    cin, cout = w.shape[0], w.shape[1]
    return jnp.transpose(w, (0, 2, 3, 1)).reshape(cin, 4 * cout).astype(jnp.bfloat16)


def img_feature_decoder_forward(x_nchw, w, b, gamma, beta, *, eps=1e-5,
                                force_tiled=False, row_tile=512):
    """ConvTranspose2d(512,512,k=2,s=2,p=0) -> BatchNorm2d(training mode) -> ReLU.

    x_nchw : (N, Cin, H, W)                      PyTorch layout
    w      : (Cin, Cout, 2, 2) PyTorch weight, or a pre-prepared (Cin, 4*Cout)
             bf16 matrix from prepare_weights()
    b      : (Cout,) ConvT bias -- unused: training-mode BN subtracts the per-channel
             batch mean, so a constant per-channel bias cancels exactly
    gamma, beta : (Cout,) BN affine parameters
    returns (N, Cout, 2H, 2W) float32
    """
    del b  # cancelled exactly by training-mode BatchNorm (must be re-added in eval mode)
    N, cin, H, W = x_nchw.shape
    w_cat = prepare_weights(w) if w.ndim == 4 else w.astype(jnp.bfloat16)
    cout = w_cat.shape[1] // 4
    M = N * H * W
    count = 4 * M  # elements per channel in the BN reduction

    # Layout glue: NCHW -> (N*H*W, Cin) rows; bf16 for the MXU (f32 accumulation).
    x_flat = jnp.transpose(x_nchw, (0, 2, 3, 1)).reshape(M, cin).astype(jnp.bfloat16)

    vmem_limit, fused_cutoff = _vmem_budgets()
    # Fused-path VMEM footprint: x + w + y-scratch + out (y counted once: explicit scratch).
    fused_bytes = M * cin * 2 + cin * 4 * cout * 2 + 2 * M * 4 * cout * 4
    if (not force_tiled) and fused_bytes <= fused_cutoff:
        out_cols = _fused_forward_cols(x_flat, w_cat, gamma, beta,
                                       cout=cout, count=count, eps=eps,
                                       vmem_limit=vmem_limit)
    else:
        out_cols = _tiled_forward_cols(x_flat, w_cat, gamma, beta,
                                       cout=cout, count=count, eps=eps,
                                       row_tile=row_tile, vmem_limit=vmem_limit)

    # Single output transpose: the 2x2 pixel scatter is folded into the one
    # channels-last -> NCHW conversion (layout glue, not compute).
    # TODO(synk): emit channels-last directly and skip this transpose when the consumer
    # accepts NHWC (saves one full HBM read+write of the output).
    out = out_cols.reshape(N, H, W, 2, 2, cout).transpose(0, 5, 1, 3, 2, 4)
    return out.reshape(N, cout, 2 * H, 2 * W)


# ------------------------------ reference (pure JAX) -------------------------


def _reference(x_nchw, w, b, gamma, beta, eps=1e-5):
    N, Cin, H, W = x_nchw.shape
    Cout = w.shape[1]
    # out[n, co, 2h+kh, 2w+kw] = b[co] + sum_ci x[n,ci,h,w] * w[ci,co,kh,kw]
    t = jnp.einsum("nchw,cokl->nohkwl", x_nchw, w)
    y = t.reshape(N, Cout, 2 * H, 2 * W) + b[None, :, None, None]
    mean = jnp.mean(y, axis=(0, 2, 3), keepdims=True)
    var = jnp.mean((y - mean) ** 2, axis=(0, 2, 3), keepdims=True)
    yn = (y - mean) * jax.lax.rsqrt(var + eps)
    yn = yn * gamma[None, :, None, None] + beta[None, :, None, None]
    return jnp.maximum(yn, 0.0)


# ----------------------------------- main ------------------------------------


if __name__ == "__main__":
    key = jax.random.PRNGKey(0)
    kx, kw, kb, kg, kbe, kx2 = jax.random.split(key, 6)

    C = 512  # fixed by the module definition
    w = 0.02 * jax.random.normal(kw, (C, C, 2, 2), dtype=jnp.float32)
    b = 0.10 * jax.random.normal(kb, (C,), dtype=jnp.float32)
    gamma = 1.0 + 0.10 * jax.random.normal(kg, (C,), dtype=jnp.float32)
    beta = 0.10 * jax.random.normal(kbe, (C,), dtype=jnp.float32)

    # Prepare (transpose + bf16-cast) the weight ONCE and reuse across calls.
    w_cat = prepare_weights(w)

    # bf16 MXU inputs with f32 accumulation -> bf16-appropriate tolerance.
    ATOL = RTOL = 2e-2

    # 1) Fully fused single-kernel path (typical small decoder-head shape).
    N, H, W = 2, 4, 4
    x = jax.random.normal(kx, (N, C, H, W), dtype=jnp.float32)
    fwd_fused = jax.jit(functools.partial(img_feature_decoder_forward, eps=1e-5))
    out = jax.block_until_ready(fwd_fused(x, w_cat, b, gamma, beta))
    assert out.shape == (N, C, 2 * H, 2 * W), out.shape
    ref = _reference(x, w, b, gamma, beta)
    assert jnp.allclose(out, ref, atol=ATOL, rtol=RTOL), float(
        jnp.max(jnp.abs(out - ref)))

    # 2) Tiled stats-only + recompute path, forced, with row padding (M=98 -> 128).
    N2, H2, W2 = 2, 7, 7
    x2 = jax.random.normal(kx2, (N2, C, H2, W2), dtype=jnp.float32)
    fwd_tiled = jax.jit(functools.partial(
        img_feature_decoder_forward, eps=1e-5, force_tiled=True, row_tile=64))
    out2 = jax.block_until_ready(fwd_tiled(x2, w_cat, b, gamma, beta))
    assert out2.shape == (N2, C, 2 * H2, 2 * W2), out2.shape
    ref2 = _reference(x2, w, b, gamma, beta)
    assert jnp.allclose(out2, ref2, atol=ATOL, rtol=RTOL), float(
        jnp.max(jnp.abs(out2 - ref2)))

    print("KERNEL_OK")
</pallas_src>

<mosaic_0001>
module attributes {stable_mosaic.version = 11 : i64} {
  func.func @_fused_deconv_bn_relu_kernel(%arg0: memref<32x512xbf16, #tpu.memory_space<vmem>>, %arg1: memref<512x2048xbf16, #tpu.memory_space<vmem>>, %arg2: memref<1x512xf32, #tpu.memory_space<vmem>>, %arg3: memref<1x512xf32, #tpu.memory_space<vmem>>, %arg4: memref<32x2048xf32, #tpu.memory_space<vmem>>, %arg5: memref<32x2048xf32, #tpu.memory_space<vmem>>) attributes {dimension_semantics = [], scalar_prefetch = 0 : i64, scratch_operands = 1 : i64, tpu.core_type = #tpu.core_type<tc>} {
    %c0 = arith.constant 0 : index
    %c0_0 = arith.constant 0 : index
    %0 = vector.load %arg0[%c0, %c0_0] : memref<32x512xbf16, #tpu.memory_space<vmem>>, vector<32x512xbf16>
    %c0_1 = arith.constant 0 : index
    %c0_2 = arith.constant 0 : index
    %1 = vector.load %arg1[%c0_1, %c0_2] : memref<512x2048xbf16, #tpu.memory_space<vmem>>, vector<512x2048xbf16>
    %cst = arith.constant dense<0.000000e+00> : vector<32x2048xf32>
    %2 = tpu.matmul %0, %1, %cst {dimension_numbers = #tpu.dot_dimension_numbers<[1], [0], [0], [1], [0, 0, 1, 1], [], []>} : vector<32x512xbf16>, vector<512x2048xbf16>, vector<32x2048xf32> -> vector<32x2048xf32>
    %c0_3 = arith.constant 0 : index
    %c0_4 = arith.constant 0 : index
    %3 = vector.load %arg5[%c0_3, %c0_4] : memref<32x2048xf32, #tpu.memory_space<vmem>>, vector<32x2048xf32>
    tpu.vector_store %arg5[%c0_3, %c0_4], %2 {strides = array<i32>} : memref<32x2048xf32, #tpu.memory_space<vmem>>, vector<32x2048xf32>,
    %cst_5 = arith.constant 0.000000e+00 : f32
    %4 = vector.broadcast %cst_5 : f32 to vector<1x512xf32>
    %cst_6 = arith.constant 0.000000e+00 : f32
    %5 = vector.broadcast %cst_6 : f32 to vector<1x512xf32>
    %c0_7 = arith.constant 0 : index
    %c0_8 = arith.constant 0 : index
    %6 = vector.load %arg5[%c0_7, %c0_8] : memref<32x2048xf32, #tpu.memory_space<vmem>>, vector<32x512xf32>
    %cst_9 = arith.constant dense<0.000000e+00> : vector<512xf32>
    %7 = vector.multi_reduction <add>, %6, %cst_9 [0] : vector<32x512xf32> to vector<512xf32>
    %8 = vector.shape_cast %7 : vector<512xf32> to vector<1x512xf32>
    %9 = arith.addf %4, %8 : vector<1x512xf32>
    %10 = arith.mulf %6, %6 : vector<32x512xf32>
    %cst_10 = arith.constant dense<0.000000e+00> : vector<512xf32>
    %11 = vector.multi_reduction <add>, %10, %cst_10 [0] : vector<32x512xf32> to vector<512xf32>
    %12 = vector.shape_cast %11 : vector<512xf32> to vector<1x512xf32>
    %13 = arith.addf %5, %12 : vector<1x512xf32>
    %c0_11 = arith.constant 0 : index
    %c512 = arith.constant 512 : index
    %14 = vector.load %arg5[%c0_11, %c512] : memref<32x2048xf32, #tpu.memory_space<vmem>>, vector<32x512xf32>
    %cst_12 = arith.constant dense<0.000000e+00> : vector<512xf32>
    %15 = vector.multi_reduction <add>, %14, %cst_12 [0] : vector<32x512xf32> to vector<512xf32>
    %16 = vector.shape_cast %15 : vector<512xf32> to vector<1x512xf32>
    %17 = arith.addf %9, %16 : vector<1x512xf32>
    %18 = arith.mulf %14, %14 : vector<32x512xf32>
    %cst_13 = arith.constant dense<0.000000e+00> : vector<512xf32>
    %19 = vector.multi_reduction <add>, %18, %cst_13 [0] : vector<32x512xf32> to vector<512xf32>
    %20 = vector.shape_cast %19 : vector<512xf32> to vector<1x512xf32>
    %21 = arith.addf %13, %20 : vector<1x512xf32>
    %c0_14 = arith.constant 0 : index
    %c1024 = arith.constant 1024 : index
    %22 = vector.load %arg5[%c0_14, %c1024] : memref<32x2048xf32, #tpu.memory_space<vmem>>, vector<32x512xf32>
    %cst_15 = arith.constant dense<0.000000e+00> : vector<512xf32>
    %23 = vector.multi_reduction <add>, %22, %cst_15 [0] : vector<32x512xf32> to vector<512xf32>
    %24 = vector.shape_cast %23 : vector<512xf32> to vector<1x512xf32>
    %25 = arith.addf %17, %24 : vector<1x512xf32>
    %26 = arith.mulf %22, %22 : vector<32x512xf32>
    %cst_16 = arith.constant dense<0.000000e+00> : vector<512xf32>
    %27 = vector.multi_reduction <add>, %26, %cst_16 [0] : vector<32x512xf32> to vector<512xf32>
    %28 = vector.shape_cast %27 : vector<512xf32> to vector<1x512xf32>
    %29 = arith.addf %21, %28 : vector<1x512xf32>
    %c0_17 = arith.constant 0 : index
    %c1536 = arith.constant 1536 : index
    %30 = vector.load %arg5[%c0_17, %c1536] : memref<32x2048xf32, #tpu.memory_space<vmem>>, vector<32x512xf32>
    %cst_18 = arith.constant dense<0.000000e+00> : vector<512xf32>
    %31 = vector.multi_reduction <add>, %30, %cst_18 [0] : vector<32x512xf32> to vector<512xf32>
    %32 = vector.shape_cast %31 : vector<512xf32> to vector<1x512xf32>
    %33 = arith.addf %25, %32 : vector<1x512xf32>
    %34 = arith.mulf %30, %30 : vector<32x512xf32>
    %cst_19 = arith.constant dense<0.000000e+00> : vector<512xf32>
    %35 = vector.multi_reduction <add>, %34, %cst_19 [0] : vector<32x512xf32> to vector<512xf32>
    %36 = vector.shape_cast %35 : vector<512xf32> to vector<1x512xf32>
    %37 = arith.addf %29, %36 : vector<1x512xf32>
    %cst_20 = arith.constant 7.812500e-03 : f32
    %38 = vector.broadcast %cst_20 : f32 to vector<1x512xf32>
    %39 = arith.mulf %33, %38 : vector<1x512xf32>
    %cst_21 = arith.constant 7.812500e-03 : f32
    %40 = vector.broadcast %cst_21 : f32 to vector<1x512xf32>
    %41 = arith.mulf %37, %40 : vector<1x512xf32>
    %42 = arith.mulf %39, %39 : vector<1x512xf32>
    %43 = arith.subf %41, %42 : vector<1x512xf32>
    %cst_22 = arith.constant 0.000000e+00 : f32
    %44 = vector.broadcast %cst_22 : f32 to vector<1x512xf32>
    %45 = arith.maximumf %43, %44 : vector<1x512xf32>
    %cst_23 = arith.constant 9.99999974E-6 : f32
    %46 = vector.broadcast %cst_23 : f32 to vector<1x512xf32>
    %47 = arith.addf %45, %46 : vector<1x512xf32>
    %48 = math.rsqrt %47 : vector<1x512xf32>
    %c0_24 = arith.constant 0 : index
    %c0_25 = arith.constant 0 : index
    %49 = vector.load %arg2[%c0_24, %c0_25] : memref<1x512xf32, #tpu.memory_space<vmem>>, vector<1x512xf32>
    %50 = arith.mulf %49, %48 : vector<1x512xf32>
    %c0_26 = arith.constant 0 : index
    %c0_27 = arith.constant 0 : index
    %51 = vector.load %arg3[%c0_26, %c0_27] : memref<1x512xf32, #tpu.memory_space<vmem>>, vector<1x512xf32>
    %52 = arith.mulf %39, %50 : vector<1x512xf32>
    %53 = arith.subf %51, %52 : vector<1x512xf32>
    %c0_28 = arith.constant 0 : index
    %c0_29 = arith.constant 0 : index
    %54 = vector.load %arg5[%c0_28, %c0_29] : memref<32x2048xf32, #tpu.memory_space<vmem>>, vector<32x512xf32>
    %55 = vector.broadcast %50 : vector<1x512xf32> to vector<32x512xf32>
    %56 = arith.mulf %54, %55 : vector<32x512xf32>
    %57 = vector.broadcast %53 : vector<1x512xf32> to vector<32x512xf32>
    %58 = arith.addf %56, %57 : vector<32x512xf32>
    %cst_30 = arith.constant 0.000000e+00 : f32
    %59 = vector.broadcast %cst_30 : f32 to vector<32x512xf32>
    %60 = arith.maximumf %58, %59 : vector<32x512xf32>
    %c0_31 = arith.constant 0 : index
    %c0_32 = arith.constant 0 : index
    %61 = vector.load %arg4[%c0_31, %c0_32] : memref<32x2048xf32, #tpu.memory_space<vmem>>, vector<32x512xf32>
    tpu.vector_store %arg4[%c0_31, %c0_32], %60 {strides = array<i32>} : memref<32x2048xf32, #tpu.memory_space<vmem>>, vector<32x512xf32>,
    %c0_33 = arith.constant 0 : index
    %c512_34 = arith.constant 512 : index
    %62 = vector.load %arg5[%c0_33, %c512_34] : memref<32x2048xf32, #tpu.memory_space<vmem>>, vector<32x512xf32>
    %63 = vector.broadcast %50 : vector<1x512xf32> to vector<32x512xf32>
    %64 = arith.mulf %62, %63 : vector<32x512xf32>
    %65 = vector.broadcast %53 : vector<1x512xf32> to vector<32x512xf32>
    %66 = arith.addf %64, %65 : vector<32x512xf32>
    %cst_35 = arith.constant 0.000000e+00 : f32
    %67 = vector.broadcast %cst_35 : f32 to vector<32x512xf32>
    %68 = arith.maximumf %66, %67 : vector<32x512xf32>
    %c0_36 = arith.constant 0 : index
    %c512_37 = arith.constant 512 : index
    %69 = vector.load %arg4[%c0_36, %c512_37] : memref<32x2048xf32, #tpu.memory_space<vmem>>, vector<32x512xf32>
    tpu.vector_store %arg4[%c0_36, %c512_37], %68 {strides = array<i32>} : memref<32x2048xf32, #tpu.memory_space<vmem>>, vector<32x512xf32>,
    %c0_38 = arith.constant 0 : index
    %c1024_39 = arith.constant 1024 : index
    %70 = vector.load %arg5[%c0_38, %c1024_39] : memref<32x2048xf32, #tpu.memory_space<vmem>>, vector<32x512xf32>
    %71 = vector.broadcast %50 : vector<1x512xf32> to vector<32x512xf32>
    %72 = arith.mulf %70, %71 : vector<32x512xf32>
    %73 = vector.broadcast %53 : vector<1x512xf32> to vector<32x512xf32>
    %74 = arith.addf %72, %73 : vector<32x512xf32>
    %cst_40 = arith.constant 0.000000e+00 : f32
    %75 = vector.broadcast %cst_40 : f32 to vector<32x512xf32>
    %76 = arith.maximumf %74, %75 : vector<32x512xf32>
    %c0_41 = arith.constant 0 : index
    %c1024_42 = arith.constant 1024 : index
    %77 = vector.load %arg4[%c0_41, %c1024_42] : memref<32x2048xf32, #tpu.memory_space<vmem>>, vector<32x512xf32>
    tpu.vector_store %arg4[%c0_41, %c1024_42], %76 {strides = array<i32>} : memref<32x2048xf32, #tpu.memory_space<vmem>>, vector<32x512xf32>,
    %c0_43 = arith.constant 0 : index
    %c1536_44 = arith.constant 1536 : index
    %78 = vector.load %arg5[%c0_43, %c1536_44] : memref<32x2048xf32, #tpu.memory_space<vmem>>, vector<32x512xf32>
    %79 = vector.broadcast %50 : vector<1x512xf32> to vector<32x512xf32>
    %80 = arith.mulf %78, %79 : vector<32x512xf32>
    %81 = vector.broadcast %53 : vector<1x512xf32> to vector<32x512xf32>
    %82 = arith.addf %80, %81 : vector<32x512xf32>
    %cst_45 = arith.constant 0.000000e+00 : f32
    %83 = vector.broadcast %cst_45 : f32 to vector<32x512xf32>
    %84 = arith.maximumf %82, %83 : vector<32x512xf32>
    %c0_46 = arith.constant 0 : index
    %c1536_47 = arith.constant 1536 : index
    %85 = vector.load %arg4[%c0_46, %c1536_47] : memref<32x2048xf32, #tpu.memory_space<vmem>>, vector<32x512xf32>
    tpu.vector_store %arg4[%c0_46, %c1536_47], %84 {strides = array<i32>} : memref<32x2048xf32, #tpu.memory_space<vmem>>, vector<32x512xf32>,
    return
  }
}

</mosaic_0001>

<llo_original>
// kernel: img_feature_decoder_forward.1
$region0: #{img_feature_decoder_forward.1}
  #allocation0 [shape = 'u32[]', space=smem, size = 0x4, offset = 0x4, fixed_abs, tag = 'smem constant byte address 0x4 - core index']
  #allocation1 [shape = 'u32[72,128]{1,0:T(1,128)}', space=vmem, size = 0x9000, scoped, tag = 'internal scratch']
  #allocation2 [shape = 'f32[32,2048]{1,0:T(8,128)}', space=vmem, size = 0x40000, scoped, tag = 'scratch operand']
  %s0 = inlined_call_operand.vmem [shape: bf16[32,512], index: 0, kind: input, shape index: {}]
  %s1 = inlined_call_operand.hbm [shape: bf16[512,2048], index: 1, kind: input, shape index: {}]
  %s2 = inlined_call_operand.hbm [shape: f32[1,512], index: 2, kind: input, shape index: {}]
  %s3 = inlined_call_operand.hbm [shape: f32[1,512], index: 3, kind: input, shape index: {}]
  %s4 = inlined_call_operand.vmem [shape: f32[32,2048], index: 4, kind: output, shape index: {}]
  %s5 = sld [smem:[#allocation0]]
  $region38: #{img_feature_decoder_forward.1} parent=0
    _
  %s7 = ssub.s32 1, %s5
  %s8 = scalar_select 0, %s7, %s5
  $region1: #{img_feature_decoder_forward.1} parent=0
    #allocation3 [shape = 'u8[2097152]{0}', space=vmem, size = 0x200000, scoped, tag = 'input window, operand 1, single buffered']
    #allocation4 [shape = 's32[1]{0}', space=sflag, size = 0x4, scoped, tag = 'scoped memory for img_feature_decoder_forward.1']
    #allocation5 [shape = 'u8[2048]{0}', space=vmem, size = 0x800, scoped, tag = 'input window, operand 2, single buffered']
    #allocation6 [shape = 's32[1]{0}', space=sflag, size = 0x4, scoped, tag = 'scoped memory for img_feature_decoder_forward.1']
    #allocation7 [shape = 'u8[2048]{0}', space=vmem, size = 0x800, scoped, tag = 'input window, operand 3, single buffered']
    %9 = vsyncpa [#allocation4], 0
    %10 = vsyncpa [#allocation6], 0
    // Predicated region
    $region2: #{img_feature_decoder_forward.1} parent=1 // pred_check
      _
    $region3: #{img_feature_decoder_forward.1} parent=1 // pred_check_branch
      %12 = sbr.rel (0) target = $region5
    $region4: #{img_feature_decoder_forward.1} parent=1 // pred_region
      _
    $region5: #{img_feature_decoder_forward.1} parent=1 // pred_fallthru
      _
    // Predicated region
    $region6: #{img_feature_decoder_forward.1} parent=1 // pred_check
      _
    $region7: #{img_feature_decoder_forward.1} parent=1 // pred_check_branch
      %14 = sbr.rel (0) target = $region9
    $region8: #{img_feature_decoder_forward.1} parent=1 // pred_region
      %16 = vsyncadd [#allocation4], 0
      %s17 = sshll.u32 %s1, 4
      %s18 = int_to_ptr.hbm [resolvable:$true] %s17
      %s19 = sshll.u32 [#allocation3], 4
      %s20 = int_to_ptr.vmem [resolvable:$true] %s19
      %25 = dma.hbm_to_vmem [thread:$0]  %s18, 65536, %s20, [#allocation4], 1024, 1024, 64
    $region9: #{img_feature_decoder_forward.1} parent=1 // pred_fallthru
      _
    // Predicated region
    $region10: #{img_feature_decoder_forward.1} parent=1 // pred_check
      _
    $region11: #{img_feature_decoder_forward.1} parent=1 // pred_check_branch
      %27 = sbr.rel (0) target = $region13
    $region12: #{img_feature_decoder_forward.1} parent=1 // pred_region
      %29 = vsyncadd [#allocation6], 0
      %s31 = sshll.u32 %s2, 4
      %s32 = int_to_ptr.hbm [resolvable:$true] %s31
      %s33 = sshll.u32 [#allocation5], 4
      %s34 = int_to_ptr.vmem [resolvable:$true] %s33
      %36 = dma.hbm_to_vmem [thread:$0]  %s32, 64, %s34, [#allocation6]
    $region13: #{img_feature_decoder_forward.1} parent=1 // pred_fallthru
      _
    // Predicated region
    $region14: #{img_feature_decoder_forward.1} parent=1 // pred_check
      _
    $region15: #{img_feature_decoder_forward.1} parent=1 // pred_check_branch
      %38 = sbr.rel (0) target = $region17
    $region16: #{img_feature_decoder_forward.1} parent=1 // pred_region
      %40 = vsyncadd [#allocation6], 0
      %s42 = sshll.u32 %s3, 4
      %s43 = int_to_ptr.hbm [resolvable:$true] %s42
      %s44 = sshll.u32 [#allocation7], 4
      %s45 = int_to_ptr.vmem [resolvable:$true] %s44
      %47 = dma.hbm_to_vmem [thread:$0]  %s43, 64, %s45, [#allocation6]
    $region17: #{img_feature_decoder_forward.1} parent=1 // pred_fallthru
      _
    // Predicated region
    $region18: #{img_feature_decoder_forward.1} parent=1 // pred_check
      _
    $region19: #{img_feature_decoder_forward.1} parent=1 // pred_check_branch
      %49 = sbr.rel (0) target = $region21
    $region20: #{img_feature_decoder_forward.1} parent=1 // pred_region
      %51 = dma.done [#allocation4], 65536
    $region21: #{img_feature_decoder_forward.1} parent=1 // pred_fallthru
      _
    // Predicated region
    $region22: #{img_feature_decoder_forward.1} parent=1 // pred_check
      _
    $region23: #{img_feature_decoder_forward.1} parent=1 // pred_check_branch
      %53 = sbr.rel (0) target = $region25
    $region24: #{img_feature_decoder_forward.1} parent=1 // pred_region
      %55 = dma.done [#allocation6], 64
    $region25: #{img_feature_decoder_forward.1} parent=1 // pred_fallthru
      _
    // Predicated region
    $region26: #{img_feature_decoder_forward.1} parent=1 // pred_check
      _
    $region27: #{img_feature_decoder_forward.1} parent=1 // pred_check_branch
      %57 = sbr.rel (0) target = $region29
    $region28: #{img_feature_decoder_forward.1} parent=1 // pred_region
      %59 = dma.done [#allocation6], 64
    $region29: #{img_feature_decoder_forward.1} parent=1 // pred_fallthru
      _
    %v60 = vld [vmem:[%s0] sm:$0xff]
    %v61 = vld [vmem:[%s0 + $0x8] sm:$0xff]
    %v62 = vld [vmem:[%s0 + $0x10] sm:$0xff]
    %v63 = vld [vmem:[%s0 + $0x18] sm:$0xff]
    %v64 = vld [vmem:[%s0 + $0x20] sm:$0xff]
    %v65 = vld [vmem:[%s0 + $0x28] sm:$0xff]
    %v66 = vld [vmem:[%s0 + $0x30] sm:$0xff]
    %v67 = vld [vmem:[%s0 + $0x38] sm:$0xff]
    %v68 = vld [vmem:[#allocation3] sm:$0xff]
    %v69 = vld [vmem:[#allocation3 + $0x8] sm:$0xff]
    %v70 = vld [vmem:[#allocation3 + $0x10] sm:$0xff]
    %v71 = vld [vmem:[#allocation3 + $0x18] sm:$0xff]
    %v72 = vld [vmem:[#allocation3 + $0x20] sm:$0xff]
    %v73 = vld [vmem:[#allocation3 + $0x28] sm:$0xff]
    %v74 = vld [vmem:[#allocation3 + $0x30] sm:$0xff]
    %v75 = vld [vmem:[#allocation3 + $0x38] sm:$0xff]
    %v76 = vld [vmem:[#allocation3 + $0x40] sm:$0xff]
    %v77 = vld [vmem:[#allocation3 + $0x48] sm:$0xff]
    %v78 = vld [vmem:[#allocation3 + $0x50] sm:$0xff]
    %v79 = vld [vmem:[#allocation3 + $0x58] sm:$0xff]
    %v80 = vld [vmem:[#allocation3 + $0x60] sm:$0xff]
    %v81 = vld [vmem:[#allocation3 + $0x68] sm:$0xff]
    %v82 = vld [vmem:[#allocation3 + $0x70] sm:$0xff]
    %v83 = vld [vmem:[#allocation3 + $0x78] sm:$0xff]
    %v84 = vld [vmem:[#allocation3 + $0x80] sm:$0xff]
    %v85 = vld [vmem:[#allocation3 + $0x88] sm:$0xff]
    %v86 = vld [vmem:[#allocation3 + $0x90] sm:$0xff]
    %v87 = vld [vmem:[#allocation3 + $0x98] sm:$0xff]
    %v88 = vld [vmem:[#allocation3 + $0xa0] sm:$0xff]
    %v89 = vld [vmem:[#allocation3 + $0xa8] sm:$0xff]
    %v90 = vld [vmem:[#allocation3 + $0xb0] sm:$0xff]
    %v91 = vld [vmem:[#allocation3 + $0xb8] sm:$0xff]
    %v92 = vld [vmem:[#allocation3 + $0xc0] sm:$0xff]
    %v93 = vld [vmem:[#allocation3 + $0xc8] sm:$0xff]
    %v94 = vld [vmem:[#allocation3 + $0xd0] sm:$0xff]
    %v95 = vld [vmem:[#allocation3 + $0xd8] sm:$0xff]
    %v96 = vld [vmem:[#allocation3 + $0xe0] sm:$0xff]
    %v97 = vld [vmem:[#allocation3 + $0xe8] sm:$0xff]
    %v98 = vld [vmem:[#allocation3 + $0xf0] sm:$0xff]
    %v99 = vld [vmem:[#allocation3 + $0xf8] sm:$0xff]
    %v100 = vld [vmem:[#allocation3 + $0x100] sm:$0xff]
    %v101 = vld [vmem:[#allocation3 + $0x108] sm:$0xff]
    %v102 = vld [vmem:[#allocation3 + $0x110] sm:$0xff]
    %v103 = vld [vmem:[#allocation3 + $0x118] sm:$0xff]
    %v104 = vld [vmem:[#allocation3 + $0x120] sm:$0xff]
    %v105 = vld [vmem:[#allocation3 + $0x128] sm:$0xff]
    %v106 = vld [vmem:[#allocation3 + $0x130] sm:$0xff]
    %v107 = vld [vmem:[#allocation3 + $0x138] sm:$0xff]
    %v108 = vld [vmem:[#allocation3 + $0x140] sm:$0xff]
    %v109 = vld [vmem:[#allocation3 + $0x148] sm:$0xff]
    %v110 = vld [vmem:[#allocation3 + $0x150] sm:$0xff]
    %v111 = vld [vmem:[#allocation3 + $0x158] sm:$0xff]
    %v112 = vld [vmem:[#allocation3 + $0x160] sm:$0xff]
    %v113 = vld [vmem:[#allocation3 + $0x168] sm:$0xff]
    %v114 = vld [vmem:[#allocation3 + $0x170] sm:$0xff]
    %v115 = vld [vmem:[#allocation3 + $0x178] sm:$0xff]
    %v116 = vld [vmem:[#allocation3 + $0x180] sm:$0xff]
    %v117 = vld [vmem:[#allocation3 + $0x188] sm:$0xff]
    %v118 = vld [vmem:[#allocation3 + $0x190] sm:$0xff]
    %v119 = vld [vmem:[#allocation3 + $0x198] sm:$0xff]
    %v120 = vld [vmem:[#allocation3 + $0x1a0] sm:$0xff]
    %v121 = vld [vmem:[#allocation3 + $0x1a8] sm:$0xff]
    %v122 = vld [vmem:[#allocation3 + $0x1b0] sm:$0xff]
    %v123 = vld [vmem:[#allocation3 + $0x1b8] sm:$0xff]
    %v124 = vld [vmem:[#allocation3 + $0x1c0] sm:$0xff]
    %v125 = vld [vmem:[#allocation3 + $0x1c8] sm:$0xff]
    %v126 = vld [vmem:[#allocation3 + $0x1d0] sm:$0xff]
    %v127 = vld [vmem:[#allocation3 + $0x1d8] sm:$0xff]
    %v128 = vld [vmem:[#allocation3 + $0x1e0] sm:$0xff]
    %v129 = vld [vmem:[#allocation3 + $0x1e8] sm:$0xff]
    %v130 = vld [vmem:[#allocation3 + $0x1f0] sm:$0xff]
    %v131 = vld [vmem:[#allocation3 + $0x1f8] sm:$0xff]
    %v132 = vld [vmem:[#allocation3 + $0x200] sm:$0xff]
    %v133 = vld [vmem:[#allocation3 + $0x208] sm:$0xff]
    %v134 = vld [vmem:[#allocation3 + $0x210] sm:$0xff]
    %v135 = vld [vmem:[#allocation3 + $0x218] sm:$0xff]
    %v136 = vld [vmem:[#allocation3 + $0x220] sm:$0xff]
    %v137 = vld [vmem:[#allocation3 + $0x228] sm:$0xff]
    %v138 = vld [vmem:[#allocation3 + $0x230] sm:$0xff]
    %v139 = vld [vmem:[#allocation3 + $0x238] sm:$0xff]
    %v140 = vld [vmem:[#allocation3 + $0x240] sm:$0xff]
    %v141 = vld [vmem:[#allocation3 + $0x248] sm:$0xff]
    %v142 = vld [vmem:[#allocation3 + $0x250] sm:$0xff]
    %v143 = vld [vmem:[#allocation3 + $0x258] sm:$0xff]
    %v144 = vld [vmem:[#allocation3 + $0x260] sm:$0xff]
    %v145 = vld [vmem:[#allocation3 + $0x268] sm:$0xff]
    %v146 = vld [vmem:[#allocation3 + $0x270] sm:$0xff]
    %v147 = vld [vmem:[#allocation3 + $0x278] sm:$0xff]
    %v148 = vld [vmem:[#allocation3 + $0x280] sm:$0xff]
    %v149 = vld [vmem:[#allocation3 + $0x288] sm:$0xff]
    %v150 = vld [vmem:[#allocation3 + $0x290] sm:$0xff]
    %v151 = vld [vmem:[#allocation3 + $0x298] sm:$0xff]
    %v152 = vld [vmem:[#allocation3 + $0x2a0] sm:$0xff]
    %v153 = vld [vmem:[#allocation3 + $0x2a8] sm:$0xff]
    %v154 = vld [vmem:[#allocation3 + $0x2b0] sm:$0xff]
    %v155 = vld [vmem:[#allocation3 + $0x2b8] sm:$0xff]
    %v156 = vld [vmem:[#allocation3 + $0x2c0] sm:$0xff]
    %v157 = vld [vmem:[#allocation3 + $0x2c8] sm:$0xff]
    %v158 = vld [vmem:[#allocation3 + $0x2d0] sm:$0xff]
    %v159 = vld [vmem:[#allocation3 + $0x2d8] sm:$0xff]
    %v160 = vld [vmem:[#allocation3 + $0x2e0] sm:$0xff]
    %v161 = vld [vmem:[#allocation3 + $0x2e8] sm:$0xff]
    %v162 = vld [vmem:[#allocation3 + $0x2f0] sm:$0xff]
    %v163 = vld [vmem:[#allocation3 + $0x2f8] sm:$0xff]
    %v164 = vld [vmem:[#allocation3 + $0x300] sm:$0xff]
    %v165 = vld [vmem:[#allocation3 + $0x308] sm:$0xff]
    %v166 = vld [vmem:[#allocation3 + $0x310] sm:$0xff]
    %v167 = vld [vmem:[#allocation3 + $0x318] sm:$0xff]
    %v168 = vld [vmem:[#allocation3 + $0x320] sm:$0xff]
    %v169 = vld [vmem:[#allocation3 + $0x328] sm:$0xff]
    %v170 = vld [vmem:[#allocation3 + $0x330] sm:$0xff]
    %v171 = vld [vmem:[#allocation3 + $0x338] sm:$0xff]
    %v172 = vld [vmem:[#allocation3 + $0x340] sm:$0xff]
    %v173 = vld [vmem:[#allocation3 + $0x348] sm:$0xff]
    %v174 = vld [vmem:[#allocation3 + $0x350] sm:$0xff]
    %v175 = vld [vmem:[#allocation3 + $0x358] sm:$0xff]
    %v176 = vld [vmem:[#allocation3 + $0x360] sm:$0xff]
    %v177 = vld [vmem:[#allocation3 + $0x368] sm:$0xff]
    %v178 = vld [vmem:[#allocation3 + $0x370] sm:$0xff]
    %v179 = vld [vmem:[#allocation3 + $0x378] sm:$0xff]
    %v180 = vld [vmem:[#allocation3 + $0x380] sm:$0xff]
    %v181 = vld [vmem:[#allocation3 + $0x388] sm:$0xff]
    %v182 = vld [vmem:[#allocation3 + $0x390] sm:$0xff]
    %v183 = vld [vmem:[#allocation3 + $0x398] sm:$0xff]
    %v184 = vld [vmem:[#allocation3 + $0x3a0] sm:$0xff]
    %v185 = vld [vmem:[#allocation3 + $0x3a8] sm:$0xff]
    %v186 = vld [vmem:[#allocation3 + $0x3b0] sm:$0xff]
    %v187 = vld [vmem:[#allocation3 + $0x3b8] sm:$0xff]
    %v188 = vld [vmem:[#allocation3 + $0x3c0] sm:$0xff]
    %v189 = vld [vmem:[#allocation3 + $0x3c8] sm:$0xff]
    %v190 = vld [vmem:[#allocation3 + $0x3d0] sm:$0xff]
    %v191 = vld [vmem:[#allocation3 + $0x3d8] sm:$0xff]
    %v192 = vld [vmem:[#allocation3 + $0x3e0] sm:$0xff]
    %v193 = vld [vmem:[#allocation3 + $0x3e8] sm:$0xff]
    %v194 = vld [vmem:[#allocation3 + $0x3f0] sm:$0xff]
    %v195 = vld [vmem:[#allocation3 + $0x3f8] sm:$0xff]
    %v196 = vld [vmem:[#allocation3 + $0x400] sm:$0xff]
    %v197 = vld [vmem:[#allocation3 + $0x408] sm:$0xff]
    %v198 = vld [vmem:[#allocation3 + $0x410] sm:$0xff]
    %v199 = vld [vmem:[#allocation3 + $0x418] sm:$0xff]
    %v200 = vld [vmem:[#allocation3 + $0x420] sm:$0xff]
    %v201 = vld [vmem:[#allocation3 + $0x428] sm:$0xff]
    %v202 = vld [vmem:[#allocation3 + $0x430] sm:$0xff]
    %v203 = vld [vmem:[#allocation3 + $0x438] sm:$0xff]
    %v204 = vld [vmem:[#allocation3 + $0x440] sm:$0xff]
    %v205 = vld [vmem:[#allocation3 + $0x448] sm:$0xff]
    %v206 = vld [vmem:[#allocation3 + $0x450] sm:$0xff]
    %v207 = vld [vmem:[#allocation3 + $0x458] sm:$0xff]
    %v208 = vld [vmem:[#allocation3 + $0x460] sm:$0xff]
    %v209 = vld [vmem:[#allocation3 + $0x468] sm:$0xff]
    %v210 = vld [vmem:[#allocation3 + $0x470] sm:$0xff]
    %v211 = vld [vmem:[#allocation3 + $0x478] sm:$0xff]
    %v212 = vld [vmem:[#allocation3 + $0x480] sm:$0xff]
    %v213 = vld [vmem:[#allocation3 + $0x488] sm:$0xff]
    %v214 = vld [vmem:[#allocation3 + $0x490] sm:$0xff]
    %v215 = vld [vmem:[#allocation3 + $0x498] sm:$0xff]
    %v216 = vld [vmem:[#allocation3 + $0x4a0] sm:$0xff]
    %v217 = vld [vmem:[#allocation3 + $0x4a8] sm:$0xff]
    %v218 = vld [vmem:[#allocation3 + $0x4b0] sm:$0xff]
    %v219 = vld [vmem:[#allocation3 + $0x4b8] sm:$0xff]
    %v220 = vld [vmem:[#allocation3 + $0x4c0] sm:$0xff]
    %v221 = vld [vmem:[#allocation3 + $0x4c8] sm:$0xff]
    %v222 = vld [vmem:[#allocation3 + $0x4d0] sm:$0xff]
    %v223 = vld [vmem:[#allocation3 + $0x4d8] sm:$0xff]
    %v224 = vld [vmem:[#allocation3 + $0x4e0] sm:$0xff]
    %v225 = vld [vmem:[#allocation3 + $0x4e8] sm:$0xff]
    %v226 = vld [vmem:[#allocation3 + $0x4f0] sm:$0xff]
    %v227 = vld [vmem:[#allocation3 + $0x4f8] sm:$0xff]
    %v228 = vld [vmem:[#allocation3 + $0x500] sm:$0xff]
    %v229 = vld [vmem:[#allocation3 + $0x508] sm:$0xff]
    %v230 = vld [vmem:[#allocation3 + $0x510] sm:$0xff]
    %v231 = vld [vmem:[#allocation3 + $0x518] sm:$0xff]
    %v232 = vld [vmem:[#allocation3 + $0x520] sm:$0xff]
    %v233 = vld [vmem:[#allocation3 + $0x528] sm:$0xff]
    %v234 = vld [vmem:[#allocation3 + $0x530] sm:$0xff]
    %v235 = vld [vmem:[#allocation3 + $0x538] sm:$0xff]
    %v236 = vld [vmem:[#allocation3 + $0x540] sm:$0xff]
    %v237 = vld [vmem:[#allocation3 + $0x548] sm:$0xff]
    %v238 = vld [vmem:[#allocation3 + $0x550] sm:$0xff]
    %v239 = vld [vmem:[#allocation3 + $0x558] sm:$0xff]
    %v240 = vld [vmem:[#allocation3 + $0x560] sm:$0xff]
    %v241 = vld [vmem:[#allocation3 + $0x568] sm:$0xff]
    %v242 = vld [vmem:[#allocation3 + $0x570] sm:$0xff]
    %v243 = vld [vmem:[#allocation3 + $0x578] sm:$0xff]
    %v244 = vld [vmem:[#allocation3 + $0x580] sm:$0xff]
    %v245 = vld [vmem:[#allocation3 + $0x588] sm:$0xff]
    %v246 = vld [vmem:[#allocation3 + $0x590] sm:$0xff]
    %v247 = vld [vmem:[#allocation3 + $0x598] sm:$0xff]
    %v248 = vld [vmem:[#allocation3 + $0x5a0] sm:$0xff]
    %v249 = vld [vmem:[#allocation3 + $0x5a8] sm:$0xff]
    %v250 = vld [vmem:[#allocation3 + $0x5b0] sm:$0xff]
    %v251 = vld [vmem:[#allocation3 + $0x5b8] sm:$0xff]
    %v252 = vld [vmem:[#allocation3 + $0x5c0] sm:$0xff]
    %v253 = vld [vmem:[#allocation3 + $0x5c8] sm:$0xff]
    %v254 = vld [vmem:[#allocation3 + $0x5d0] sm:$0xff]
    %v255 = vld [vmem:[#allocation3 + $0x5d8] sm:$0xff]
    %v256 = vld [vmem:[#allocation3 + $0x5e0] sm:$0xff]
    %v257 = vld [vmem:[#allocation3 + $0x5e8] sm:$0xff]
    %v258 = vld [vmem:[#allocation3 + $0x5f0] sm:$0xff]
    %v259 = vld [vmem:[#allocation3 + $0x5f8] sm:$0xff]
    %v260 = vld [vmem:[#allocation3 + $0x600] sm:$0xff]
    %v261 = vld [vmem:[#allocation3 + $0x608] sm:$0xff]
    %v262 = vld [vmem:[#allocation3 + $0x610] sm:$0xff]
    %v263 = vld [vmem:[#allocation3 + $0x618] sm:$0xff]
    %v264 = vld [vmem:[#allocation3 + $0x620] sm:$0xff]
    %v265 = vld [vmem:[#allocation3 + $0x628] sm:$0xff]
    %v266 = vld [vmem:[#allocation3 + $0x630] sm:$0xff]
    %v267 = vld [vmem:[#allocation3 + $0x638] sm:$0xff]
    %v268 = vld [vmem:[#allocation3 + $0x640] sm:$0xff]
    %v269 = vld [vmem:[#allocation3 + $0x648] sm:$0xff]
    %v270 = vld [vmem:[#allocation3 + $0x650] sm:$0xff]
    %v271 = vld [vmem:[#allocation3 + $0x658] sm:$0xff]
    %v272 = vld [vmem:[#allocation3 + $0x660] sm:$0xff]
    %v273 = vld [vmem:[#allocation3 + $0x668] sm:$0xff]
    %v274 = vld [vmem:[#allocation3 + $0x670] sm:$0xff]
    %v275 = vld [vmem:[#allocation3 + $0x678] sm:$0xff]
    %v276 = vld [vmem:[#allocation3 + $0x680] sm:$0xff]
    %v277 = vld [vmem:[#allocation3 + $0x688] sm:$0xff]
    %v278 = vld [vmem:[#allocation3 + $0x690] sm:$0xff]
    %v279 = vld [vmem:[#allocation3 + $0x698] sm:$0xff]
    %v280 = vld [vmem:[#allocation3 + $0x6a0] sm:$0xff]
    %v281 = vld [vmem:[#allocation3 + $0x6a8] sm:$0xff]
    %v282 = vld [vmem:[#allocation3 + $0x6b0] sm:$0xff]
    %v283 = vld [vmem:[#allocation3 + $0x6b8] sm:$0xff]
    %v284 = vld [vmem:[#allocation3 + $0x6c0] sm:$0xff]
    %v285 = vld [vmem:[#allocation3 + $0x6c8] sm:$0xff]
    %v286 = vld [vmem:[#allocation3 + $0x6d0] sm:$0xff]
    %v287 = vld [vmem:[#allocation3 + $0x6d8] sm:$0xff]
    %v288 = vld [vmem:[#allocation3 + $0x6e0] sm:$0xff]
    %v289 = vld [vmem:[#allocation3 + $0x6e8] sm:$0xff]
    %v290 = vld [vmem:[#allocation3 + $0x6f0] sm:$0xff]
    %v291 = vld [vmem:[#allocation3 + $0x6f8] sm:$0xff]
    %v292 = vld [vmem:[#allocation3 + $0x700] sm:$0xff]
    %v293 = vld [vmem:[#allocation3 + $0x708] sm:$0xff]
    %v294 = vld [vmem:[#allocation3 + $0x710] sm:$0xff]
    %v295 = vld [vmem:[#allocation3 + $0x718] sm:$0xff]
    %v296 = vld [vmem:[#allocation3 + $0x720] sm:$0xff]
    %v297 = vld [vmem:[#allocation3 + $0x728] sm:$0xff]
    %v298 = vld [vmem:[#allocation3 + $0x730] sm:$0xff]
    %v299 = vld [vmem:[#allocation3 + $0x738] sm:$0xff]
    %v300 = vld [vmem:[#allocation3 + $0x740] sm:$0xff]
    %v301 = vld [vmem:[#allocation3 + $0x748] sm:$0xff]
    %v302 = vld [vmem:[#allocation3 + $0x750] sm:$0xff]
    %v303 = vld [vmem:[#allocation3 + $0x758] sm:$0xff]
    %v304 = vld [vmem:[#allocation3 + $0x760] sm:$0xff]
    %v305 = vld [vmem:[#allocation3 + $0x768] sm:$0xff]
    %v306 = vld [vmem:[#allocation3 + $0x770] sm:$0xff]
    %v307 = vld [vmem:[#allocation3 + $0x778] sm:$0xff]
    %v308 = vld [vmem:[#allocation3 + $0x780] sm:$0xff]
    %v309 = vld [vmem:[#allocation3 + $0x788] sm:$0xff]
    %v310 = vld [vmem:[#allocation3 + $0x790] sm:$0xff]
    %v311 = vld [vmem:[#allocation3 + $0x798] sm:$0xff]
    %v312 = vld [vmem:[#allocation3 + $0x7a0] sm:$0xff]
    %v313 = vld [vmem:[#allocation3 + $0x7a8] sm:$0xff]
    %v314 = vld [vmem:[#allocation3 + $0x7b0] sm:$0xff]
    %v315 = vld [vmem:[#allocation3 + $0x7b8] sm:$0xff]
    %v316 = vld [vmem:[#allocation3 + $0x7c0] sm:$0xff]
    %v317 = vld [vmem:[#allocation3 + $0x7c8] sm:$0xff]
    %v318 = vld [vmem:[#allocation3 + $0x7d0] sm:$0xff]
    %v319 = vld [vmem:[#allocation3 + $0x7d8] sm:$0xff]
    %v320 = vld [vmem:[#allocation3 + $0x7e0] sm:$0xff]
    %v321 = vld [vmem:[#allocation3 + $0x7e8] sm:$0xff]
    %v322 = vld [vmem:[#allocation3 + $0x7f0] sm:$0xff]
    %v323 = vld [vmem:[#allocation3 + $0x7f8] sm:$0xff]
    %v324 = vld [vmem:[#allocation3 + $0x800] sm:$0xff]
    %v325 = vld [vmem:[#allocation3 + $0x808] sm:$0xff]
    %v326 = vld [vmem:[#allocation3 + $0x810] sm:$0xff]
    %v327 = vld [vmem:[#allocation3 + $0x818] sm:$0xff]
    %v328 = vld [vmem:[#allocation3 + $0x820] sm:$0xff]
    %v329 = vld [vmem:[#allocation3 + $0x828] sm:$0xff]
    %v330 = vld [vmem:[#allocation3 + $0x830] sm:$0xff]
    %v331 = vld [vmem:[#allocation3 + $0x838] sm:$0xff]
    %v332 = vld [vmem:[#allocation3 + $0x840] sm:$0xff]
    %v333 = vld [vmem:[#allocation3 + $0x848] sm:$0xff]
    %v334 = vld [vmem:[#allocation3 + $0x850] sm:$0xff]
    %v335 = vld [vmem:[#allocation3 + $0x858] sm:$0xff]
    %v336 = vld [vmem:[#allocation3 + $0x860] sm:$0xff]
    %v337 = vld [vmem:[#allocation3 + $0x868] sm:$0xff]
    %v338 = vld [vmem:[#allocation3 + $0x870] sm:$0xff]
    %v339 = vld [vmem:[#allocation3 + $0x878] sm:$0xff]
    %v340 = vld [vmem:[#allocation3 + $0x880] sm:$0xff]
    %v341 = vld [vmem:[#allocation3 + $0x888] sm:$0xff]
    %v342 = vld [vmem:[#allocation3 + $0x890] sm:$0xff]
    %v343 = vld [vmem:[#allocation3 + $0x898] sm:$0xff]
    %v344 = vld [vmem:[#allocation3 + $0x8a0] sm:$0xff]
    %v345 = vld [vmem:[#allocation3 + $0x8a8] sm:$0xff]
    %v346 = vld [vmem:[#allocation3 + $0x8b0] sm:$0xff]
    %v347 = vld [vmem:[#allocation3 + $0x8b8] sm:$0xff]
    %v348 = vld [vmem:[#allocation3 + $0x8c0] sm:$0xff]
    %v349 = vld [vmem:[#allocation3 + $0x8c8] sm:$0xff]
    %v350 = vld [vmem:[#allocation3 + $0x8d0] sm:$0xff]
    %v351 = vld [vmem:[#allocation3 + $0x8d8] sm:$0xff]
    %v352 = vld [vmem:[#allocation3 + $0x8e0] sm:$0xff]
    %v353 = vld [vmem:[#allocation3 + $0x8e8] sm:$0xff]
    %v354 = vld [vmem:[#allocation3 + $0x8f0] sm:$0xff]
    %v355 = vld [vmem:[#allocation3 + $0x8f8] sm:$0xff]
    %v356 = vld [vmem:[#allocation3 + $0x900] sm:$0xff]
    %v357 = vld [vmem:[#allocation3 + $0x908] sm:$0xff]
    %v358 = vld [vmem:[#allocation3 + $0x910] sm:$0xff]
    %v359 = vld [vmem:[#allocation3 + $0x918] sm:$0xff]
    %v360 = vld [vmem:[#allocation3 + $0x920] sm:$0xff]
    %v361 = vld [vmem:[#allocation3 + $0x928] sm:$0xff]
    %v362 = vld [vmem:[#allocation3 + $0x930] sm:$0xff]
    %v363 = vld [vmem:[#allocation3 + $0x938] sm:$0xff]
    %v364 = vld [vmem:[#allocation3 + $0x940] sm:$0xff]
    %v365 = vld [vmem:[#allocation3 + $0x948] sm:$0xff]
    %v366 = vld [vmem:[#allocation3 + $0x950] sm:$0xff]
    %v367 = vld [vmem:[#allocation3 + $0x958] sm:$0xff]
    %v368 = vld [vmem:[#allocation3 + $0x960] sm:$0xff]
    %v369 = vld [vmem:[#allocation3 + $0x968] sm:$0xff]
    %v370 = vld [vmem:[#allocation3 + $0x970] sm:$0xff]
    %v371 = vld [vmem:[#allocation3 + $0x978] sm:$0xff]
    %v372 = vld [vmem:[#allocation3 + $0x980] sm:$0xff]
    %v373 = vld [vmem:[#allocation3 + $0x988] sm:$0xff]
    %v374 = vld [vmem:[#allocation3 + $0x990] sm:$0xff]
    %v375 = vld [vmem:[#allocation3 + $0x998] sm:$0xff]
    %v376 = vld [vmem:[#allocation3 + $0x9a0] sm:$0xff]
    %v377 = vld [vmem:[#allocation3 + $0x9a8] sm:$0xff]
    %v378 = vld [vmem:[#allocation3 + $0x9b0] sm:$0xff]
    %v379 = vld [vmem:[#allocation3 + $0x9b8] sm:$0xff]
    %v380 = vld [vmem:[#allocation3 + $0x9c0] sm:$0xff]
    %v381 = vld [vmem:[#allocation3 + $0x9c8] sm:$0xff]
    %v382 = vld [vmem:[#allocation3 + $0x9d0] sm:$0xff]
    %v383 = vld [vmem:[#allocation3 + $0x9d8] sm:$0xff]
    %v384 = vld [vmem:[#allocation3 + $0x9e0] sm:$0xff]
    %v385 = vld [vmem:[#allocation3 + $0x9e8] sm:$0xff]
    %v386 = vld [vmem:[#allocation3 + $0x9f0] sm:$0xff]
    %v387 = vld [vmem:[#allocation3 + $0x9f8] sm:$0xff]
    %v388 = vld [vmem:[#allocation3 + $0xa00] sm:$0xff]
    %v389 = vld [vmem:[#allocation3 + $0xa08] sm:$0xff]
    %v390 = vld [vmem:[#allocation3 + $0xa10] sm:$0xff]
    %v391 = vld [vmem:[#allocation3 + $0xa18] sm:$0xff]
    %v392 = vld [vmem:[#allocation3 + $0xa20] sm:$0xff]
    %v393 = vld [vmem:[#allocation3 + $0xa28] sm:$0xff]
    %v394 = vld [vmem:[#allocation3 + $0xa30] sm:$0xff]
    %v395 = vld [vmem:[#allocation3 + $0xa38] sm:$0xff]
    %v396 = vld [vmem:[#allocation3 + $0xa40] sm:$0xff]
    %v397 = vld [vmem:[#allocation3 + $0xa48] sm:$0xff]
    %v398 = vld [vmem:[#allocation3 + $0xa50] sm:$0xff]
    %v399 = vld [vmem:[#allocation3 + $0xa58] sm:$0xff]
    %v400 = vld [vmem:[#allocation3 + $0xa60] sm:$0xff]
    %v401 = vld [vmem:[#allocation3 + $0xa68] sm:$0xff]
    %v402 = vld [vmem:[#allocation3 + $0xa70] sm:$0xff]
    %v403 = vld [vmem:[#allocation3 + $0xa78] sm:$0xff]
    %v404 = vld [vmem:[#allocation3 + $0xa80] sm:$0xff]
    %v405 = vld [vmem:[#allocation3 + $0xa88] sm:$0xff]
    %v406 = vld [vmem:[#allocation3 + $0xa90] sm:$0xff]
    %v407 = vld [vmem:[#allocation3 + $0xa98] sm:$0xff]
    %v408 = vld [vmem:[#allocation3 + $0xaa0] sm:$0xff]
    %v409 = vld [vmem:[#allocation3 + $0xaa8] sm:$0xff]
    %v410 = vld [vmem:[#allocation3 + $0xab0] sm:$0xff]
    %v411 = vld [vmem:[#allocation3 + $0xab8] sm:$0xff]
    %v412 = vld [vmem:[#allocation3 + $0xac0] sm:$0xff]
    %v413 = vld [vmem:[#allocation3 + $0xac8] sm:$0xff]
    %v414 = vld [vmem:[#allocation3 + $0xad0] sm:$0xff]
    %v415 = vld [vmem:[#allocation3 + $0xad8] sm:$0xff]
    %v416 = vld [vmem:[#allocation3 + $0xae0] sm:$0xff]
    %v417 = vld [vmem:[#allocation3 + $0xae8] sm:$0xff]
    %v418 = vld [vmem:[#allocation3 + $0xaf0] sm:$0xff]
    %v419 = vld [vmem:[#allocation3 + $0xaf8] sm:$0xff]
    %v420 = vld [vmem:[#allocation3 + $0xb00] sm:$0xff]
    %v421 = vld [vmem:[#allocation3 + $0xb08] sm:$0xff]
    %v422 = vld [vmem:[#allocation3 + $0xb10] sm:$0xff]
    %v423 = vld [vmem:[#allocation3 + $0xb18] sm:$0xff]
    %v424 = vld [vmem:[#allocation3 + $0xb20] sm:$0xff]
    %v425 = vld [vmem:[#allocation3 + $0xb28] sm:$0xff]
    %v426 = vld [vmem:[#allocation3 + $0xb30] sm:$0xff]
    %v427 = vld [vmem:[#allocation3 + $0xb38] sm:$0xff]
    %v428 = vld [vmem:[#allocation3 + $0xb40] sm:$0xff]
    %v429 = vld [vmem:[#allocation3 + $0xb48] sm:$0xff]
    %v430 = vld [vmem:[#allocation3 + $0xb50] sm:$0xff]
    %v431 = vld [vmem:[#allocation3 + $0xb58] sm:$0xff]
    %v432 = vld [vmem:[#allocation3 + $0xb60] sm:$0xff]
    %v433 = vld [vmem:[#allocation3 + $0xb68] sm:$0xff]
    %v434 = vld [vmem:[#allocation3 + $0xb70] sm:$0xff]
    %v435 = vld [vmem:[#allocation3 + $0xb78] sm:$0xff]
    %v436 = vld [vmem:[#allocation3 + $0xb80] sm:$0xff]
    %v437 = vld [vmem:[#allocation3 + $0xb88] sm:$0xff]
    %v438 = vld [vmem:[#allocation3 + $0xb90] sm:$0xff]
    %v439 = vld [vmem:[#allocation3 + $0xb98] sm:$0xff]
    %v440 = vld [vmem:[#allocation3 + $0xba0] sm:$0xff]
    %v441 = vld [vmem:[#allocation3 + $0xba8] sm:$0xff]
    %v442 = vld [vmem:[#allocation3 + $0xbb0] sm:$0xff]
    %v443 = vld [vmem:[#allocation3 + $0xbb8] sm:$0xff]
    %v444 = vld [vmem:[#allocation3 + $0xbc0] sm:$0xff]
    %v445 = vld [vmem:[#allocation3 + $0xbc8] sm:$0xff]
    %v446 = vld [vmem:[#allocation3 + $0xbd0] sm:$0xff]
    %v447 = vld [vmem:[#allocation3 + $0xbd8] sm:$0xff]
    %v448 = vld [vmem:[#allocation3 + $0xbe0] sm:$0xff]
    %v449 = vld [vmem:[#allocation3 + $0xbe8] sm:$0xff]
    %v450 = vld [vmem:[#allocation3 + $0xbf0] sm:$0xff]
    %v451 = vld [vmem:[#allocation3 + $0xbf8] sm:$0xff]
    %v452 = vld [vmem:[#allocation3 + $0xc00] sm:$0xff]
    %v453 = vld [vmem:[#allocation3 + $0xc08] sm:$0xff]
    %v454 = vld [vmem:[#allocation3 + $0xc10] sm:$0xff]
    %v455 = vld [vmem:[#allocation3 + $0xc18] sm:$0xff]
    %v456 = vld [vmem:[#allocation3 + $0xc20] sm:$0xff]
    %v457 = vld [vmem:[#allocation3 + $0xc28] sm:$0xff]
    %v458 = vld [vmem:[#allocation3 + $0xc30] sm:$0xff]
    %v459 = vld [vmem:[#allocation3 + $0xc38] sm:$0xff]
    %v460 = vld [vmem:[#allocation3 + $0xc40] sm:$0xff]
    %v461 = vld [vmem:[#allocation3 + $0xc48] sm:$0xff]
    %v462 = vld [vmem:[#allocation3 + $0xc50] sm:$0xff]
    %v463 = vld [vmem:[#allocation3 + $0xc58] sm:$0xff]
    %v464 = vld [vmem:[#allocation3 + $0xc60] sm:$0xff]
    %v465 = vld [vmem:[#allocation3 + $0xc68] sm:$0xff]
    %v466 = vld [vmem:[#allocation3 + $0xc70] sm:$0xff]
    %v467 = vld [vmem:[#allocation3 + $0xc78] sm:$0xff]
    %v468 = vld [vmem:[#allocation3 + $0xc80] sm:$0xff]
    %v469 = vld [vmem:[#allocation3 + $0xc88] sm:$0xff]
    %v470 = vld [vmem:[#allocation3 + $0xc90] sm:$0xff]
    %v471 = vld [vmem:[#allocation3 + $0xc98] sm:$0xff]
    %v472 = vld [vmem:[#allocation3 + $0xca0] sm:$0xff]
    %v473 = vld [vmem:[#allocation3 + $0xca8] sm:$0xff]
    %v474 = vld [vmem:[#allocation3 + $0xcb0] sm:$0xff]
    %v475 = vld [vmem:[#allocation3 + $0xcb8] sm:$0xff]
    %v476 = vld [vmem:[#allocation3 + $0xcc0] sm:$0xff]
    %v477 = vld [vmem:[#allocation3 + $0xcc8] sm:$0xff]
    %v478 = vld [vmem:[#allocation3 + $0xcd0] sm:$0xff]
    %v479 = vld [vmem:[#allocation3 + $0xcd8] sm:$0xff]
    %v480 = vld [vmem:[#allocation3 + $0xce0] sm:$0xff]
    %v481 = vld [vmem:[#allocation3 + $0xce8] sm:$0xff]
    %v482 = vld [vmem:[#allocation3 + $0xcf0] sm:$0xff]
    %v483 = vld [vmem:[#allocation3 + $0xcf8] sm:$0xff]
    %v484 = vld [vmem:[#allocation3 + $0xd00] sm:$0xff]
    %v485 = vld [vmem:[#allocation3 + $0xd08] sm:$0xff]
    %v486 = vld [vmem:[#allocation3 + $0xd10] sm:$0xff]
    %v487 = vld [vmem:[#allocation3 + $0xd18] sm:$0xff]
    %v488 = vld [vmem:[#allocation3 + $0xd20] sm:$0xff]
    %v489 = vld [vmem:[#allocation3 + $0xd28] sm:$0xff]
    %v490 = vld [vmem:[#allocation3 + $0xd30] sm:$0xff]
    %v491 = vld [vmem:[#allocation3 + $0xd38] sm:$0xff]
    %v492 = vld [vmem:[#allocation3 + $0xd40] sm:$0xff]
    %v493 = vld [vmem:[#allocation3 + $0xd48] sm:$0xff]
    %v494 = vld [vmem:[#allocation3 + $0xd50] sm:$0xff]
    %v495 = vld [vmem:[#allocation3 + $0xd58] sm:$0xff]
    %v496 = vld [vmem:[#allocation3 + $0xd60] sm:$0xff]
    %v497 = vld [vmem:[#allocation3 + $0xd68] sm:$0xff]
    %v498 = vld [vmem:[#allocation3 + $0xd70] sm:$0xff]
    %v499 = vld [vmem:[#allocation3 + $0xd78] sm:$0xff]
    %v500 = vld [vmem:[#allocation3 + $0xd80] sm:$0xff]
    %v501 = vld [vmem:[#allocation3 + $0xd88] sm:$0xff]
    %v502 = vld [vmem:[#allocation3 + $0xd90] sm:$0xff]
    %v503 = vld [vmem:[#allocation3 + $0xd98] sm:$0xff]
    %v504 = vld [vmem:[#allocation3 + $0xda0] sm:$0xff]
    %v505 = vld [vmem:[#allocation3 + $0xda8] sm:$0xff]
    %v506 = vld [vmem:[#allocation3 + $0xdb0] sm:$0xff]
    %v507 = vld [vmem:[#allocation3 + $0xdb8] sm:$0xff]
    %v508 = vld [vmem:[#allocation3 + $0xdc0] sm:$0xff]
    %v509 = vld [vmem:[#allocation3 + $0xdc8] sm:$0xff]
    %v510 = vld [vmem:[#allocation3 + $0xdd0] sm:$0xff]
    %v511 = vld [vmem:[#allocation3 + $0xdd8] sm:$0xff]
    %v512 = vld [vmem:[#allocation3 + $0xde0] sm:$0xff]
    %v513 = vld [vmem:[#allocation3 + $0xde8] sm:$0xff]
    %v514 = vld [vmem:[#allocation3 + $0xdf0] sm:$0xff]
    %v515 = vld [vmem:[#allocation3 + $0xdf8] sm:$0xff]
    %v516 = vld [vmem:[#allocation3 + $0xe00] sm:$0xff]
    %v517 = vld [vmem:[#allocation3 + $0xe08] sm:$0xff]
    %v518 = vld [vmem:[#allocation3 + $0xe10] sm:$0xff]
    %v519 = vld [vmem:[#allocation3 + $0xe18] sm:$0xff]
    %v520 = vld [vmem:[#allocation3 + $0xe20] sm:$0xff]
    %v521 = vld [vmem:[#allocation3 + $0xe28] sm:$0xff]
    %v522 = vld [vmem:[#allocation3 + $0xe30] sm:$0xff]
    %v523 = vld [vmem:[#allocation3 + $0xe38] sm:$0xff]
    %v524 = vld [vmem:[#allocation3 + $0xe40] sm:$0xff]
    %v525 = vld [vmem:[#allocation3 + $0xe48] sm:$0xff]
    %v526 = vld [vmem:[#allocation3 + $0xe50] sm:$0xff]
    %v527 = vld [vmem:[#allocation3 + $0xe58] sm:$0xff]
    %v528 = vld [vmem:[#allocation3 + $0xe60] sm:$0xff]
    %v529 = vld [vmem:[#allocation3 + $0xe68] sm:$0xff]
    %v530 = vld [vmem:[#allocation3 + $0xe70] sm:$0xff]
    %v531 = vld [vmem:[#allocation3 + $0xe78] sm:$0xff]
    %v532 = vld [vmem:[#allocation3 + $0xe80] sm:$0xff]
    %v533 = vld [vmem:[#allocation3 + $0xe88] sm:$0xff]
    %v534 = vld [vmem:[#allocation3 + $0xe90] sm:$0xff]
    %v535 = vld [vmem:[#allocation3 + $0xe98] sm:$0xff]
    %v536 = vld [vmem:[#allocation3 + $0xea0] sm:$0xff]
    %v537 = vld [vmem:[#allocation3 + $0xea8] sm:$0xff]
    %v538 = vld [vmem:[#allocation3 + $0xeb0] sm:$0xff]
    %v539 = vld [vmem:[#allocation3 + $0xeb8] sm:$0xff]
    %v540 = vld [vmem:[#allocation3 + $0xec0] sm:$0xff]
    %v541 = vld [vmem:[#allocation3 + $0xec8] sm:$0xff]
    %v542 = vld [vmem:[#allocation3 + $0xed0] sm:$0xff]
    %v543 = vld [vmem:[#allocation3 + $0xed8] sm:$0xff]
    %v544 = vld [vmem:[#allocation3 + $0xee0] sm:$0xff]
    %v545 = vld [vmem:[#allocation3 + $0xee8] sm:$0xff]
    %v546 = vld [vmem:[#allocation3 + $0xef0] sm:$0xff]
    %v547 = vld [vmem:[#allocation3 + $0xef8] sm:$0xff]
    %v548 = vld [vmem:[#allocation3 + $0xf00] sm:$0xff]
    %v549 = vld [vmem:[#allocation3 + $0xf08] sm:$0xff]
    %v550 = vld [vmem:[#allocation3 + $0xf10] sm:$0xff]
    %v551 = vld [vmem:[#allocation3 + $0xf18] sm:$0xff]
    %v552 = vld [vmem:[#allocation3 + $0xf20] sm:$0xff]
    %v553 = vld [vmem:[#allocation3 + $0xf28] sm:$0xff]
    %v554 = vld [vmem:[#allocation3 + $0xf30] sm:$0xff]
    %v555 = vld [vmem:[#allocation3 + $0xf38] sm:$0xff]
    %v556 = vld [vmem:[#allocation3 + $0xf40] sm:$0xff]
    %v557 = vld [vmem:[#allocation3 + $0xf48] sm:$0xff]
    %v558 = vld [vmem:[#allocation3 + $0xf50] sm:$0xff]
    %v559 = vld [vmem:[#allocation3 + $0xf58] sm:$0xff]
    %v560 = vld [vmem:[#allocation3 + $0xf60] sm:$0xff]
    %v561 = vld [vmem:[#allocation3 + $0xf68] sm:$0xff]
    %v562 = vld [vmem:[#allocation3 + $0xf70] sm:$0xff]
    %v563 = vld [vmem:[#allocation3 + $0xf78] sm:$0xff]
    %v564 = vld [vmem:[#allocation3 + $0xf80] sm:$0xff]
    %v565 = vld [vmem:[#allocation3 + $0xf88] sm:$0xff]
    %v566 = vld [vmem:[#allocation3 + $0xf90] sm:$0xff]
    %v567 = vld [vmem:[#allocation3 + $0xf98] sm:$0xff]
    %v568 = vld [vmem:[#allocation3 + $0xfa0] sm:$0xff]
    %v569 = vld [vmem:[#allocation3 + $0xfa8] sm:$0xff]
    %v570 = vld [vmem:[#allocation3 + $0xfb0] sm:$0xff]
    %v571 = vld [vmem:[#allocation3 + $0xfb8] sm:$0xff]
    %v572 = vld [vmem:[#allocation3 + $0xfc0] sm:$0xff]
    %v573 = vld [vmem:[#allocation3 + $0xfc8] sm:$0xff]
    %v574 = vld [vmem:[#allocation3 + $0xfd0] sm:$0xff]
    %v575 = vld [vmem:[#allocation3 + $0xfd8] sm:$0xff]
    %v576 = vld [vmem:[#allocation3 + $0xfe0] sm:$0xff]
    %v577 = vld [vmem:[#allocation3 + $0xfe8] sm:$0xff]
    %v578 = vld [vmem:[#allocation3 + $0xff0] sm:$0xff]
    %v579 = vld [vmem:[#allocation3 + $0xff8] sm:$0xff]
    %v588 = vunpack.c.l.b16 %v60
    %v589 = vunpack.c.h.b16 %v60
    %v590 = vunpack.c.l.b16 %v61
    %v591 = vunpack.c.h.b16 %v61
    %v592 = vunpack.c.l.b16 %v62
    %v593 = vunpack.c.h.b16 %v62
    %v594 = vunpack.c.l.b16 %v63
    %v595 = vunpack.c.h.b16 %v63
    %v596 = vunpack.c.l.b16 %v64
    %v597 = vunpack.c.h.b16 %v64
    %v598 = vunpack.c.l.b16 %v65
    %v599 = vunpack.c.h.b16 %v65
    %v600 = vunpack.c.l.b16 %v66
    %v601 = vunpack.c.h.b16 %v66
    %v602 = vunpack.c.l.b16 %v67
    %v603 = vunpack.c.h.b16 %v67
    %v604 = vpack.c.b16 %v592, %v588
    %v605 = vpack.c.b16 %v593, %v589
    %v606 = vpack.c.b16 %v594, %v590
    %v607 = vpack.c.b16 %v595, %v591
    %v608 = vpack.c.b16 %v600, %v596
    %v609 = vpack.c.b16 %v601, %v597
    %v610 = vpack.c.b16 %v602, %v598
    %v611 = vpack.c.b16 %v603, %v599
    %v1132 = vunpack.c.l.b16 %v68
    %v1133 = vunpack.c.h.b16 %v68
    %v1134 = vunpack.c.l.b16 %v69
    %v1135 = vunpack.c.h.b16 %v69
    %v1136 = vunpack.c.l.b16 %v70
    %v1137 = vunpack.c.h.b16 %v70
    %v1138 = vunpack.c.l.b16 %v71
    %v1139 = vunpack.c.h.b16 %v71
    %v1140 = vunpack.c.l.b16 %v72
    %v1141 = vunpack.c.h.b16 %v72
    %v1142 = vunpack.c.l.b16 %v73
    %v1143 = vunpack.c.h.b16 %v73
    %v1144 = vunpack.c.l.b16 %v74
    %v1145 = vunpack.c.h.b16 %v74
    %v1146 = vunpack.c.l.b16 %v75
    %v1147 = vunpack.c.h.b16 %v75
    %v1148 = vunpack.c.l.b16 %v76
    %v1149 = vunpack.c.h.b16 %v76
    %v1150 = vunpack.c.l.b16 %v77
    %v1151 = vunpack.c.h.b16 %v77
    %v1152 = vunpack.c.l.b16 %v78
    %v1153 = vunpack.c.h.b16 %v78
    %v1154 = vunpack.c.l.b16 %v79
    %v1155 = vunpack.c.h.b16 %v79
    %v1156 = vunpack.c.l.b16 %v80
    %v1157 = vunpack.c.h.b16 %v80
    %v1158 = vunpack.c.l.b16 %v81
    %v1159 = vunpack.c.h.b16 %v81
    %v1160 = vunpack.c.l.b16 %v82
    %v1161 = vunpack.c.h.b16 %v82
    %v1162 = vunpack.c.l.b16 %v83
    %v1163 = vunpack.c.h.b16 %v83
    %v1164 = vunpack.c.l.b16 %v84
    %v1165 = vunpack.c.h.b16 %v84
    %v1166 = vunpack.c.l.b16 %v85
    %v1167 = vunpack.c.h.b16 %v85
    %v1168 = vunpack.c.l.b16 %v86
    %v1169 = vunpack.c.h.b16 %v86
    %v1170 = vunpack.c.l.b16 %v87
    %v1171 = vunpack.c.h.b16 %v87
    %v1172 = vunpack.c.l.b16 %v88
    %v1173 = vunpack.c.h.b16 %v88
    %v1174 = vunpack.c.l.b16 %v89
    %v1175 = vunpack.c.h.b16 %v89
    %v1176 = vunpack.c.l.b16 %v90
    %v1177 = vunpack.c.h.b16 %v90
    %v1178 = vunpack.c.l.b16 %v91
    %v1179 = vunpack.c.h.b16 %v91
    %v1180 = vunpack.c.l.b16 %v92
    %v1181 = vunpack.c.h.b16 %v92
    %v1182 = vunpack.c.l.b16 %v93
    %v1183 = vunpack.c.h.b16 %v93
    %v1184 = vunpack.c.l.b16 %v94
    %v1185 = vunpack.c.h.b16 %v94
    %v1186 = vunpack.c.l.b16 %v95
    %v1187 = vunpack.c.h.b16 %v95
    %v1188 = vunpack.c.l.b16 %v96
    %v1189 = vunpack.c.h.b16 %v96
    %v1190 = vunpack.c.l.b16 %v97
    %v1191 = vunpack.c.h.b16 %v97
    %v1192 = vunpack.c.l.b16 %v98
    %v1193 = vunpack.c.h.b16 %v98
    %v1194 = vunpack.c.l.b16 %v99
    %v1195 = vunpack.c.h.b16 %v99
    %v1196 = vunpack.c.l.b16 %v100
    %v1197 = vunpack.c.h.b16 %v100
    %v1198 = vunpack.c.l.b16 %v101
    %v1199 = vunpack.c.h.b16 %v101
    %v1200 = vunpack.c.l.b16 %v102
    %v1201 = vunpack.c.h.b16 %v102
    %v1202 = vunpack.c.l.b16 %v103
    %v1203 = vunpack.c.h.b16 %v103
    %v1204 = vunpack.c.l.b16 %v104
    %v1205 = vunpack.c.h.b16 %v104
    %v1206 = vunpack.c.l.b16 %v105
    %v1207 = vunpack.c.h.b16 %v105
    %v1208 = vunpack.c.l.b16 %v106
    %v1209 = vunpack.c.h.b16 %v106
    %v1210 = vunpack.c.l.b16 %v107
    %v1211 = vunpack.c.h.b16 %v107
    %v1212 = vunpack.c.l.b16 %v108
    %v1213 = vunpack.c.h.b16 %v108
    %v1214 = vunpack.c.l.b16 %v109
    %v1215 = vunpack.c.h.b16 %v109
    %v1216 = vunpack.c.l.b16 %v110
    %v1217 = vunpack.c.h.b16 %v110
    %v1218 = vunpack.c.l.b16 %v111
    %v1219 = vunpack.c.h.b16 %v111
    %v1220 = vunpack.c.l.b16 %v112
    %v1221 = vunpack.c.h.b16 %v112
    %v1222 = vunpack.c.l.b16 %v113
    %v1223 = vunpack.c.h.b16 %v113
    %v1224 = vunpack.c.l.b16 %v114
    %v1225 = vunpack.c.h.b16 %v114
    %v1226 = vunpack.c.l.b16 %v115
    %v1227 = vunpack.c.h.b16 %v115
    %v1228 = vunpack.c.l.b16 %v116
    %v1229 = vunpack.c.h.b16 %v116
    %v1230 = vunpack.c.l.b16 %v117
    %v1231 = vunpack.c.h.b16 %v117
    %v1232 = vunpack.c.l.b16 %v118
    %v1233 = vunpack.c.h.b16 %v118
    %v1234 = vunpack.c.l.b16 %v119
    %v1235 = vunpack.c.h.b16 %v119
    %v1236 = vunpack.c.l.b16 %v120
    %v1237 = vunpack.c.h.b16 %v120
    %v1238 = vunpack.c.l.b16 %v121
    %v1239 = vunpack.c.h.b16 %v121
    %v1240 = vunpack.c.l.b16 %v122
    %v1241 = vunpack.c.h.b16 %v122
    %v1242 = vunpack.c.l.b16 %v123
    %v1243 = vunpack.c.h.b16 %v123
    %v1244 = vunpack.c.l.b16 %v124
    %v1245 = vunpack.c.h.b16 %v124
    %v1246 = vunpack.c.l.b16 %v125
    %v1247 = vunpack.c.h.b16 %v125
    %v1248 = vunpack.c.l.b16 %v126
    %v1249 = vunpack.c.h.b16 %v126
    %v1250 = vunpack.c.l.b16 %v127
    %v1251 = vunpack.c.h.b16 %v127
    %v1252 = vunpack.c.l.b16 %v128
    %v1253 = vunpack.c.h.b16 %v128
    %v1254 = vunpack.c.l.b16 %v129
    %v1255 = vunpack.c.h.b16 %v129
    %v1256 = vunpack.c.l.b16 %v130
    %v1257 = vunpack.c.h.b16 %v130
    %v1258 = vunpack.c.l.b16 %v131
    %v1259 = vunpack.c.h.b16 %v131
    %v1260 = vunpack.c.l.b16 %v132
    %v1261 = vunpack.c.h.b16 %v132
    %v1262 = vunpack.c.l.b16 %v133
    %v1263 = vunpack.c.h.b16 %v133
    %v1264 = vunpack.c.l.b16 %v134
    %v1265 = vunpack.c.h.b16 %v134
    %v1266 = vunpack.c.l.b16 %v135
    %v1267 = vunpack.c.h.b16 %v135
    %v1268 = vunpack.c.l.b16 %v136
    %v1269 = vunpack.c.h.b16 %v136
    %v1270 = vunpack.c.l.b16 %v137
    %v1271 = vunpack.c.h.b16 %v137
    %v1272 = vunpack.c.l.b16 %v138
    %v1273 = vunpack.c.h.b16 %v138
    %v1274 = vunpack.c.l.b16 %v139
    %v1275 = vunpack.c.h.b16 %v139
    %v1276 = vunpack.c.l.b16 %v140
    %v1277 = vunpack.c.h.b16 %v140
    %v1278 = vunpack.c.l.b16 %v141
    %v1279 = vunpack.c.h.b16 %v141
    %v1280 = vunpack.c.l.b16 %v142
    %v1281 = vunpack.c.h.b16 %v142
    %v1282 = vunpack.c.l.b16 %v143
    %v1283 = vunpack.c.h.b16 %v143
    %v1284 = vunpack.c.l.b16 %v144
    %v1285 = vunpack.c.h.b16 %v144
    %v1286 = vunpack.c.l.b16 %v145
    %v1287 = vunpack.c.h.b16 %v145
    %v1288 = vunpack.c.l.b16 %v146
    %v1289 = vunpack.c.h.b16 %v146
    %v1290 = vunpack.c.l.b16 %v147
    %v1291 = vunpack.c.h.b16 %v147
    %v1292 = vunpack.c.l.b16 %v148
    %v1293 = vunpack.c.h.b16 %v148
    %v1294 = vunpack.c.l.b16 %v149
    %v1295 = vunpack.c.h.b16 %v149
    %v1296 = vunpack.c.l.b16 %v150
    %v1297 = vunpack.c.h.b16 %v150
    %v1298 = vunpack.c.l.b16 %v151
    %v1299 = vunpack.c.h.b16 %v151
    %v1300 = vunpack.c.l.b16 %v152
    %v1301 = vunpack.c.h.b16 %v152
    %v1302 = vunpack.c.l.b16 %v153
    %v1303 = vunpack.c.h.b16 %v153
    %v1304 = vunpack.c.l.b16 %v154
    %v1305 = vunpack.c.h.b16 %v154
    %v1306 = vunpack.c.l.b16 %v155
    %v1307 = vunpack.c.h.b16 %v155
    %v1308 = vunpack.c.l.b16 %v156
    %v1309 = vunpack.c.h.b16 %v156
    %v1310 = vunpack.c.l.b16 %v157
    %v1311 = vunpack.c.h.b16 %v157
    %v1312 = vunpack.c.l.b16 %v158
    %v1313 = vunpack.c.h.b16 %v158
    %v1314 = vunpack.c.l.b16 %v159
    %v1315 = vunpack.c.h.b16 %v159
    %v1316 = vunpack.c.l.b16 %v160
    %v1317 = vunpack.c.h.b16 %v160
    %v1318 = vunpack.c.l.b16 %v161
    %v1319 = vunpack.c.h.b16 %v161
    %v1320 = vunpack.c.l.b16 %v162
    %v1321 = vunpack.c.h.b16 %v162
    %v1322 = vunpack.c.l.b16 %v163
    %v1323 = vunpack.c.h.b16 %v163
    %v1324 = vunpack.c.l.b16 %v164
    %v1325 = vunpack.c.h.b16 %v164
    %v1326 = vunpack.c.l.b16 %v165
    %v1327 = vunpack.c.h.b16 %v165
    %v1328 = vunpack.c.l.b16 %v166
    %v1329 = vunpack.c.h.b16 %v166
    %v1330 = vunpack.c.l.b16 %v167
    %v1331 = vunpack.c.h.b16 %v167
    %v1332 = vunpack.c.l.b16 %v168
    %v1333 = vunpack.c.h.b16 %v168
    %v1334 = vunpack.c.l.b16 %v169
    %v1335 = vunpack.c.h.b16 %v169
    %v1336 = vunpack.c.l.b16 %v170
    %v1337 = vunpack.c.h.b16 %v170
    %v1338 = vunpack.c.l.b16 %v171
    %v1339 = vunpack.c.h.b16 %v171
    %v1340 = vunpack.c.l.b16 %v172
    %v1341 = vunpack.c.h.b16 %v172
    %v1342 = vunpack.c.l.b16 %v173
    %v1343 = vunpack.c.h.b16 %v173
    %v1344 = vunpack.c.l.b16 %v174
    %v1345 = vunpack.c.h.b16 %v174
    %v1346 = vunpack.c.l.b16 %v175
    %v1347 = vunpack.c.h.b16 %v175
    %v1348 = vunpack.c.l.b16 %v176
    %v1349 = vunpack.c.h.b16 %v176
    %v1350 = vunpack.c.l.b16 %v177
    %v1351 = vunpack.c.h.b16 %v177
    %v1352 = vunpack.c.l.b16 %v178
    %v1353 = vunpack.c.h.b16 %v178
    %v1354 = vunpack.c.l.b16 %v179
    %v1355 = vunpack.c.h.b16 %v179
    %v1356 = vunpack.c.l.b16 %v180
    %v1357 = vunpack.c.h.b16 %v180
    %v1358 = vunpack.c.l.b16 %v181
    %v1359 = vunpack.c.h.b16 %v181
    %v1360 = vunpack.c.l.b16 %v182
    %v1361 = vunpack.c.h.b16 %v182
    %v1362 = vunpack.c.l.b16 %v183
    %v1363 = vunpack.c.h.b16 %v183
    %v1364 = vunpack.c.l.b16 %v184
    %v1365 = vunpack.c.h.b16 %v184
    %v1366 = vunpack.c.l.b16 %v185
    %v1367 = vunpack.c.h.b16 %v185
    %v1368 = vunpack.c.l.b16 %v186
    %v1369 = vunpack.c.h.b16 %v186
    %v1370 = vunpack.c.l.b16 %v187
    %v1371 = vunpack.c.h.b16 %v187
    %v1372 = vunpack.c.l.b16 %v188
    %v1373 = vunpack.c.h.b16 %v188
    %v1374 = vunpack.c.l.b16 %v189
    %v1375 = vunpack.c.h.b16 %v189
    %v1376 = vunpack.c.l.b16 %v190
    %v1377 = vunpack.c.h.b16 %v190
    %v1378 = vunpack.c.l.b16 %v191
    %v1379 = vunpack.c.h.b16 %v191
    %v1380 = vunpack.c.l.b16 %v192
    %v1381 = vunpack.c.h.b16 %v192
    %v1382 = vunpack.c.l.b16 %v193
    %v1383 = vunpack.c.h.b16 %v193
    %v1384 = vunpack.c.l.b16 %v194
    %v1385 = vunpack.c.h.b16 %v194
    %v1386 = vunpack.c.l.b16 %v195
    %v1387 = vunpack.c.h.b16 %v195
    %v1388 = vunpack.c.l.b16 %v196
    %v1389 = vunpack.c.h.b16 %v196
    %v1390 = vunpack.c.l.b16 %v197
    %v1391 = vunpack.c.h.b16 %v197
    %v1392 = vunpack.c.l.b16 %v198
    %v1393 = vunpack.c.h.b16 %v198
    %v1394 = vunpack.c.l.b16 %v199
    %v1395 = vunpack.c.h.b16 %v199
    %v1396 = vunpack.c.l.b16 %v200
    %v1397 = vunpack.c.h.b16 %v200
    %v1398 = vunpack.c.l.b16 %v201
    %v1399 = vunpack.c.h.b16 %v201
    %v1400 = vunpack.c.l.b16 %v202
    %v1401 = vunpack.c.h.b16 %v202
    %v1402 = vunpack.c.l.b16 %v203
    %v1403 = vunpack.c.h.b16 %v203
    %v1404 = vunpack.c.l.b16 %v204
    %v1405 = vunpack.c.h.b16 %v204
    %v1406 = vunpack.c.l.b16 %v205
    %v1407 = vunpack.c.h.b16 %v205
    %v1408 = vunpack.c.l.b16 %v206
    %v1409 = vunpack.c.h.b16 %v206
    %v1410 = vunpack.c.l.b16 %v207
    %v1411 = vunpack.c.h.b16 %v207
    %v1412 = vunpack.c.l.b16 %v208
    %v1413 = vunpack.c.h.b16 %v208
    %v1414 = vunpack.c.l.b16 %v209
    %v1415 = vunpack.c.h.b16 %v209
    %v1416 = vunpack.c.l.b16 %v210
    %v1417 = vunpack.c.h.b16 %v210
    %v1418 = vunpack.c.l.b16 %v211
    %v1419 = vunpack.c.h.b16 %v211
    %v1420 = vunpack.c.l.b16 %v212
    %v1421 = vunpack.c.h.b16 %v212
    %v1422 = vunpack.c.l.b16 %v213
    %v1423 = vunpack.c.h.b16 %v213
    %v1424 = vunpack.c.l.b16 %v214
    %v1425 = vunpack.c.h.b16 %v214
    %v1426 = vunpack.c.l.b16 %v215
    %v1427 = vunpack.c.h.b16 %v215
    %v1428 = vunpack.c.l.b16 %v216
    %v1429 = vunpack.c.h.b16 %v216
    %v1430 = vunpack.c.l.b16 %v217
    %v1431 = vunpack.c.h.b16 %v217
    %v1432 = vunpack.c.l.b16 %v218
    %v1433 = vunpack.c.h.b16 %v218
    %v1434 = vunpack.c.l.b16 %v219
    %v1435 = vunpack.c.h.b16 %v219
    %v1436 = vunpack.c.l.b16 %v220
    %v1437 = vunpack.c.h.b16 %v220
    %v1438 = vunpack.c.l.b16 %v221
    %v1439 = vunpack.c.h.b16 %v221
    %v1440 = vunpack.c.l.b16 %v222
    %v1441 = vunpack.c.h.b16 %v222
    %v1442 = vunpack.c.l.b16 %v223
    %v1443 = vunpack.c.h.b16 %v223
    %v1444 = vunpack.c.l.b16 %v224
    %v1445 = vunpack.c.h.b16 %v224
    %v1446 = vunpack.c.l.b16 %v225
    %v1447 = vunpack.c.h.b16 %v225
    %v1448 = vunpack.c.l.b16 %v226
    %v1449 = vunpack.c.h.b16 %v226
    %v1450 = vunpack.c.l.b16 %v227
    %v1451 = vunpack.c.h.b16 %v227
    %v1452 = vunpack.c.l.b16 %v228
    %v1453 = vunpack.c.h.b16 %v228
    %v1454 = vunpack.c.l.b16 %v229
    %v1455 = vunpack.c.h.b16 %v229
    %v1456 = vunpack.c.l.b16 %v230
    %v1457 = vunpack.c.h.b16 %v230
    %v1458 = vunpack.c.l.b16 %v231
    %v1459 = vunpack.c.h.b16 %v231
    %v1460 = vunpack.c.l.b16 %v232
    %v1461 = vunpack.c.h.b16 %v232
    %v1462 = vunpack.c.l.b16 %v233
    %v1463 = vunpack.c.h.b16 %v233
    %v1464 = vunpack.c.l.b16 %v234
    %v1465 = vunpack.c.h.b16 %v234
    %v1466 = vunpack.c.l.b16 %v235
    %v1467 = vunpack.c.h.b16 %v235
    %v1468 = vunpack.c.l.b16 %v236
    %v1469 = vunpack.c.h.b16 %v236
    %v1470 = vunpack.c.l.b16 %v237
    %v1471 = vunpack.c.h.b16 %v237
    %v1472 = vunpack.c.l.b16 %v238
    %v1473 = vunpack.c.h.b16 %v238
    %v1474 = vunpack.c.l.b16 %v239
    %v1475 = vunpack.c.h.b16 %v239
    %v1476 = vunpack.c.l.b16 %v240
    %v1477 = vunpack.c.h.b16 %v240
    %v1478 = vunpack.c.l.b16 %v241
    %v1479 = vunpack.c.h.b16 %v241
    %v1480 = vunpack.c.l.b16 %v242
    %v1481 = vunpack.c.h.b16 %v242
    %v1482 = vunpack.c.l.b16 %v243
    %v1483 = vunpack.c.h.b16 %v243
    %v1484 = vunpack.c.l.b16 %v244
    %v1485 = vunpack.c.h.b16 %v244
    %v1486 = vunpack.c.l.b16 %v245
    %v1487 = vunpack.c.h.b16 %v245
    %v1488 = vunpack.c.l.b16 %v246
    %v1489 = vunpack.c.h.b16 %v246
    %v1490 = vunpack.c.l.b16 %v247
    %v1491 = vunpack.c.h.b16 %v247
    %v1492 = vunpack.c.l.b16 %v248
    %v1493 = vunpack.c.h.b16 %v248
    %v1494 = vunpack.c.l.b16 %v249
    %v1495 = vunpack.c.h.b16 %v249
    %v1496 = vunpack.c.l.b16 %v250
    %v1497 = vunpack.c.h.b16 %v250
    %v1498 = vunpack.c.l.b16 %v251
    %v1499 = vunpack.c.h.b16 %v251
    %v1500 = vunpack.c.l.b16 %v252
    %v1501 = vunpack.c.h.b16 %v252
    %v1502 = vunpack.c.l.b16 %v253
    %v1503 = vunpack.c.h.b16 %v253
    %v1504 = vunpack.c.l.b16 %v254
    %v1505 = vunpack.c.h.b16 %v254
    %v1506 = vunpack.c.l.b16 %v255
    %v1507 = vunpack.c.h.b16 %v255
    %v1508 = vunpack.c.l.b16 %v256
    %v1509 = vunpack.c.h.b16 %v256
    %v1510 = vunpack.c.l.b16 %v257
    %v1511 = vunpack.c.h.b16 %v257
    %v1512 = vunpack.c.l.b16 %v258
    %v1513 = vunpack.c.h.b16 %v258
    %v1514 = vunpack.c.l.b16 %v259
    %v1515 = vunpack.c.h.b16 %v259
    %v1516 = vunpack.c.l.b16 %v260
    %v1517 = vunpack.c.h.b16 %v260
    %v1518 = vunpack.c.l.b16 %v261
    %v1519 = vunpack.c.h.b16 %v261
    %v1520 = vunpack.c.l.b16 %v262
    %v1521 = vunpack.c.h.b16 %v262
    %v1522 = vunpack.c.l.b16 %v263
    %v1523 = vunpack.c.h.b16 %v263
    %v1524 = vunpack.c.l.b16 %v264
    %v1525 = vunpack.c.h.b16 %v264
    %v1526 = vunpack.c.l.b16 %v265
    %v1527 = vunpack.c.h.b16 %v265
    %v1528 = vunpack.c.l.b16 %v266
    %v1529 = vunpack.c.h.b16 %v266
    %v1530 = vunpack.c.l.b16 %v267
    %v1531 = vunpack.c.h.b16 %v267
    %v1532 = vunpack.c.l.b16 %v268
    %v1533 = vunpack.c.h.b16 %v268
    %v1534 = vunpack.c.l.b16 %v269
    %v1535 = vunpack.c.h.b16 %v269
    %v1536 = vunpack.c.l.b16 %v270
    %v1537 = vunpack.c.h.b16 %v270
    %v1538 = vunpack.c.l.b16 %v271
    %v1539 = vunpack.c.h.b16 %v271
    %v1540 = vunpack.c.l.b16 %v272
    %v1541 = vunpack.c.h.b16 %v272
    %v1542 = vunpack.c.l.b16 %v273
    %v1543 = vunpack.c.h.b16 %v273
    %v1544 = vunpack.c.l.b16 %v274
    %v1545 = vunpack.c.h.b16 %v274
    %v1546 = vunpack.c.l.b16 %v275
    %v1547 = vunpack.c.h.b16 %v275
    %v1548 = vunpack.c.l.b16 %v276
    %v1549 = vunpack.c.h.b16 %v276
    %v1550 = vunpack.c.l.b16 %v277
    %v1551 = vunpack.c.h.b16 %v277
    %v1552 = vunpack.c.l.b16 %v278
    %v1553 = vunpack.c.h.b16 %v278
    %v1554 = vunpack.c.l.b16 %v279
    %v1555 = vunpack.c.h.b16 %v279
    %v1556 = vunpack.c.l.b16 %v280
    %v1557 = vunpack.c.h.b16 %v280
    %v1558 = vunpack.c.l.b16 %v281
    %v1559 = vunpack.c.h.b16 %v281
    %v1560 = vunpack.c.l.b16 %v282
    %v1561 = vunpack.c.h.b16 %v282
    %v1562 = vunpack.c.l.b16 %v283
    %v1563 = vunpack.c.h.b16 %v283
    %v1564 = vunpack.c.l.b16 %v284
    %v1565 = vunpack.c.h.b16 %v284
    %v1566 = vunpack.c.l.b16 %v285
    %v1567 = vunpack.c.h.b16 %v285
    %v1568 = vunpack.c.l.b16 %v286
    %v1569 = vunpack.c.h.b16 %v286
    %v1570 = vunpack.c.l.b16 %v287
    %v1571 = vunpack.c.h.b16 %v287
    %v1572 = vunpack.c.l.b16 %v288
    %v1573 = vunpack.c.h.b16 %v288
    %v1574 = vunpack.c.l.b16 %v289
    %v1575 = vunpack.c.h.b16 %v289
    %v1576 = vunpack.c.l.b16 %v290
    %v1577 = vunpack.c.h.b16 %v290
    %v1578 = vunpack.c.l.b16 %v291
    %v1579 = vunpack.c.h.b16 %v291
    %v1580 = vunpack.c.l.b16 %v292
    %v1581 = vunpack.c.h.b16 %v292
    %v1582 = vunpack.c.l.b16 %v293
    %v1583 = vunpack.c.h.b16 %v293
    %v1584 = vunpack.c.l.b16 %v294
    %v1585 = vunpack.c.h.b16 %v294
    %v1586 = vunpack.c.l.b16 %v295
    %v1587 = vunpack.c.h.b16 %v295
    %v1588 = vunpack.c.l.b16 %v296
    %v1589 = vunpack.c.h.b16 %v296
    %v1590 = vunpack.c.l.b16 %v297
    %v1591 = vunpack.c.h.b16 %v297
    %v1592 = vunpack.c.l.b16 %v298
    %v1593 = vunpack.c.h.b16 %v298
    %v1594 = vunpack.c.l.b16 %v299
    %v1595 = vunpack.c.h.b16 %v299
    %v1596 = vunpack.c.l.b16 %v300
    %v1597 = vunpack.c.h.b16 %v300
    %v1598 = vunpack.c.l.b16 %v301
    %v1599 = vunpack.c.h.b16 %v301
    %v1600 = vunpack.c.l.b16 %v302
    %v1601 = vunpack.c.h.b16 %v302
    %v1602 = vunpack.c.l.b16 %v303
    %v1603 = vunpack.c.h.b16 %v303
    %v1604 = vunpack.c.l.b16 %v304
    %v1605 = vunpack.c.h.b16 %v304
    %v1606 = vunpack.c.l.b16 %v305
    %v1607 = vunpack.c.h.b16 %v305
    %v1608 = vunpack.c.l.b16 %v306
    %v1609 = vunpack.c.h.b16 %v306
    %v1610 = vunpack.c.l.b16 %v307
    %v1611 = vunpack.c.h.b16 %v307
    %v1612 = vunpack.c.l.b16 %v308
    %v1613 = vunpack.c.h.b16 %v308
    %v1614 = vunpack.c.l.b16 %v309
    %v1615 = vunpack.c.h.b16 %v309
    %v1616 = vunpack.c.l.b16 %v310
    %v1617 = vunpack.c.h.b16 %v310
    %v1618 = vunpack.c.l.b16 %v311
    %v1619 = vunpack.c.h.b16 %v311
    %v1620 = vunpack.c.l.b16 %v312
    %v1621 = vunpack.c.h.b16 %v312
    %v1622 = vunpack.c.l.b16 %v313
    %v1623 = vunpack.c.h.b16 %v313
    %v1624 = vunpack.c.l.b16 %v314
    %v1625 = vunpack.c.h.b16 %v314
    %v1626 = vunpack.c.l.b16 %v315
    %v1627 = vunpack.c.h.b16 %v315
    %v1628 = vunpack.c.l.b16 %v316
    %v1629 = vunpack.c.h.b16 %v316
    %v1630 = vunpack.c.l.b16 %v317
    %v1631 = vunpack.c.h.b16 %v317
    %v1632 = vunpack.c.l.b16 %v318
    %v1633 = vunpack.c.h.b16 %v318
    %v1634 = vunpack.c.l.b16 %v319
    %v1635 = vunpack.c.h.b16 %v319
    %v1636 = vunpack.c.l.b16 %v320
    %v1637 = vunpack.c.h.b16 %v320
    %v1638 = vunpack.c.l.b16 %v321
    %v1639 = vunpack.c.h.b16 %v321
    %v1640 = vunpack.c.l.b16 %v322
    %v1641 = vunpack.c.h.b16 %v322
    %v1642 = vunpack.c.l.b16 %v323
    %v1643 = vunpack.c.h.b16 %v323
    %v1644 = vunpack.c.l.b16 %v324
    %v1645 = vunpack.c.h.b16 %v324
    %v1646 = vunpack.c.l.b16 %v325
    %v1647 = vunpack.c.h.b16 %v325
    %v1648 = vunpack.c.l.b16 %v326
    %v1649 = vunpack.c.h.b16 %v326
    %v1650 = vunpack.c.l.b16 %v327
    %v1651 = vunpack.c.h.b16 %v327
    %v1652 = vunpack.c.l.b16 %v328
    %v1653 = vunpack.c.h.b16 %v328
    %v1654 = vunpack.c.l.b16 %v329
    %v1655 = vunpack.c.h.b16 %v329
    %v1656 = vunpack.c.l.b16 %v330
    %v1657 = vunpack.c.h.b16 %v330
    %v1658 = vunpack.c.l.b16 %v331
    %v1659 = vunpack.c.h.b16 %v331
    %v1660 = vunpack.c.l.b16 %v332
    %v1661 = vunpack.c.h.b16 %v332
    %v1662 = vunpack.c.l.b16 %v333
    %v1663 = vunpack.c.h.b16 %v333
    %v1664 = vunpack.c.l.b16 %v334
    %v1665 = vunpack.c.h.b16 %v334
    %v1666 = vunpack.c.l.b16 %v335
    %v1667 = vunpack.c.h.b16 %v335
    %v1668 = vunpack.c.l.b16 %v336
    %v1669 = vunpack.c.h.b16 %v336
    %v1670 = vunpack.c.l.b16 %v337
    %v1671 = vunpack.c.h.b16 %v337
    %v1672 = vunpack.c.l.b16 %v338
    %v1673 = vunpack.c.h.b16 %v338
    %v1674 = vunpack.c.l.b16 %v339
    %v1675 = vunpack.c.h.b16 %v339
    %v1676 = vunpack.c.l.b16 %v340
    %v1677 = vunpack.c.h.b16 %v340
    %v1678 = vunpack.c.l.b16 %v341
    %v1679 = vunpack.c.h.b16 %v341
    %v1680 = vunpack.c.l.b16 %v342
    %v1681 = vunpack.c.h.b16 %v342
    %v1682 = vunpack.c.l.b16 %v343
    %v1683 = vunpack.c.h.b16 %v343
    %v1684 = vunpack.c.l.b16 %v344
    %v1685 = vunpack.c.h.b16 %v344
    %v1686 = vunpack.c.l.b16 %v345
    %v1687 = vunpack.c.h.b16 %v345
    %v1688 = vunpack.c.l.b16 %v346
    %v1689 = vunpack.c.h.b16 %v346
    %v1690 = vunpack.c.l.b16 %v347
    %v1691 = vunpack.c.h.b16 %v347
    %v1692 = vunpack.c.l.b16 %v348
    %v1693 = vunpack.c.h.b16 %v348
    %v1694 = vunpack.c.l.b16 %v349
    %v1695 = vunpack.c.h.b16 %v349
    %v1696 = vunpack.c.l.b16 %v350
    %v1697 = vunpack.c.h.b16 %v350
    %v1698 = vunpack.c.l.b16 %v351
    %v1699 = vunpack.c.h.b16 %v351
    %v1700 = vunpack.c.l.b16 %v352
    %v1701 = vunpack.c.h.b16 %v352
    %v1702 = vunpack.c.l.b16 %v353
    %v1703 = vunpack.c.h.b16 %v353
    %v1704 = vunpack.c.l.b16 %v354
    %v1705 = vunpack.c.h.b16 %v354
    %v1706 = vunpack.c.l.b16 %v355
    %v1707 = vunpack.c.h.b16 %v355
    %v1708 = vunpack.c.l.b16 %v356
    %v1709 = vunpack.c.h.b16 %v356
    %v1710 = vunpack.c.l.b16 %v357
    %v1711 = vunpack.c.h.b16 %v357
    %v1712 = vunpack.c.l.b16 %v358
    %v1713 = vunpack.c.h.b16 %v358
    %v1714 = vunpack.c.l.b16 %v359
    %v1715 = vunpack.c.h.b16 %v359
    %v1716 = vunpack.c.l.b16 %v360
    %v1717 = vunpack.c.h.b16 %v360
    %v1718 = vunpack.c.l.b16 %v361
    %v1719 = vunpack.c.h.b16 %v361
    %v1720 = vunpack.c.l.b16 %v362
    %v1721 = vunpack.c.h.b16 %v362
    %v1722 = vunpack.c.l.b16 %v363
    %v1723 = vunpack.c.h.b16 %v363
    %v1724 = vunpack.c.l.b16 %v364
    %v1725 = vunpack.c.h.b16 %v364
    %v1726 = vunpack.c.l.b16 %v365
    %v1727 = vunpack.c.h.b16 %v365
    %v1728 = vunpack.c.l.b16 %v366
    %v1729 = vunpack.c.h.b16 %v366
    %v1730 = vunpack.c.l.b16 %v367
    %v1731 = vunpack.c.h.b16 %v367
    %v1732 = vunpack.c.l.b16 %v368
    %v1733 = vunpack.c.h.b16 %v368
    %v1734 = vunpack.c.l.b16 %v369
    %v1735 = vunpack.c.h.b16 %v369
    %v1736 = vunpack.c.l.b16 %v370
    %v1737 = vunpack.c.h.b16 %v370
    %v1738 = vunpack.c.l.b16 %v371
    %v1739 = vunpack.c.h.b16 %v371
    %v1740 = vunpack.c.l.b16 %v372
    %v1741 = vunpack.c.h.b16 %v372
    %v1742 = vunpack.c.l.b16 %v373
    %v1743 = vunpack.c.h.b16 %v373
    %v1744 = vunpack.c.l.b16 %v374
    %v1745 = vunpack.c.h.b16 %v374
    %v1746 = vunpack.c.l.b16 %v375
    %v1747 = vunpack.c.h.b16 %v375
    %v1748 = vunpack.c.l.b16 %v376
    %v1749 = vunpack.c.h.b16 %v376
    %v1750 = vunpack.c.l.b16 %v377
    %v1751 = vunpack.c.h.b16 %v377
    %v1752 = vunpack.c.l.b16 %v378
    %v1753 = vunpack.c.h.b16 %v378
    %v1754 = vunpack.c.l.b16 %v379
    %v1755 = vunpack.c.h.b16 %v379
    %v1756 = vunpack.c.l.b16 %v380
    %v1757 = vunpack.c.h.b16 %v380
    %v1758 = vunpack.c.l.b16 %v381
    %v1759 = vunpack.c.h.b16 %v381
    %v1760 = vunpack.c.l.b16 %v382
    %v1761 = vunpack.c.h.b16 %v382
    %v1762 = vunpack.c.l.b16 %v383
    %v1763 = vunpack.c.h.b16 %v383
    %v1764 = vunpack.c.l.b16 %v384
    %v1765 = vunpack.c.h.b16 %v384
    %v1766 = vunpack.c.l.b16 %v385
    %v1767 = vunpack.c.h.b16 %v385
    %v1768 = vunpack.c.l.b16 %v386
    %v1769 = vunpack.c.h.b16 %v386
    %v1770 = vunpack.c.l.b16 %v387
    %v1771 = vunpack.c.h.b16 %v387
    %v1772 = vunpack.c.l.b16 %v388
    %v1773 = vunpack.c.h.b16 %v388
    %v1774 = vunpack.c.l.b16 %v389
    %v1775 = vunpack.c.h.b16 %v389
    %v1776 = vunpack.c.l.b16 %v390
    %v1777 = vunpack.c.h.b16 %v390
    %v1778 = vunpack.c.l.b16 %v391
    %v1779 = vunpack.c.h.b16 %v391
    %v1780 = vunpack.c.l.b16 %v392
    %v1781 = vunpack.c.h.b16 %v392
    %v1782 = vunpack.c.l.b16 %v393
    %v1783 = vunpack.c.h.b16 %v393
    %v1784 = vunpack.c.l.b16 %v394
    %v1785 = vunpack.c.h.b16 %v394
    %v1786 = vunpack.c.l.b16 %v395
    %v1787 = vunpack.c.h.b16 %v395
    %v1788 = vunpack.c.l.b16 %v396
    %v1789 = vunpack.c.h.b16 %v396
    %v1790 = vunpack.c.l.b16 %v397
    %v1791 = vunpack.c.h.b16 %v397
    %v1792 = vunpack.c.l.b16 %v398
    %v1793 = vunpack.c.h.b16 %v398
    %v1794 = vunpack.c.l.b16 %v399
    %v1795 = vunpack.c.h.b16 %v399
    %v1796 = vunpack.c.l.b16 %v400
    %v1797 = vunpack.c.h.b16 %v400
    %v1798 = vunpack.c.l.b16 %v401
    %v1799 = vunpack.c.h.b16 %v401
    %v1800 = vunpack.c.l.b16 %v402
    %v1801 = vunpack.c.h.b16 %v402
    %v1802 = vunpack.c.l.b16 %v403
    %v1803 = vunpack.c.h.b16 %v403
    %v1804 = vunpack.c.l.b16 %v404
    %v1805 = vunpack.c.h.b16 %v404
    %v1806 = vunpack.c.l.b16 %v405
    %v1807 = vunpack.c.h.b16 %v405
    %v1808 = vunpack.c.l.b16 %v406
    %v1809 = vunpack.c.h.b16 %v406
    %v1810 = vunpack.c.l.b16 %v407
    %v1811 = vunpack.c.h.b16 %v407
    %v1812 = vunpack.c.l.b16 %v408
    %v1813 = vunpack.c.h.b16 %v408
    %v1814 = vunpack.c.l.b16 %v409
    %v1815 = vunpack.c.h.b16 %v409
    %v1816 = vunpack.c.l.b16 %v410
    %v1817 = vunpack.c.h.b16 %v410
    %v1818 = vunpack.c.l.b16 %v411
    %v1819 = vunpack.c.h.b16 %v411
    %v1820 = vunpack.c.l.b16 %v412
    %v1821 = vunpack.c.h.b16 %v412
    %v1822 = vunpack.c.l.b16 %v413
    %v1823 = vunpack.c.h.b16 %v413
    %v1824 = vunpack.c.l.b16 %v414
    %v1825 = vunpack.c.h.b16 %v414
    %v1826 = vunpack.c.l.b16 %v415
    %v1827 = vunpack.c.h.b16 %v415
    %v1828 = vunpack.c.l.b16 %v416
    %v1829 = vunpack.c.h.b16 %v416
    %v1830 = vunpack.c.l.b16 %v417
    %v1831 = vunpack.c.h.b16 %v417
    %v1832 = vunpack.c.l.b16 %v418
    %v1833 = vunpack.c.h.b16 %v418
    %v1834 = vunpack.c.l.b16 %v419
    %v1835 = vunpack.c.h.b16 %v419
    %v1836 = vunpack.c.l.b16 %v420
    %v1837 = vunpack.c.h.b16 %v420
    %v1838 = vunpack.c.l.b16 %v421
    %v1839 = vunpack.c.h.b16 %v421
    %v1840 = vunpack.c.l.b16 %v422
    %v1841 = vunpack.c.h.b16 %v422
    %v1842 = vunpack.c.l.b16 %v423
    %v1843 = vunpack.c.h.b16 %v423
    %v1844 = vunpack.c.l.b16 %v424
    %v1845 = vunpack.c.h.b16 %v424
    %v1846 = vunpack.c.l.b16 %v425
    %v1847 = vunpack.c.h.b16 %v425
    %v1848 = vunpack.c.l.b16 %v426
    %v1849 = vunpack.c.h.b16 %v426
    %v1850 = vunpack.c.l.b16 %v427
    %v1851 = vunpack.c.h.b16 %v427
    %v1852 = vunpack.c.l.b16 %v428
    %v1853 = vunpack.c.h.b16 %v428
    %v1854 = vunpack.c.l.b16 %v429
    %v1855 = vunpack.c.h.b16 %v429
    %v1856 = vunpack.c.l.b16 %v430
    %v1857 = vunpack.c.h.b16 %v430
    %v1858 = vunpack.c.l.b16 %v431
    %v1859 = vunpack.c.h.b16 %v431
    %v1860 = vunpack.c.l.b16 %v432
    %v1861 = vunpack.c.h.b16 %v432
    %v1862 = vunpack.c.l.b16 %v433
    %v1863 = vunpack.c.h.b16 %v433
    %v1864 = vunpack.c.l.b16 %v434
    %v1865 = vunpack.c.h.b16 %v434
    %v1866 = vunpack.c.l.b16 %v435
    %v1867 = vunpack.c.h.b16 %v435
    %v1868 = vunpack.c.l.b16 %v436
    %v1869 = vunpack.c.h.b16 %v436
    %v1870 = vunpack.c.l.b16 %v437
    %v1871 = vunpack.c.h.b16 %v437
    %v1872 = vunpack.c.l.b16 %v438
    %v1873 = vunpack.c.h.b16 %v438
    %v1874 = vunpack.c.l.b16 %v439
    %v1875 = vunpack.c.h.b16 %v439
    %v1876 = vunpack.c.l.b16 %v440
    %v1877 = vunpack.c.h.b16 %v440
    %v1878 = vunpack.c.l.b16 %v441
    %v1879 = vunpack.c.h.b16 %v441
    %v1880 = vunpack.c.l.b16 %v442
    %v1881 = vunpack.c.h.b16 %v442
    %v1882 = vunpack.c.l.b16 %v443
    %v1883 = vunpack.c.h.b16 %v443
    %v1884 = vunpack.c.l.b16 %v444
    %v1885 = vunpack.c.h.b16 %v444
    %v1886 = vunpack.c.l.b16 %v445
    %v1887 = vunpack.c.h.b16 %v445
    %v1888 = vunpack.c.l.b16 %v446
    %v1889 = vunpack.c.h.b16 %v446
    %v1890 = vunpack.c.l.b16 %v447
    %v1891 = vunpack.c.h.b16 %v447
    %v1892 = vunpack.c.l.b16 %v448
    %v1893 = vunpack.c.h.b16 %v448
    %v1894 = vunpack.c.l.b16 %v449
    %v1895 = vunpack.c.h.b16 %v449
    %v1896 = vunpack.c.l.b16 %v450
    %v1897 = vunpack.c.h.b16 %v450
    %v1898 = vunpack.c.l.b16 %v451
    %v1899 = vunpack.c.h.b16 %v451
    %v1900 = vunpack.c.l.b16 %v452
    %v1901 = vunpack.c.h.b16 %v452
    %v1902 = vunpack.c.l.b16 %v453
    %v1903 = vunpack.c.h.b16 %v453
    %v1904 = vunpack.c.l.b16 %v454
    %v1905 = vunpack.c.h.b16 %v454
    %v1906 = vunpack.c.l.b16 %v455
    %v1907 = vunpack.c.h.b16 %v455
    %v1908 = vunpack.c.l.b16 %v456
    %v1909 = vunpack.c.h.b16 %v456
    %v1910 = vunpack.c.l.b16 %v457
    %v1911 = vunpack.c.h.b16 %v457
    %v1912 = vunpack.c.l.b16 %v458
    %v1913 = vunpack.c.h.b16 %v458
    %v1914 = vunpack.c.l.b16 %v459
    %v1915 = vunpack.c.h.b16 %v459
    %v1916 = vunpack.c.l.b16 %v460
    %v1917 = vunpack.c.h.b16 %v460
    %v1918 = vunpack.c.l.b16 %v461
    %v1919 = vunpack.c.h.b16 %v461
    %v1920 = vunpack.c.l.b16 %v462
    %v1921 = vunpack.c.h.b16 %v462
    %v1922 = vunpack.c.l.b16 %v463
    %v1923 = vunpack.c.h.b16 %v463
    %v1924 = vunpack.c.l.b16 %v464
    %v1925 = vunpack.c.h.b16 %v464
    %v1926 = vunpack.c.l.b16 %v465
    %v1927 = vunpack.c.h.b16 %v465
    %v1928 = vunpack.c.l.b16 %v466
    %v1929 = vunpack.c.h.b16 %v466
    %v1930 = vunpack.c.l.b16 %v467
    %v1931 = vunpack.c.h.b16 %v467
    %v1932 = vunpack.c.l.b16 %v468
    %v1933 = vunpack.c.h.b16 %v468
    %v1934 = vunpack.c.l.b16 %v469
    %v1935 = vunpack.c.h.b16 %v469
    %v1936 = vunpack.c.l.b16 %v470
    %v1937 = vunpack.c.h.b16 %v470
    %v1938 = vunpack.c.l.b16 %v471
    %v1939 = vunpack.c.h.b16 %v471
    %v1940 = vunpack.c.l.b16 %v472
    %v1941 = vunpack.c.h.b16 %v472
    %v1942 = vunpack.c.l.b16 %v473
    %v1943 = vunpack.c.h.b16 %v473
    %v1944 = vunpack.c.l.b16 %v474
    %v1945 = vunpack.c.h.b16 %v474
    %v1946 = vunpack.c.l.b16 %v475
    %v1947 = vunpack.c.h.b16 %v475
    %v1948 = vunpack.c.l.b16 %v476
    %v1949 = vunpack.c.h.b16 %v476
    %v1950 = vunpack.c.l.b16 %v477
    %v1951 = vunpack.c.h.b16 %v477
    %v1952 = vunpack.c.l.b16 %v478
    %v1953 = vunpack.c.h.b16 %v478
    %v1954 = vunpack.c.l.b16 %v479
    %v1955 = vunpack.c.h.b16 %v479
    %v1956 = vunpack.c.l.b16 %v480
    %v1957 = vunpack.c.h.b16 %v480
    %v1958 = vunpack.c.l.b16 %v481
    %v1959 = vunpack.c.h.b16 %v481
    %v1960 = vunpack.c.l.b16 %v482
    %v1961 = vunpack.c.h.b16 %v482
    %v1962 = vunpack.c.l.b16 %v483
    %v1963 = vunpack.c.h.b16 %v483
    %v1964 = vunpack.c.l.b16 %v484
    %v1965 = vunpack.c.h.b16 %v484
    %v1966 = vunpack.c.l.b16 %v485
    %v1967 = vunpack.c.h.b16 %v485
    %v1968 = vunpack.c.l.b16 %v486
    %v1969 = vunpack.c.h.b16 %v486
    %v1970 = vunpack.c.l.b16 %v487
    %v1971 = vunpack.c.h.b16 %v487
    %v1972 = vunpack.c.l.b16 %v488
    %v1973 = vunpack.c.h.b16 %v488
    %v1974 = vunpack.c.l.b16 %v489
    %v1975 = vunpack.c.h.b16 %v489
    %v1976 = vunpack.c.l.b16 %v490
    %v1977 = vunpack.c.h.b16 %v490
    %v1978 = vunpack.c.l.b16 %v491
    %v1979 = vunpack.c.h.b16 %v491
    %v1980 = vunpack.c.l.b16 %v492
    %v1981 = vunpack.c.h.b16 %v492
    %v1982 = vunpack.c.l.b16 %v493
    %v1983 = vunpack.c.h.b16 %v493
    %v1984 = vunpack.c.l.b16 %v494
    %v1985 = vunpack.c.h.b16 %v494
    %v1986 = vunpack.c.l.b16 %v495
    %v1987 = vunpack.c.h.b16 %v495
    %v1988 = vunpack.c.l.b16 %v496
    %v1989 = vunpack.c.h.b16 %v496
    %v1990 = vunpack.c.l.b16 %v497
    %v1991 = vunpack.c.h.b16 %v497
    %v1992 = vunpack.c.l.b16 %v498
    %v1993 = vunpack.c.h.b16 %v498
    %v1994 = vunpack.c.l.b16 %v499
    %v1995 = vunpack.c.h.b16 %v499
    %v1996 = vunpack.c.l.b16 %v500
    %v1997 = vunpack.c.h.b16 %v500
    %v1998 = vunpack.c.l.b16 %v501
    %v1999 = vunpack.c.h.b16 %v501
    %v2000 = vunpack.c.l.b16 %v502
    %v2001 = vunpack.c.h.b16 %v502
    %v2002 = vunpack.c.l.b16 %v503
    %v2003 = vunpack.c.h.b16 %v503
    %v2004 = vunpack.c.l.b16 %v504
    %v2005 = vunpack.c.h.b16 %v504
    %v2006 = vunpack.c.l.b16 %v505
    %v2007 = vunpack.c.h.b16 %v505
    %v2008 = vunpack.c.l.b16 %v506
    %v2009 = vunpack.c.h.b16 %v506
    %v2010 = vunpack.c.l.b16 %v507
    %v2011 = vunpack.c.h.b16 %v507
    %v2012 = vunpack.c.l.b16 %v508
    %v2013 = vunpack.c.h.b16 %v508
    %v2014 = vunpack.c.l.b16 %v509
    %v2015 = vunpack.c.h.b16 %v509
    %v2016 = vunpack.c.l.b16 %v510
    %v2017 = vunpack.c.h.b16 %v510
    %v2018 = vunpack.c.l.b16 %v511
    %v2019 = vunpack.c.h.b16 %v511
    %v2020 = vunpack.c.l.b16 %v512
    %v2021 = vunpack.c.h.b16 %v512
    %v2022 = vunpack.c.l.b16 %v513
    %v2023 = vunpack.c.h.b16 %v513
    %v2024 = vunpack.c.l.b16 %v514
    %v2025 = vunpack.c.h.b16 %v514
    %v2026 = vunpack.c.l.b16 %v515
    %v2027 = vunpack.c.h.b16 %v515
    %v2028 = vunpack.c.l.b16 %v516
    %v2029 = vunpack.c.h.b16 %v516
    %v2030 = vunpack.c.l.b16 %v517
    %v2031 = vunpack.c.h.b16 %v517
    %v2032 = vunpack.c.l.b16 %v518
    %v2033 = vunpack.c.h.b16 %v518
    %v2034 = vunpack.c.l.b16 %v519
    %v2035 = vunpack.c.h.b16 %v519
    %v2036 = vunpack.c.l.b16 %v520
    %v2037 = vunpack.c.h.b16 %v520
    %v2038 = vunpack.c.l.b16 %v521
    %v2039 = vunpack.c.h.b16 %v521
    %v2040 = vunpack.c.l.b16 %v522
    %v2041 = vunpack.c.h.b16 %v522
    %v2042 = vunpack.c.l.b16 %v523
    %v2043 = vunpack.c.h.b16 %v523
    %v2044 = vunpack.c.l.b16 %v524
    %v2045 = vunpack.c.h.b16 %v524
    %v2046 = vunpack.c.l.b16 %v525
    %v2047 = vunpack.c.h.b16 %v525
    %v2048 = vunpack.c.l.b16 %v526
    %v2049 = vunpack.c.h.b16 %v526
    %v2050 = vunpack.c.l.b16 %v527
    %v2051 = vunpack.c.h.b16 %v527
    %v2052 = vunpack.c.l.b16 %v528
    %v2053 = vunpack.c.h.b16 %v528
    %v2054 = vunpack.c.l.b16 %v529
    %v2055 = vunpack.c.h.b16 %v529
    %v2056 = vunpack.c.l.b16 %v530
    %v2057 = vunpack.c.h.b16 %v530
    %v2058 = vunpack.c.l.b16 %v531
    %v2059 = vunpack.c.h.b16 %v531
    %v2060 = vunpack.c.l.b16 %v532
    %v2061 = vunpack.c.h.b16 %v532
    %v2062 = vunpack.c.l.b16 %v533
    %v2063 = vunpack.c.h.b16 %v533
    %v2064 = vunpack.c.l.b16 %v534
    %v2065 = vunpack.c.h.b16 %v534
    %v2066 = vunpack.c.l.b16 %v535
    %v2067 = vunpack.c.h.b16 %v535
    %v2068 = vunpack.c.l.b16 %v536
    %v2069 = vunpack.c.h.b16 %v536
    %v2070 = vunpack.c.l.b16 %v537
    %v2071 = vunpack.c.h.b16 %v537
    %v2072 = vunpack.c.l.b16 %v538
    %v2073 = vunpack.c.h.b16 %v538
    %v2074 = vunpack.c.l.b16 %v539
    %v2075 = vunpack.c.h.b16 %v539
    %v2076 = vunpack.c.l.b16 %v540
    %v2077 = vunpack.c.h.b16 %v540
    %v2078 = vunpack.c.l.b16 %v541
    %v2079 = vunpack.c.h.b16 %v541
    %v2080 = vunpack.c.l.b16 %v542
    %v2081 = vunpack.c.h.b16 %v542
    %v2082 = vunpack.c.l.b16 %v543
    %v2083 = vunpack.c.h.b16 %v543
    %v2084 = vunpack.c.l.b16 %v544
    %v2085 = vunpack.c.h.b16 %v544
    %v2086 = vunpack.c.l.b16 %v545
    %v2087 = vunpack.c.h.b16 %v545
    %v2088 = vunpack.c.l.b16 %v546
    %v2089 = vunpack.c.h.b16 %v546
    %v2090 = vunpack.c.l.b16 %v547
    %v2091 = vunpack.c.h.b16 %v547
    %v2092 = vunpack.c.l.b16 %v548
    %v2093 = vunpack.c.h.b16 %v548
    %v2094 = vunpack.c.l.b16 %v549
    %v2095 = vunpack.c.h.b16 %v549
    %v2096 = vunpack.c.l.b16 %v550
    %v2097 = vunpack.c.h.b16 %v550
    %v2098 = vunpack.c.l.b16 %v551
    %v2099 = vunpack.c.h.b16 %v551
    %v2100 = vunpack.c.l.b16 %v552
    %v2101 = vunpack.c.h.b16 %v552
    %v2102 = vunpack.c.l.b16 %v553
    %v2103 = vunpack.c.h.b16 %v553
    %v2104 = vunpack.c.l.b16 %v554
    %v2105 = vunpack.c.h.b16 %v554
    %v2106 = vunpack.c.l.b16 %v555
    %v2107 = vunpack.c.h.b16 %v555
    %v2108 = vunpack.c.l.b16 %v556
    %v2109 = vunpack.c.h.b16 %v556
    %v2110 = vunpack.c.l.b16 %v557
    %v2111 = vunpack.c.h.b16 %v557
    %v2112 = vunpack.c.l.b16 %v558
    %v2113 = vunpack.c.h.b16 %v558
    %v2114 = vunpack.c.l.b16 %v559
    %v2115 = vunpack.c.h.b16 %v559
    %v2116 = vunpack.c.l.b16 %v560
    %v2117 = vunpack.c.h.b16 %v560
    %v2118 = vunpack.c.l.b16 %v561
    %v2119 = vunpack.c.h.b16 %v561
    %v2120 = vunpack.c.l.b16 %v562
    %v2121 = vunpack.c.h.b16 %v562
    %v2122 = vunpack.c.l.b16 %v563
    %v2123 = vunpack.c.h.b16 %v563
    %v2124 = vunpack.c.l.b16 %v564
    %v2125 = vunpack.c.h.b16 %v564
    %v2126 = vunpack.c.l.b16 %v565
    %v2127 = vunpack.c.h.b16 %v565
    %v2128 = vunpack.c.l.b16 %v566
    %v2129 = vunpack.c.h.b16 %v566
    %v2130 = vunpack.c.l.b16 %v567
    %v2131 = vunpack.c.h.b16 %v567
    %v2132 = vunpack.c.l.b16 %v568
    %v2133 = vunpack.c.h.b16 %v568
    %v2134 = vunpack.c.l.b16 %v569
    %v2135 = vunpack.c.h.b16 %v569
    %v2136 = vunpack.c.l.b16 %v570
    %v2137 = vunpack.c.h.b16 %v570
    %v2138 = vunpack.c.l.b16 %v571
    %v2139 = vunpack.c.h.b16 %v571
    %v2140 = vunpack.c.l.b16 %v572
    %v2141 = vunpack.c.h.b16 %v572
    %v2142 = vunpack.c.l.b16 %v573
    %v2143 = vunpack.c.h.b16 %v573
    %v2144 = vunpack.c.l.b16 %v574
    %v2145 = vunpack.c.h.b16 %v574
    %v2146 = vunpack.c.l.b16 %v575
    %v2147 = vunpack.c.h.b16 %v575
    %v2148 = vunpack.c.l.b16 %v576
    %v2149 = vunpack.c.h.b16 %v576
    %v2150 = vunpack.c.l.b16 %v577
    %v2151 = vunpack.c.h.b16 %v577
    %v2152 = vunpack.c.l.b16 %v578
    %v2153 = vunpack.c.h.b16 %v578
    %v2154 = vunpack.c.l.b16 %v579
    %v2155 = vunpack.c.h.b16 %v579
    %v2156 = vpack.c.b16 %v1148, %v1132
    %v2157 = vpack.c.b16 %v1149, %v1133
    %v2158 = vpack.c.b16 %v1150, %v1134
    %v2159 = vpack.c.b16 %v1151, %v1135
    %v2160 = vpack.c.b16 %v1152, %v1136
    %v2161 = vpack.c.b16 %v1153, %v1137
    %v2162 = vpack.c.b16 %v1154, %v1138
    %v2163 = vpack.c.b16 %v1155, %v1139
    %v2164 = vpack.c.b16 %v1156, %v1140
    %v2165 = vpack.c.b16 %v1157, %v1141
    %v2166 = vpack.c.b16 %v1158, %v1142
    %v2167 = vpack.c.b16 %v1159, %v1143
    %v2168 = vpack.c.b16 %v1160, %v1144
    %v2169 = vpack.c.b16 %v1161, %v1145
    %v2170 = vpack.c.b16 %v1162, %v1146
    %v2171 = vpack.c.b16 %v1163, %v1147
    %v2172 = vpack.c.b16 %v1180, %v1164
    %v2173 = vpack.c.b16 %v1181, %v1165
    %v2174 = vpack.c.b16 %v1182, %v1166
    %v2175 = vpack.c.b16 %v1183, %v1167
    %v2176 = vpack.c.b16 %v1184, %v1168
    %v2177 = vpack.c.b16 %v1185, %v1169
    %v2178 = vpack.c.b16 %v1186, %v1170
    %v2179 = vpack.c.b16 %v1187, %v1171
    %v2180 = vpack.c.b16 %v1188, %v1172
    %v2181 = vpack.c.b16 %v1189, %v1173
    %v2182 = vpack.c.b16 %v1190, %v1174
    %v2183 = vpack.c.b16 %v1191, %v1175
    %v2184 = vpack.c.b16 %v1192, %v1176
    %v2185 = vpack.c.b16 %v1193, %v1177
    %v2186 = vpack.c.b16 %v1194, %v1178
    %v2187 = vpack.c.b16 %v1195, %v1179
    %v2188 = vpack.c.b16 %v1212, %v1196
    %v2189 = vpack.c.b16 %v1213, %v1197
    %v2190 = vpack.c.b16 %v1214, %v1198
    %v2191 = vpack.c.b16 %v1215, %v1199
    %v2192 = vpack.c.b16 %v1216, %v1200
    %v2193 = vpack.c.b16 %v1217, %v1201
    %v2194 = vpack.c.b16 %v1218, %v1202
    %v2195 = vpack.c.b16 %v1219, %v1203
    %v2196 = vpack.c.b16 %v1220, %v1204
    %v2197 = vpack.c.b16 %v1221, %v1205
    %v2198 = vpack.c.b16 %v1222, %v1206
    %v2199 = vpack.c.b16 %v1223, %v1207
    %v2200 = vpack.c.b16 %v1224, %v1208
    %v2201 = vpack.c.b16 %v1225, %v1209
    %v2202 = vpack.c.b16 %v1226, %v1210
    %v2203 = vpack.c.b16 %v1227, %v1211
    %v2204 = vpack.c.b16 %v1244, %v1228
    %v2205 = vpack.c.b16 %v1245, %v1229
    %v2206 = vpack.c.b16 %v1246, %v1230
    %v2207 = vpack.c.b16 %v1247, %v1231
    %v2208 = vpack.c.b16 %v1248, %v1232
    %v2209 = vpack.c.b16 %v1249, %v1233
    %v2210 = vpack.c.b16 %v1250, %v1234
    %v2211 = vpack.c.b16 %v1251, %v1235
    %v2212 = vpack.c.b16 %v1252, %v1236
    %v2213 = vpack.c.b16 %v1253, %v1237
    %v2214 = vpack.c.b16 %v1254, %v1238
    %v2215 = vpack.c.b16 %v1255, %v1239
    %v2216 = vpack.c.b16 %v1256, %v1240
    %v2217 = vpack.c.b16 %v1257, %v1241
    %v2218 = vpack.c.b16 %v1258, %v1242
    %v2219 = vpack.c.b16 %v1259, %v1243
    %v2220 = vpack.c.b16 %v1276, %v1260
    %v2221 = vpack.c.b16 %v1277, %v1261
    %v2222 = vpack.c.b16 %v1278, %v1262
    %v2223 = vpack.c.b16 %v1279, %v1263
    %v2224 = vpack.c.b16 %v1280, %v1264
    %v2225 = vpack.c.b16 %v1281, %v1265
    %v2226 = vpack.c.b16 %v1282, %v1266
    %v2227 = vpack.c.b16 %v1283, %v1267
    %v2228 = vpack.c.b16 %v1284, %v1268
    %v2229 = vpack.c.b16 %v1285, %v1269
    %v2230 = vpack.c.b16 %v1286, %v1270
    %v2231 = vpack.c.b16 %v1287, %v1271
    %v2232 = vpack.c.b16 %v1288, %v1272
    %v2233 = vpack.c.b16 %v1289, %v1273
    %v2234 = vpack.c.b16 %v1290, %v1274
    %v2235 = vpack.c.b16 %v1291, %v1275
    %v2236 = vpack.c.b16 %v1308, %v1292
    %v2237 = vpack.c.b16 %v1309, %v1293
    %v2238 = vpack.c.b16 %v1310, %v1294
    %v2239 = vpack.c.b16 %v1311, %v1295
    %v2240 = vpack.c.b16 %v1312, %v1296
    %v2241 = vpack.c.b16 %v1313, %v1297
    %v2242 = vpack.c.b16 %v1314, %v1298
    %v2243 = vpack.c.b16 %v1315, %v1299
    %v2244 = vpack.c.b16 %v1316, %v1300
    %v2245 = vpack.c.b16 %v1317, %v1301
    %v2246 = vpack.c.b16 %v1318, %v1302
    %v2247 = vpack.c.b16 %v1319, %v1303
    %v2248 = vpack.c.b16 %v1320, %v1304
    %v2249 = vpack.c.b16 %v1321, %v1305
    %v2250 = vpack.c.b16 %v1322, %v1306
    %v2251 = vpack.c.b16 %v1323, %v1307
    %v2252 = vpack.c.b16 %v1340, %v1324
    %v2253 = vpack.c.b16 %v1341, %v1325
    %v2254 = vpack.c.b16 %v1342, %v1326
    %v2255 = vpack.c.b16 %v1343, %v1327
    %v2256 = vpack.c.b16 %v1344, %v1328
    %v2257 = vpack.c.b16 %v1345, %v1329
    %v2258 = vpack.c.b16 %v1346, %v1330
    %v2259 = vpack.c.b16 %v1347, %v1331
    %v2260 = vpack.c.b16 %v1348, %v1332
    %v2261 = vpack.c.b16 %v1349, %v1333
    %v2262 = vpack.c.b16 %v1350, %v1334
    %v2263 = vpack.c.b16 %v1351, %v1335
    %v2264 = vpack.c.b16 %v1352, %v1336
    %v2265 = vpack.c.b16 %v1353, %v1337
    %v2266 = vpack.c.b16 %v1354, %v1338
    %v2267 = vpack.c.b16 %v1355, %v1339
    %v2268 = vpack.c.b16 %v1372, %v1356
    %v2269 = vpack.c.b16 %v1373, %v1357
    %v2270 = vpack.c.b16 %v1374, %v1358
    %v2271 = vpack.c.b16 %v1375, %v1359
    %v2272 = vpack.c.b16 %v1376, %v1360
    %v2273 = vpack.c.b16 %v1377, %v1361
    %v2274 = vpack.c.b16 %v1378, %v1362
    %v2275 = vpack.c.b16 %v1379, %v1363
    %v2276 = vpack.c.b16 %v1380, %v1364
    %v2277 = vpack.c.b16 %v1381, %v1365
    %v2278 = vpack.c.b16 %v1382, %v1366
    %v2279 = vpack.c.b16 %v1383, %v1367
    %v2280 = vpack.c.b16 %v1384, %v1368
    %v2281 = vpack.c.b16 %v1385, %v1369
    %v2282 = vpack.c.b16 %v1386, %v1370
    %v2283 = vpack.c.b16 %v1387, %v1371
    %v2284 = vpack.c.b16 %v1404, %v1388
    %v2285 = vpack.c.b16 %v1405, %v1389
    %v2286 = vpack.c.b16 %v1406, %v1390
    %v2287 = vpack.c.b16 %v1407, %v1391
    %v2288 = vpack.c.b16 %v1408, %v1392
    %v2289 = vpack.c.b16 %v1409, %v1393
    %v2290 = vpack.c.b16 %v1410, %v1394
    %v2291 = vpack.c.b16 %v1411, %v1395
    %v2292 = vpack.c.b16 %v1412, %v1396
    %v2293 = vpack.c.b16 %v1413, %v1397
    %v2294 = vpack.c.b16 %v1414, %v1398
    %v2295 = vpack.c.b16 %v1415, %v1399
    %v2296 = vpack.c.b16 %v1416, %v1400
    %v2297 = vpack.c.b16 %v1417, %v1401
    %v2298 = vpack.c.b16 %v1418, %v1402
    %v2299 = vpack.c.b16 %v1419, %v1403
    %v2300 = vpack.c.b16 %v1436, %v1420
    %v2301 = vpack.c.b16 %v1437, %v1421
    %v2302 = vpack.c.b16 %v1438, %v1422
    %v2303 = vpack.c.b16 %v1439, %v1423
    %v2304 = vpack.c.b16 %v1440, %v1424
    %v2305 = vpack.c.b16 %v1441, %v1425
    %v2306 = vpack.c.b16 %v1442, %v1426
    %v2307 = vpack.c.b16 %v1443, %v1427
    %v2308 = vpack.c.b16 %v1444, %v1428
    %v2309 = vpack.c.b16 %v1445, %v1429
    %v2310 = vpack.c.b16 %v1446, %v1430
    %v2311 = vpack.c.b16 %v1447, %v1431
    %v2312 = vpack.c.b16 %v1448, %v1432
    %v2313 = vpack.c.b16 %v1449, %v1433
    %v2314 = vpack.c.b16 %v1450, %v1434
    %v2315 = vpack.c.b16 %v1451, %v1435
    %v2316 = vpack.c.b16 %v1468, %v1452
    %v2317 = vpack.c.b16 %v1469, %v1453
    %v2318 = vpack.c.b16 %v1470, %v1454
    %v2319 = vpack.c.b16 %v1471, %v1455
    %v2320 = vpack.c.b16 %v1472, %v1456
    %v2321 = vpack.c.b16 %v1473, %v1457
    %v2322 = vpack.c.b16 %v1474, %v1458
    %v2323 = vpack.c.b16 %v1475, %v1459
    %v2324 = vpack.c.b16 %v1476, %v1460
    %v2325 = vpack.c.b16 %v1477, %v1461
    %v2326 = vpack.c.b16 %v1478, %v1462
    %v2327 = vpack.c.b16 %v1479, %v1463
    %v2328 = vpack.c.b16 %v1480, %v1464
    %v2329 = vpack.c.b16 %v1481, %v1465
    %v2330 = vpack.c.b16 %v1482, %v1466
    %v2331 = vpack.c.b16 %v1483, %v1467
    %v2332 = vpack.c.b16 %v1500, %v1484
    %v2333 = vpack.c.b16 %v1501, %v1485
    %v2334 = vpack.c.b16 %v1502, %v1486
    %v2335 = vpack.c.b16 %v1503, %v1487
    %v2336 = vpack.c.b16 %v1504, %v1488
    %v2337 = vpack.c.b16 %v1505, %v1489
    %v2338 = vpack.c.b16 %v1506, %v1490
    %v2339 = vpack.c.b16 %v1507, %v1491
    %v2340 = vpack.c.b16 %v1508, %v1492
    %v2341 = vpack.c.b16 %v1509, %v1493
    %v2342 = vpack.c.b16 %v1510, %v1494
    %v2343 = vpack.c.b16 %v1511, %v1495
    %v2344 = vpack.c.b16 %v1512, %v1496
    %v2345 = vpack.c.b16 %v1513, %v1497
    %v2346 = vpack.c.b16 %v1514, %v1498
    %v2347 = vpack.c.b16 %v1515, %v1499
    %v2348 = vpack.c.b16 %v1532, %v1516
    %v2349 = vpack.c.b16 %v1533, %v1517
    %v2350 = vpack.c.b16 %v1534, %v1518
    %v2351 = vpack.c.b16 %v1535, %v1519
    %v2352 = vpack.c.b16 %v1536, %v1520
    %v2353 = vpack.c.b16 %v1537, %v1521
    %v2354 = vpack.c.b16 %v1538, %v1522
    %v2355 = vpack.c.b16 %v1539, %v1523
    %v2356 = vpack.c.b16 %v1540, %v1524
    %v2357 = vpack.c.b16 %v1541, %v1525
    %v2358 = vpack.c.b16 %v1542, %v1526
    %v2359 = vpack.c.b16 %v1543, %v1527
    %v2360 = vpack.c.b16 %v1544, %v1528
    %v2361 = vpack.c.b16 %v1545, %v1529
    %v2362 = vpack.c.b16 %v1546, %v1530
    %v2363 = vpack.c.b16 %v1547, %v1531
    %v2364 = vpack.c.b16 %v1564, %v1548
    %v2365 = vpack.c.b16 %v1565, %v1549
    %v2366 = vpack.c.b16 %v1566, %v1550
    %v2367 = vpack.c.b16 %v1567, %v1551
    %v2368 = vpack.c.b16 %v1568, %v1552
    %v2369 = vpack.c.b16 %v1569, %v1553
    %v2370 = vpack.c.b16 %v1570, %v1554
    %v2371 = vpack.c.b16 %v1571, %v1555
    %v2372 = vpack.c.b16 %v1572, %v1556
    %v2373 = vpack.c.b16 %v1573, %v1557
    %v2374 = vpack.c.b16 %v1574, %v1558
    %v2375 = vpack.c.b16 %v1575, %v1559
    %v2376 = vpack.c.b16 %v1576, %v1560
    %v2377 = vpack.c.b16 %v1577, %v1561
    %v2378 = vpack.c.b16 %v1578, %v1562
    %v2379 = vpack.c.b16 %v1579, %v1563
    %v2380 = vpack.c.b16 %v1596, %v1580
    %v2381 = vpack.c.b16 %v1597, %v1581
    %v2382 = vpack.c.b16 %v1598, %v1582
    %v2383 = vpack.c.b16 %v1599, %v1583
    %v2384 = vpack.c.b16 %v1600, %v1584
    %v2385 = vpack.c.b16 %v1601, %v1585
    %v2386 = vpack.c.b16 %v1602, %v1586
    %v2387 = vpack.c.b16 %v1603, %v1587
    %v2388 = vpack.c.b16 %v1604, %v1588
    %v2389 = vpack.c.b16 %v1605, %v1589
    %v2390 = vpack.c.b16 %v1606, %v1590
    %v2391 = vpack.c.b16 %v1607, %v1591
    %v2392 = vpack.c.b16 %v1608, %v1592
    %v2393 = vpack.c.b16 %v1609, %v1593
    %v2394 = vpack.c.b16 %v1610, %v1594
    %v2395 = vpack.c.b16 %v1611, %v1595
    %v2396 = vpack.c.b16 %v1628, %v1612
    %v2397 = vpack.c.b16 %v1629, %v1613
    %v2398 = vpack.c.b16 %v1630, %v1614
    %v2399 = vpack.c.b16 %v1631, %v1615
    %v2400 = vpack.c.b16 %v1632, %v1616
    %v2401 = vpack.c.b16 %v1633, %v1617
    %v2402 = vpack.c.b16 %v1634, %v1618
    %v2403 = vpack.c.b16 %v1635, %v1619
    %v2404 = vpack.c.b16 %v1636, %v1620
    %v2405 = vpack.c.b16 %v1637, %v1621
    %v2406 = vpack.c.b16 %v1638, %v1622
    %v2407 = vpack.c.b16 %v1639, %v1623
    %v2408 = vpack.c.b16 %v1640, %v1624
    %v2409 = vpack.c.b16 %v1641, %v1625
    %v2410 = vpack.c.b16 %v1642, %v1626
    %v2411 = vpack.c.b16 %v1643, %v1627
    %v2412 = vpack.c.b16 %v1660, %v1644
    %v2413 = vpack.c.b16 %v1661, %v1645
    %v2414 = vpack.c.b16 %v1662, %v1646
    %v2415 = vpack.c.b16 %v1663, %v1647
    %v2416 = vpack.c.b16 %v1664, %v1648
    %v2417 = vpack.c.b16 %v1665, %v1649
    %v2418 = vpack.c.b16 %v1666, %v1650
    %v2419 = vpack.c.b16 %v1667, %v1651
    %v2420 = vpack.c.b16 %v1668, %v1652
    %v2421 = vpack.c.b16 %v1669, %v1653
    %v2422 = vpack.c.b16 %v1670, %v1654
    %v2423 = vpack.c.b16 %v1671, %v1655
    %v2424 = vpack.c.b16 %v1672, %v1656
    %v2425 = vpack.c.b16 %v1673, %v1657
    %v2426 = vpack.c.b16 %v1674, %v1658
    %v2427 = vpack.c.b16 %v1675, %v1659
    %v2428 = vpack.c.b16 %v1692, %v1676
    %v2429 = vpack.c.b16 %v1693, %v1677
    %v2430 = vpack.c.b16 %v1694, %v1678
    %v2431 = vpack.c.b16 %v1695, %v1679
    %v2432 = vpack.c.b16 %v1696, %v1680
    %v2433 = vpack.c.b16 %v1697, %v1681
    %v2434 = vpack.c.b16 %v1698, %v1682
    %v2435 = vpack.c.b16 %v1699, %v1683
    %v2436 = vpack.c.b16 %v1700, %v1684
    %v2437 = vpack.c.b16 %v1701, %v1685
    %v2438 = vpack.c.b16 %v1702, %v1686
    %v2439 = vpack.c.b16 %v1703, %v1687
    %v2440 = vpack.c.b16 %v1704, %v1688
    %v2441 = vpack.c.b16 %v1705, %v1689
    %v2442 = vpack.c.b16 %v1706, %v1690
    %v2443 = vpack.c.b16 %v1707, %v1691
    %v2444 = vpack.c.b16 %v1724, %v1708
    %v2445 = vpack.c.b16 %v1725, %v1709
    %v2446 = vpack.c.b16 %v1726, %v1710
    %v2447 = vpack.c.b16 %v1727, %v1711
    %v2448 = vpack.c.b16 %v1728, %v1712
    %v2449 = vpack.c.b16 %v1729, %v1713
    %v2450 = vpack.c.b16 %v1730, %v1714
    %v2451 = vpack.c.b16 %v1731, %v1715
    %v2452 = vpack.c.b16 %v1732, %v1716
    %v2453 = vpack.c.b16 %v1733, %v1717
    %v2454 = vpack.c.b16 %v1734, %v1718
    %v2455 = vpack.c.b16 %v1735, %v1719
    %v2456 = vpack.c.b16 %v1736, %v1720
    %v2457 = vpack.c.b16 %v1737, %v1721
    %v2458 = vpack.c.b16 %v1738, %v1722
    %v2459 = vpack.c.b16 %v1739, %v1723
    %v2460 = vpack.c.b16 %v1756, %v1740
    %v2461 = vpack.c.b16 %v1757, %v1741
    %v2462 = vpack.c.b16 %v1758, %v1742
    %v2463 = vpack.c.b16 %v1759, %v1743
    %v2464 = vpack.c.b16 %v1760, %v1744
    %v2465 = vpack.c.b16 %v1761, %v1745
    %v2466 = vpack.c.b16 %v1762, %v1746
    %v2467 = vpack.c.b16 %v1763, %v1747
    %v2468 = vpack.c.b16 %v1764, %v1748
    %v2469 = vpack.c.b16 %v1765, %v1749
    %v2470 = vpack.c.b16 %v1766, %v1750
    %v2471 = vpack.c.b16 %v1767, %v1751
    %v2472 = vpack.c.b16 %v1768, %v1752
    %v2473 = vpack.c.b16 %v1769, %v1753
    %v2474 = vpack.c.b16 %v1770, %v1754
    %v2475 = vpack.c.b16 %v1771, %v1755
    %v2476 = vpack.c.b16 %v1788, %v1772
    %v2477 = vpack.c.b16 %v1789, %v1773
    %v2478 = vpack.c.b16 %v1790, %v1774
    %v2479 = vpack.c.b16 %v1791, %v1775
    %v2480 = vpack.c.b16 %v1792, %v1776
    %v2481 = vpack.c.b16 %v1793, %v1777
    %v2482 = vpack.c.b16 %v1794, %v1778
    %v2483 = vpack.c.b16 %v1795, %v1779
    %v2484 = vpack.c.b16 %v1796, %v1780
    %v2485 = vpack.c.b16 %v1797, %v1781
    %v2486 = vpack.c.b16 %v1798, %v1782
    %v2487 = vpack.c.b16 %v1799, %v1783
    %v2488 = vpack.c.b16 %v1800, %v1784
    %v2489 = vpack.c.b16 %v1801, %v1785
    %v2490 = vpack.c.b16 %v1802, %v1786
    %v2491 = vpack.c.b16 %v1803, %v1787
    %v2492 = vpack.c.b16 %v1820, %v1804
    %v2493 = vpack.c.b16 %v1821, %v1805
    %v2494 = vpack.c.b16 %v1822, %v1806
    %v2495 = vpack.c.b16 %v1823, %v1807
    %v2496 = vpack.c.b16 %v1824, %v1808
    %v2497 = vpack.c.b16 %v1825, %v1809
    %v2498 = vpack.c.b16 %v1826, %v1810
    %v2499 = vpack.c.b16 %v1827, %v1811
    %v2500 = vpack.c.b16 %v1828, %v1812
    %v2501 = vpack.c.b16 %v1829, %v1813
    %v2502 = vpack.c.b16 %v1830, %v1814
    %v2503 = vpack.c.b16 %v1831, %v1815
    %v2504 = vpack.c.b16 %v1832, %v1816
    %v2505 = vpack.c.b16 %v1833, %v1817
    %v2506 = vpack.c.b16 %v1834, %v1818
    %v2507 = vpack.c.b16 %v1835, %v1819
    %v2508 = vpack.c.b16 %v1852, %v1836
    %v2509 = vpack.c.b16 %v1853, %v1837
    %v2510 = vpack.c.b16 %v1854, %v1838
    %v2511 = vpack.c.b16 %v1855, %v1839
    %v2512 = vpack.c.b16 %v1856, %v1840
    %v2513 = vpack.c.b16 %v1857, %v1841
    %v2514 = vpack.c.b16 %v1858, %v1842
    %v2515 = vpack.c.b16 %v1859, %v1843
    %v2516 = vpack.c.b16 %v1860, %v1844
    %v2517 = vpack.c.b16 %v1861, %v1845
    %v2518 = vpack.c.b16 %v1862, %v1846
    %v2519 = vpack.c.b16 %v1863, %v1847
    %v2520 = vpack.c.b16 %v1864, %v1848
    %v2521 = vpack.c.b16 %v1865, %v1849
    %v2522 = vpack.c.b16 %v1866, %v1850
    %v2523 = vpack.c.b16 %v1867, %v1851
    %v2524 = vpack.c.b16 %v1884, %v1868
    %v2525 = vpack.c.b16 %v1885, %v1869
    %v2526 = vpack.c.b16 %v1886, %v1870
    %v2527 = vpack.c.b16 %v1887, %v1871
    %v2528 = vpack.c.b16 %v1888, %v1872
    %v2529 = vpack.c.b16 %v1889, %v1873
    %v2530 = vpack.c.b16 %v1890, %v1874
    %v2531 = vpack.c.b16 %v1891, %v1875
    %v2532 = vpack.c.b16 %v1892, %v1876
    %v2533 = vpack.c.b16 %v1893, %v1877
    %v2534 = vpack.c.b16 %v1894, %v1878
    %v2535 = vpack.c.b16 %v1895, %v1879
    %v2536 = vpack.c.b16 %v1896, %v1880
    %v2537 = vpack.c.b16 %v1897, %v1881
    %v2538 = vpack.c.b16 %v1898, %v1882
    %v2539 = vpack.c.b16 %v1899, %v1883
    %v2540 = vpack.c.b16 %v1916, %v1900
    %v2541 = vpack.c.b16 %v1917, %v1901
    %v2542 = vpack.c.b16 %v1918, %v1902
    %v2543 = vpack.c.b16 %v1919, %v1903
    %v2544 = vpack.c.b16 %v1920, %v1904
    %v2545 = vpack.c.b16 %v1921, %v1905
    %v2546 = vpack.c.b16 %v1922, %v1906
    %v2547 = vpack.c.b16 %v1923, %v1907
    %v2548 = vpack.c.b16 %v1924, %v1908
    %v2549 = vpack.c.b16 %v1925, %v1909
    %v2550 = vpack.c.b16 %v1926, %v1910
    %v2551 = vpack.c.b16 %v1927, %v1911
    %v2552 = vpack.c.b16 %v1928, %v1912
    %v2553 = vpack.c.b16 %v1929, %v1913
    %v2554 = vpack.c.b16 %v1930, %v1914
    %v2555 = vpack.c.b16 %v1931, %v1915
    %v2556 = vpack.c.b16 %v1948, %v1932
    %v2557 = vpack.c.b16 %v1949, %v1933
    %v2558 = vpack.c.b16 %v1950, %v1934
    %v2559 = vpack.c.b16 %v1951, %v1935
    %v2560 = vpack.c.b16 %v1952, %v1936
    %v2561 = vpack.c.b16 %v1953, %v1937
    %v2562 = vpack.c.b16 %v1954, %v1938
    %v2563 = vpack.c.b16 %v1955, %v1939
    %v2564 = vpack.c.b16 %v1956, %v1940
    %v2565 = vpack.c.b16 %v1957, %v1941
    %v2566 = vpack.c.b16 %v1958, %v1942
    %v2567 = vpack.c.b16 %v1959, %v1943
    %v2568 = vpack.c.b16 %v1960, %v1944
    %v2569 = vpack.c.b16 %v1961, %v1945
    %v2570 = vpack.c.b16 %v1962, %v1946
    %v2571 = vpack.c.b16 %v1963, %v1947
    %v2572 = vpack.c.b16 %v1980, %v1964
    %v2573 = vpack.c.b16 %v1981, %v1965
    %v2574 = vpack.c.b16 %v1982, %v1966
    %v2575 = vpack.c.b16 %v1983, %v1967
    %v2576 = vpack.c.b16 %v1984, %v1968
    %v2577 = vpack.c.b16 %v1985, %v1969
    %v2578 = vpack.c.b16 %v1986, %v1970
    %v2579 = vpack.c.b16 %v1987, %v1971
    %v2580 = vpack.c.b16 %v1988, %v1972
    %v2581 = vpack.c.b16 %v1989, %v1973
    %v2582 = vpack.c.b16 %v1990, %v1974
    %v2583 = vpack.c.b16 %v1991, %v1975
    %v2584 = vpack.c.b16 %v1992, %v1976
    %v2585 = vpack.c.b16 %v1993, %v1977
    %v2586 = vpack.c.b16 %v1994, %v1978
    %v2587 = vpack.c.b16 %v1995, %v1979
    %v2588 = vpack.c.b16 %v2012, %v1996
    %v2589 = vpack.c.b16 %v2013, %v1997
    %v2590 = vpack.c.b16 %v2014, %v1998
    %v2591 = vpack.c.b16 %v2015, %v1999
    %v2592 = vpack.c.b16 %v2016, %v2000
    %v2593 = vpack.c.b16 %v2017, %v2001
    %v2594 = vpack.c.b16 %v2018, %v2002
    %v2595 = vpack.c.b16 %v2019, %v2003
    %v2596 = vpack.c.b16 %v2020, %v2004
    %v2597 = vpack.c.b16 %v2021, %v2005
    %v2598 = vpack.c.b16 %v2022, %v2006
    %v2599 = vpack.c.b16 %v2023, %v2007
    %v2600 = vpack.c.b16 %v2024, %v2008
    %v2601 = vpack.c.b16 %v2025, %v2009
    %v2602 = vpack.c.b16 %v2026, %v2010
    %v2603 = vpack.c.b16 %v2027, %v2011
    %v2604 = vpack.c.b16 %v2044, %v2028
    %v2605 = vpack.c.b16 %v2045, %v2029
    %v2606 = vpack.c.b16 %v2046, %v2030
    %v2607 = vpack.c.b16 %v2047, %v2031
    %v2608 = vpack.c.b16 %v2048, %v2032
    %v2609 = vpack.c.b16 %v2049, %v2033
    %v2610 = vpack.c.b16 %v2050, %v2034
    %v2611 = vpack.c.b16 %v2051, %v2035
    %v2612 = vpack.c.b16 %v2052, %v2036
    %v2613 = vpack.c.b16 %v2053, %v2037
    %v2614 = vpack.c.b16 %v2054, %v2038
    %v2615 = vpack.c.b16 %v2055, %v2039
    %v2616 = vpack.c.b16 %v2056, %v2040
    %v2617 = vpack.c.b16 %v2057, %v2041
    %v2618 = vpack.c.b16 %v2058, %v2042
    %v2619 = vpack.c.b16 %v2059, %v2043
    %v2620 = vpack.c.b16 %v2076, %v2060
    %v2621 = vpack.c.b16 %v2077, %v2061
    %v2622 = vpack.c.b16 %v2078, %v2062
    %v2623 = vpack.c.b16 %v2079, %v2063
    %v2624 = vpack.c.b16 %v2080, %v2064
    %v2625 = vpack.c.b16 %v2081, %v2065
    %v2626 = vpack.c.b16 %v2082, %v2066
    %v2627 = vpack.c.b16 %v2083, %v2067
    %v2628 = vpack.c.b16 %v2084, %v2068
    %v2629 = vpack.c.b16 %v2085, %v2069
    %v2630 = vpack.c.b16 %v2086, %v2070
    %v2631 = vpack.c.b16 %v2087, %v2071
    %v2632 = vpack.c.b16 %v2088, %v2072
    %v2633 = vpack.c.b16 %v2089, %v2073
    %v2634 = vpack.c.b16 %v2090, %v2074
    %v2635 = vpack.c.b16 %v2091, %v2075
    %v2636 = vpack.c.b16 %v2108, %v2092
    %v2637 = vpack.c.b16 %v2109, %v2093
    %v2638 = vpack.c.b16 %v2110, %v2094
    %v2639 = vpack.c.b16 %v2111, %v2095
    %v2640 = vpack.c.b16 %v2112, %v2096
    %v2641 = vpack.c.b16 %v2113, %v2097
    %v2642 = vpack.c.b16 %v2114, %v2098
    %v2643 = vpack.c.b16 %v2115, %v2099
    %v2644 = vpack.c.b16 %v2116, %v2100
    %v2645 = vpack.c.b16 %v2117, %v2101
    %v2646 = vpack.c.b16 %v2118, %v2102
    %v2647 = vpack.c.b16 %v2119, %v2103
    %v2648 = vpack.c.b16 %v2120, %v2104
    %v2649 = vpack.c.b16 %v2121, %v2105
    %v2650 = vpack.c.b16 %v2122, %v2106
    %v2651 = vpack.c.b16 %v2123, %v2107
    %v2652 = vpack.c.b16 %v2140, %v2124
    %v2653 = vpack.c.b16 %v2141, %v2125
    %v2654 = vpack.c.b16 %v2142, %v2126
    %v2655 = vpack.c.b16 %v2143, %v2127
    %v2656 = vpack.c.b16 %v2144, %v2128
    %v2657 = vpack.c.b16 %v2145, %v2129
    %v2658 = vpack.c.b16 %v2146, %v2130
    %v2659 = vpack.c.b16 %v2147, %v2131
    %v2660 = vpack.c.b16 %v2148, %v2132
    %v2661 = vpack.c.b16 %v2149, %v2133
    %v2662 = vpack.c.b16 %v2150, %v2134
    %v2663 = vpack.c.b16 %v2151, %v2135
    %v2664 = vpack.c.b16 %v2152, %v2136
    %v2665 = vpack.c.b16 %v2153, %v2137
    %v2666 = vpack.c.b16 %v2154, %v2138
    %v2667 = vpack.c.b16 %v2155, %v2139
    %3180 = vmatpush.bf16.msra.mxu0 %v2268
    %3181 = vmatpush.bf16.msra.mxu0 %v2252
    %3182 = vmatpush.bf16.msra.mxu0 %v2236
    %3183 = vmatpush.bf16.msra.mxu0 %v2220
    %3184 = vmatpush.bf16.msra.mxu0 %v2204
    %3185 = vmatpush.bf16.msra.mxu0 %v2188
    %3186 = vmatpush.bf16.msra.mxu0 %v2172
    %3187 = vmatpush.bf16.msra.mxu0 %v2156
    %3188 = vmatmul.bf16.gmra.mxu0 %v604
    %v3189 = vpop.f32.mrf.mxu0
    %v3190 = vadd.f32 0.0, %v3189
    %v3191 = vpop.f32.mrf.mxu0
    %v3192 = vadd.f32 0.0, %v3191
    %3193 = vmatmul.bf16.gmra.mxu0 %v608
    %v3194 = vpop.f32.mrf.mxu0
    %v3195 = vadd.f32 0.0, %v3194
    %v3196 = vpop.f32.mrf.mxu0
    %v3197 = vadd.f32 0.0, %v3196
    %3198 = vdwg.mxu0
    %3199 = vmatpush.bf16.msra.mxu0 %v2396
    %3200 = vmatpush.bf16.msra.mxu0 %v2380
    %3201 = vmatpush.bf16.msra.mxu0 %v2364
    %3202 = vmatpush.bf16.msra.mxu0 %v2348
    %3203 = vmatpush.bf16.msra.mxu0 %v2332
    %3204 = vmatpush.bf16.msra.mxu0 %v2316
    %3205 = vmatpush.bf16.msra.mxu0 %v2300
    %3206 = vmatpush.bf16.msra.mxu0 %v2284
    %3207 = vmatmul.bf16.gmra.mxu0 %v605
    %v3208 = vpop.f32.mrf.mxu0
    %v3209 = vadd.f32 %v3190, %v3208
    %v3210 = vpop.f32.mrf.mxu0
    %v3211 = vadd.f32 %v3192, %v3210
    %3212 = vmatmul.bf16.gmra.mxu0 %v609
    %v3213 = vpop.f32.mrf.mxu0
    %v3214 = vadd.f32 %v3195, %v3213
    %v3215 = vpop.f32.mrf.mxu0
    %v3216 = vadd.f32 %v3197, %v3215
    %3217 = vdwg.mxu0
    %3218 = vmatpush.bf16.msra.mxu0 %v2524
    %3219 = vmatpush.bf16.msra.mxu0 %v2508
    %3220 = vmatpush.bf16.msra.mxu0 %v2492
    %3221 = vmatpush.bf16.msra.mxu0 %v2476
    %3222 = vmatpush.bf16.msra.mxu0 %v2460
    %3223 = vmatpush.bf16.msra.mxu0 %v2444
    %3224 = vmatpush.bf16.msra.mxu0 %v2428
    %3225 = vmatpush.bf16.msra.mxu0 %v2412
    %3226 = vmatmul.bf16.gmra.mxu0 %v606
    %v3227 = vpop.f32.mrf.mxu0
    %v3228 = vadd.f32 %v3209, %v3227
    %v3229 = vpop.f32.mrf.mxu0
    %v3230 = vadd.f32 %v3211, %v3229
    %3231 = vmatmul.bf16.gmra.mxu0 %v610
    %v3232 = vpop.f32.mrf.mxu0
    %v3233 = vadd.f32 %v3214, %v3232
    %v3234 = vpop.f32.mrf.mxu0
    %v3235 = vadd.f32 %v3216, %v3234
    %3236 = vdwg.mxu0
    %3237 = vmatpush.bf16.msra.mxu0 %v2652
    %3238 = vmatpush.bf16.msra.mxu0 %v2636
    %3239 = vmatpush.bf16.msra.mxu0 %v2620
    %3240 = vmatpush.bf16.msra.mxu0 %v2604
    %3241 = vmatpush.bf16.msra.mxu0 %v2588
    %3242 = vmatpush.bf16.msra.mxu0 %v2572
    %3243 = vmatpush.bf16.msra.mxu0 %v2556
    %3244 = vmatpush.bf16.msra.mxu0 %v2540
    %3245 = vmatmul.bf16.gmra.mxu0 %v607
    %v3246 = vpop.f32.mrf.mxu0
    %v3247 = vadd.f32 %v3228, %v3246
    %v3248 = vpop.f32.mrf.mxu0
    %v3249 = vadd.f32 %v3230, %v3248
    %3250 = vmatmul.bf16.gmra.mxu0 %v611
    %v3251 = vpop.f32.mrf.mxu0
    %v3252 = vadd.f32 %v3233, %v3251
    %v3253 = vpop.f32.mrf.mxu0
    %v3254 = vadd.f32 %v3235, %v3253
    %3255 = vdwg.mxu0
    %3256 = vmatpush.bf16.msra.mxu0 %v2269
    %3257 = vmatpush.bf16.msra.mxu0 %v2253
    %3258 = vmatpush.bf16.msra.mxu0 %v2237
    %3259 = vmatpush.bf16.msra.mxu0 %v2221
    %3260 = vmatpush.bf16.msra.mxu0 %v2205
    %3261 = vmatpush.bf16.msra.mxu0 %v2189
    %3262 = vmatpush.bf16.msra.mxu0 %v2173
    %3263 = vmatpush.bf16.msra.mxu0 %v2157
    %3264 = vmatmul.bf16.gmra.mxu0 %v604
    %v3265 = vpop.f32.mrf.mxu0
    %v3266 = vadd.f32 0.0, %v3265
    %v3267 = vpop.f32.mrf.mxu0
    %v3268 = vadd.f32 0.0, %v3267
    %3269 = vmatmul.bf16.gmra.mxu0 %v608
    %v3270 = vpop.f32.mrf.mxu0
    %v3271 = vadd.f32 0.0, %v3270
    %v3272 = vpop.f32.mrf.mxu0
    %v3273 = vadd.f32 0.0, %v3272
    %3274 = vdwg.mxu0
    %3275 = vmatpush.bf16.msra.mxu0 %v2397
    %3276 = vmatpush.bf16.msra.mxu0 %v2381
    %3277 = vmatpush.bf16.msra.mxu0 %v2365
    %3278 = vmatpush.bf16.msra.mxu0 %v2349
    %3279 = vmatpush.bf16.msra.mxu0 %v2333
    %3280 = vmatpush.bf16.msra.mxu0 %v2317
    %3281 = vmatpush.bf16.msra.mxu0 %v2301
    %3282 = vmatpush.bf16.msra.mxu0 %v2285
    %3283 = vmatmul.bf16.gmra.mxu0 %v605
    %v3284 = vpop.f32.mrf.mxu0
    %v3285 = vadd.f32 %v3266, %v3284
    %v3286 = vpop.f32.mrf.mxu0
    %v3287 = vadd.f32 %v3268, %v3286
    %3288 = vmatmul.bf16.gmra.mxu0 %v609
    %v3289 = vpop.f32.mrf.mxu0
    %v3290 = vadd.f32 %v3271, %v3289
    %v3291 = vpop.f32.mrf.mxu0
    %v3292 = vadd.f32 %v3273, %v3291
    %3293 = vdwg.mxu0
    %3294 = vmatpush.bf16.msra.mxu0 %v2525
    %3295 = vmatpush.bf16.msra.mxu0 %v2509
    %3296 = vmatpush.bf16.msra.mxu0 %v2493
    %3297 = vmatpush.bf16.msra.mxu0 %v2477
    %3298 = vmatpush.bf16.msra.mxu0 %v2461
    %3299 = vmatpush.bf16.msra.mxu0 %v2445
    %3300 = vmatpush.bf16.msra.mxu0 %v2429
    %3301 = vmatpush.bf16.msra.mxu0 %v2413
    %3302 = vmatmul.bf16.gmra.mxu0 %v606
    %v3303 = vpop.f32.mrf.mxu0
    %v3304 = vadd.f32 %v3285, %v3303
    %v3305 = vpop.f32.mrf.mxu0
    %v3306 = vadd.f32 %v3287, %v3305
    %3307 = vmatmul.bf16.gmra.mxu0 %v610
    %v3308 = vpop.f32.mrf.mxu0
    %v3309 = vadd.f32 %v3290, %v3308
    %v3310 = vpop.f32.mrf.mxu0
    %v3311 = vadd.f32 %v3292, %v3310
    %3312 = vdwg.mxu0
    %3313 = vmatpush.bf16.msra.mxu0 %v2653
    %3314 = vmatpush.bf16.msra.mxu0 %v2637
    %3315 = vmatpush.bf16.msra.mxu0 %v2621
    %3316 = vmatpush.bf16.msra.mxu0 %v2605
    %3317 = vmatpush.bf16.msra.mxu0 %v2589
    %3318 = vmatpush.bf16.msra.mxu0 %v2573
    %3319 = vmatpush.bf16.msra.mxu0 %v2557
    %3320 = vmatpush.bf16.msra.mxu0 %v2541
    %3321 = vmatmul.bf16.gmra.mxu0 %v607
    %v3322 = vpop.f32.mrf.mxu0
    %v3323 = vadd.f32 %v3304, %v3322
    %v3324 = vpop.f32.mrf.mxu0
    %v3325 = vadd.f32 %v3306, %v3324
    %3326 = vmatmul.bf16.gmra.mxu0 %v611
    %v3327 = vpop.f32.mrf.mxu0
    %v3328 = vadd.f32 %v3309, %v3327
    %v3329 = vpop.f32.mrf.mxu0
    %v3330 = vadd.f32 %v3311, %v3329
    %3331 = vdwg.mxu0
    %3332 = vmatpush.bf16.msra.mxu0 %v2270
    %3333 = vmatpush.bf16.msra.mxu0 %v2254
    %3334 = vmatpush.bf16.msra.mxu0 %v2238
    %3335 = vmatpush.bf16.msra.mxu0 %v2222
    %3336 = vmatpush.bf16.msra.mxu0 %v2206
    %3337 = vmatpush.bf16.msra.mxu0 %v2190
    %3338 = vmatpush.bf16.msra.mxu0 %v2174
    %3339 = vmatpush.bf16.msra.mxu0 %v2158
    %3340 = vmatmul.bf16.gmra.mxu0 %v604
    %v3341 = vpop.f32.mrf.mxu0
    %v3342 = vadd.f32 0.0, %v3341
    %v3343 = vpop.f32.mrf.mxu0
    %v3344 = vadd.f32 0.0, %v3343
    %3345 = vmatmul.bf16.gmra.mxu0 %v608
    %v3346 = vpop.f32.mrf.mxu0
    %v3347 = vadd.f32 0.0, %v3346
    %v3348 = vpop.f32.mrf.mxu0
    %v3349 = vadd.f32 0.0, %v3348
    %3350 = vdwg.mxu0
    %3351 = vmatpush.bf16.msra.mxu0 %v2398
    %3352 = vmatpush.bf16.msra.mxu0 %v2382
    %3353 = vmatpush.bf16.msra.mxu0 %v2366
    %3354 = vmatpush.bf16.msra.mxu0 %v2350
    %3355 = vmatpush.bf16.msra.mxu0 %v2334
    %3356 = vmatpush.bf16.msra.mxu0 %v2318
    %3357 = vmatpush.bf16.msra.mxu0 %v2302
    %3358 = vmatpush.bf16.msra.mxu0 %v2286
    %3359 = vmatmul.bf16.gmra.mxu0 %v605
    %v3360 = vpop.f32.mrf.mxu0
    %v3361 = vadd.f32 %v3342, %v3360
    %v3362 = vpop.f32.mrf.mxu0
    %v3363 = vadd.f32 %v3344, %v3362
    %3364 = vmatmul.bf16.gmra.mxu0 %v609
    %v3365 = vpop.f32.mrf.mxu0
    %v3366 = vadd.f32 %v3347, %v3365
    %v3367 = vpop.f32.mrf.mxu0
    %v3368 = vadd.f32 %v3349, %v3367
    %3369 = vdwg.mxu0
    %3370 = vmatpush.bf16.msra.mxu0 %v2526
    %3371 = vmatpush.bf16.msra.mxu0 %v2510
    %3372 = vmatpush.bf16.msra.mxu0 %v2494
    %3373 = vmatpush.bf16.msra.mxu0 %v2478
    %3374 = vmatpush.bf16.msra.mxu0 %v2462
    %3375 = vmatpush.bf16.msra.mxu0 %v2446
    %3376 = vmatpush.bf16.msra.mxu0 %v2430
    %3377 = vmatpush.bf16.msra.mxu0 %v2414
    %3378 = vmatmul.bf16.gmra.mxu0 %v606
    %v3379 = vpop.f32.mrf.mxu0
    %v3380 = vadd.f32 %v3361, %v3379
    %v3381 = vpop.f32.mrf.mxu0
    %v3382 = vadd.f32 %v3363, %v3381
    %3383 = vmatmul.bf16.gmra.mxu0 %v610
    %v3384 = vpop.f32.mrf.mxu0
    %v3385 = vadd.f32 %v3366, %v3384
    %v3386 = vpop.f32.mrf.mxu0
    %v3387 = vadd.f32 %v3368, %v3386
    %3388 = vdwg.mxu0
    %3389 = vmatpush.bf16.msra.mxu0 %v2654
    %3390 = vmatpush.bf16.msra.mxu0 %v2638
    %3391 = vmatpush.bf16.msra.mxu0 %v2622
    %3392 = vmatpush.bf16.msra.mxu0 %v2606
    %3393 = vmatpush.bf16.msra.mxu0 %v2590
    %3394 = vmatpush.bf16.msra.mxu0 %v2574
    %3395 = vmatpush.bf16.msra.mxu0 %v2558
    %3396 = vmatpush.bf16.msra.mxu0 %v2542
    %3397 = vmatmul.bf16.gmra.mxu0 %v607
    %v3398 = vpop.f32.mrf.mxu0
    %v3399 = vadd.f32 %v3380, %v3398
    %v3400 = vpop.f32.mrf.mxu0
    %v3401 = vadd.f32 %v3382, %v3400
    %3402 = vmatmul.bf16.gmra.mxu0 %v611
    %v3403 = vpop.f32.mrf.mxu0
    %v3404 = vadd.f32 %v3385, %v3403
    %v3405 = vpop.f32.mrf.mxu0
    %v3406 = vadd.f32 %v3387, %v3405
    %3407 = vdwg.mxu0
    %3408 = vmatpush.bf16.msra.mxu0 %v2271
    %3409 = vmatpush.bf16.msra.mxu0 %v2255
    %3410 = vmatpush.bf16.msra.mxu0 %v2239
    %3411 = vmatpush.bf16.msra.mxu0 %v2223
    %3412 = vmatpush.bf16.msra.mxu0 %v2207
    %3413 = vmatpush.bf16.msra.mxu0 %v2191
    %3414 = vmatpush.bf16.msra.mxu0 %v2175
    %3415 = vmatpush.bf16.msra.mxu0 %v2159
    %3416 = vmatmul.bf16.gmra.mxu0 %v604
    %v3417 = vpop.f32.mrf.mxu0
    %v3418 = vadd.f32 0.0, %v3417
    %v3419 = vpop.f32.mrf.mxu0
    %v3420 = vadd.f32 0.0, %v3419
    %3421 = vmatmul.bf16.gmra.mxu0 %v608
    %v3422 = vpop.f32.mrf.mxu0
    %v3423 = vadd.f32 0.0, %v3422
    %v3424 = vpop.f32.mrf.mxu0
    %v3425 = vadd.f32 0.0, %v3424
    %3426 = vdwg.mxu0
    %3427 = vmatpush.bf16.msra.mxu0 %v2399
    %3428 = vmatpush.bf16.msra.mxu0 %v2383
    %3429 = vmatpush.bf16.msra.mxu0 %v2367
    %3430 = vmatpush.bf16.msra.mxu0 %v2351
    %3431 = vmatpush.bf16.msra.mxu0 %v2335
    %3432 = vmatpush.bf16.msra.mxu0 %v2319
    %3433 = vmatpush.bf16.msra.mxu0 %v2303
    %3434 = vmatpush.bf16.msra.mxu0 %v2287
    %3435 = vmatmul.bf16.gmra.mxu0 %v605
    %v3436 = vpop.f32.mrf.mxu0
    %v3437 = vadd.f32 %v3418, %v3436
    %v3438 = vpop.f32.mrf.mxu0
    %v3439 = vadd.f32 %v3420, %v3438
    %3440 = vmatmul.bf16.gmra.mxu0 %v609
    %v3441 = vpop.f32.mrf.mxu0
    %v3442 = vadd.f32 %v3423, %v3441
    %v3443 = vpop.f32.mrf.mxu0
    %v3444 = vadd.f32 %v3425, %v3443
    %3445 = vdwg.mxu0
    %3446 = vmatpush.bf16.msra.mxu0 %v2527
    %3447 = vmatpush.bf16.msra.mxu0 %v2511
    %3448 = vmatpush.bf16.msra.mxu0 %v2495
    %3449 = vmatpush.bf16.msra.mxu0 %v2479
    %3450 = vmatpush.bf16.msra.mxu0 %v2463
    %3451 = vmatpush.bf16.msra.mxu0 %v2447
    %3452 = vmatpush.bf16.msra.mxu0 %v2431
    %3453 = vmatpush.bf16.msra.mxu0 %v2415
    %3454 = vmatmul.bf16.gmra.mxu0 %v606
    %v3455 = vpop.f32.mrf.mxu0
    %v3456 = vadd.f32 %v3437, %v3455
    %v3457 = vpop.f32.mrf.mxu0
    %v3458 = vadd.f32 %v3439, %v3457
    %3459 = vmatmul.bf16.gmra.mxu0 %v610
    %v3460 = vpop.f32.mrf.mxu0
    %v3461 = vadd.f32 %v3442, %v3460
    %v3462 = vpop.f32.mrf.mxu0
    %v3463 = vadd.f32 %v3444, %v3462
    %3464 = vdwg.mxu0
    %3465 = vmatpush.bf16.msra.mxu0 %v2655
    %3466 = vmatpush.bf16.msra.mxu0 %v2639
    %3467 = vmatpush.bf16.msra.mxu0 %v2623
    %3468 = vmatpush.bf16.msra.mxu0 %v2607
    %3469 = vmatpush.bf16.msra.mxu0 %v2591
    %3470 = vmatpush.bf16.msra.mxu0 %v2575
    %3471 = vmatpush.bf16.msra.mxu0 %v2559
    %3472 = vmatpush.bf16.msra.mxu0 %v2543
    %3473 = vmatmul.bf16.gmra.mxu0 %v607
    %v3474 = vpop.f32.mrf.mxu0
    %v3475 = vadd.f32 %v3456, %v3474
    %v3476 = vpop.f32.mrf.mxu0
    %v3477 = vadd.f32 %v3458, %v3476
    %3478 = vmatmul.bf16.gmra.mxu0 %v611
    %v3479 = vpop.f32.mrf.mxu0
    %v3480 = vadd.f32 %v3461, %v3479
    %v3481 = vpop.f32.mrf.mxu0
    %v3482 = vadd.f32 %v3463, %v3481
    %3483 = vdwg.mxu0
    %3484 = vmatpush.bf16.msra.mxu0 %v2272
    %3485 = vmatpush.bf16.msra.mxu0 %v2256
    %3486 = vmatpush.bf16.msra.mxu0 %v2240
    %3487 = vmatpush.bf16.msra.mxu0 %v2224
    %3488 = vmatpush.bf16.msra.mxu0 %v2208
    %3489 = vmatpush.bf16.msra.mxu0 %v2192
    %3490 = vmatpush.bf16.msra.mxu0 %v2176
    %3491 = vmatpush.bf16.msra.mxu0 %v2160
    %3492 = vmatmul.bf16.gmra.mxu0 %v604
    %v3493 = vpop.f32.mrf.mxu0
    %v3494 = vadd.f32 0.0, %v3493
    %v3495 = vpop.f32.mrf.mxu0
    %v3496 = vadd.f32 0.0, %v3495
    %3497 = vmatmul.bf16.gmra.mxu0 %v608
    %v3498 = vpop.f32.mrf.mxu0
    %v3499 = vadd.f32 0.0, %v3498
    %v3500 = vpop.f32.mrf.mxu0
    %v3501 = vadd.f32 0.0, %v3500
    %3502 = vdwg.mxu0
    %3503 = vmatpush.bf16.msra.mxu0 %v2400
    %3504 = vmatpush.bf16.msra.mxu0 %v2384
    %3505 = vmatpush.bf16.msra.mxu0 %v2368
    %3506 = vmatpush.bf16.msra.mxu0 %v2352
    %3507 = vmatpush.bf16.msra.mxu0 %v2336
    %3508 = vmatpush.bf16.msra.mxu0 %v2320
    %3509 = vmatpush.bf16.msra.mxu0 %v2304
    %3510 = vmatpush.bf16.msra.mxu0 %v2288
    %3511 = vmatmul.bf16.gmra.mxu0 %v605
    %v3512 = vpop.f32.mrf.mxu0
    %v3513 = vadd.f32 %v3494, %v3512
    %v3514 = vpop.f32.mrf.mxu0
    %v3515 = vadd.f32 %v3496, %v3514
    %3516 = vmatmul.bf16.gmra.mxu0 %v609
    %v3517 = vpop.f32.mrf.mxu0
    %v3518 = vadd.f32 %v3499, %v3517
    %v3519 = vpop.f32.mrf.mxu0
    %v3520 = vadd.f32 %v3501, %v3519
    %3521 = vdwg.mxu0
    %3522 = vmatpush.bf16.msra.mxu0 %v2528
    %3523 = vmatpush.bf16.msra.mxu0 %v2512
    %3524 = vmatpush.bf16.msra.mxu0 %v2496
    %3525 = vmatpush.bf16.msra.mxu0 %v2480
    %3526 = vmatpush.bf16.msra.mxu0 %v2464
    %3527 = vmatpush.bf16.msra.mxu0 %v2448
    %3528 = vmatpush.bf16.msra.mxu0 %v2432
    %3529 = vmatpush.bf16.msra.mxu0 %v2416
    %3530 = vmatmul.bf16.gmra.mxu0 %v606
    %v3531 = vpop.f32.mrf.mxu0
    %v3532 = vadd.f32 %v3513, %v3531
    %v3533 = vpop.f32.mrf.mxu0
    %v3534 = vadd.f32 %v3515, %v3533
    %3535 = vmatmul.bf16.gmra.mxu0 %v610
    %v3536 = vpop.f32.mrf.mxu0
    %v3537 = vadd.f32 %v3518, %v3536
    %v3538 = vpop.f32.mrf.mxu0
    %v3539 = vadd.f32 %v3520, %v3538
    %3540 = vdwg.mxu0
    %3541 = vmatpush.bf16.msra.mxu0 %v2656
    %3542 = vmatpush.bf16.msra.mxu0 %v2640
    %3543 = vmatpush.bf16.msra.mxu0 %v2624
    %3544 = vmatpush.bf16.msra.mxu0 %v2608
    %3545 = vmatpush.bf16.msra.mxu0 %v2592
    %3546 = vmatpush.bf16.msra.mxu0 %v2576
    %3547 = vmatpush.bf16.msra.mxu0 %v2560
    %3548 = vmatpush.bf16.msra.mxu0 %v2544
    %3549 = vmatmul.bf16.gmra.mxu0 %v607
    %v3550 = vpop.f32.mrf.mxu0
    %v3551 = vadd.f32 %v3532, %v3550
    %v3552 = vpop.f32.mrf.mxu0
    %v3553 = vadd.f32 %v3534, %v3552
    %3554 = vmatmul.bf16.gmra.mxu0 %v611
    %v3555 = vpop.f32.mrf.mxu0
    %v3556 = vadd.f32 %v3537, %v3555
    %v3557 = vpop.f32.mrf.mxu0
    %v3558 = vadd.f32 %v3539, %v3557
    %3559 = vdwg.mxu0
    %3560 = vmatpush.bf16.msra.mxu0 %v2273
    %3561 = vmatpush.bf16.msra.mxu0 %v2257
    %3562 = vmatpush.bf16.msra.mxu0 %v2241
    %3563 = vmatpush.bf16.msra.mxu0 %v2225
    %3564 = vmatpush.bf16.msra.mxu0 %v2209
    %3565 = vmatpush.bf16.msra.mxu0 %v2193
    %3566 = vmatpush.bf16.msra.mxu0 %v2177
    %3567 = vmatpush.bf16.msra.mxu0 %v2161
    %3568 = vmatmul.bf16.gmra.mxu0 %v604
    %v3569 = vpop.f32.mrf.mxu0
    %v3570 = vadd.f32 0.0, %v3569
    %v3571 = vpop.f32.mrf.mxu0
    %v3572 = vadd.f32 0.0, %v3571
    %3573 = vmatmul.bf16.gmra.mxu0 %v608
    %v3574 = vpop.f32.mrf.mxu0
    %v3575 = vadd.f32 0.0, %v3574
    %v3576 = vpop.f32.mrf.mxu0
    %v3577 = vadd.f32 0.0, %v3576
    %3578 = vdwg.mxu0
    %3579 = vmatpush.bf16.msra.mxu0 %v2401
    %3580 = vmatpush.bf16.msra.mxu0 %v2385
    %3581 = vmatpush.bf16.msra.mxu0 %v2369
    %3582 = vmatpush.bf16.msra.mxu0 %v2353
    %3583 = vmatpush.bf16.msra.mxu0 %v2337
    %3584 = vmatpush.bf16.msra.mxu0 %v2321
    %3585 = vmatpush.bf16.msra.mxu0 %v2305
    %3586 = vmatpush.bf16.msra.mxu0 %v2289
    %3587 = vmatmul.bf16.gmra.mxu0 %v605
    %v3588 = vpop.f32.mrf.mxu0
    %v3589 = vadd.f32 %v3570, %v3588
    %v3590 = vpop.f32.mrf.mxu0
    %v3591 = vadd.f32 %v3572, %v3590
    %3592 = vmatmul.bf16.gmra.mxu0 %v609
    %v3593 = vpop.f32.mrf.mxu0
    %v3594 = vadd.f32 %v3575, %v3593
    %v3595 = vpop.f32.mrf.mxu0
    %v3596 = vadd.f32 %v3577, %v3595
    %3597 = vdwg.mxu0
    %3598 = vmatpush.bf16.msra.mxu0 %v2529
    %3599 = vmatpush.bf16.msra.mxu0 %v2513
    %3600 = vmatpush.bf16.msra.mxu0 %v2497
    %3601 = vmatpush.bf16.msra.mxu0 %v2481
    %3602 = vmatpush.bf16.msra.mxu0 %v2465
    %3603 = vmatpush.bf16.msra.mxu0 %v2449
    %3604 = vmatpush.bf16.msra.mxu0 %v2433
    %3605 = vmatpush.bf16.msra.mxu0 %v2417
    %3606 = vmatmul.bf16.gmra.mxu0 %v606
    %v3607 = vpop.f32.mrf.mxu0
    %v3608 = vadd.f32 %v3589, %v3607
    %v3609 = vpop.f32.mrf.mxu0
    %v3610 = vadd.f32 %v3591, %v3609
    %3611 = vmatmul.bf16.gmra.mxu0 %v610
    %v3612 = vpop.f32.mrf.mxu0
    %v3613 = vadd.f32 %v3594, %v3612
    %v3614 = vpop.f32.mrf.mxu0
    %v3615 = vadd.f32 %v3596, %v3614
    %3616 = vdwg.mxu0
    %3617 = vmatpush.bf16.msra.mxu0 %v2657
    %3618 = vmatpush.bf16.msra.mxu0 %v2641
    %3619 = vmatpush.bf16.msra.mxu0 %v2625
    %3620 = vmatpush.bf16.msra.mxu0 %v2609
    %3621 = vmatpush.bf16.msra.mxu0 %v2593
    %3622 = vmatpush.bf16.msra.mxu0 %v2577
    %3623 = vmatpush.bf16.msra.mxu0 %v2561
    %3624 = vmatpush.bf16.msra.mxu0 %v2545
    %3625 = vmatmul.bf16.gmra.mxu0 %v607
    %v3626 = vpop.f32.mrf.mxu0
    %v3627 = vadd.f32 %v3608, %v3626
    %v3628 = vpop.f32.mrf.mxu0
    %v3629 = vadd.f32 %v3610, %v3628
    %3630 = vmatmul.bf16.gmra.mxu0 %v611
    %v3631 = vpop.f32.mrf.mxu0
    %v3632 = vadd.f32 %v3613, %v3631
    %v3633 = vpop.f32.mrf.mxu0
    %v3634 = vadd.f32 %v3615, %v3633
    %3635 = vdwg.mxu0
    %3636 = vmatpush.bf16.msra.mxu0 %v2274
    %3637 = vmatpush.bf16.msra.mxu0 %v2258
    %3638 = vmatpush.bf16.msra.mxu0 %v2242
    %3639 = vmatpush.bf16.msra.mxu0 %v2226
    %3640 = vmatpush.bf16.msra.mxu0 %v2210
    %3641 = vmatpush.bf16.msra.mxu0 %v2194
    %3642 = vmatpush.bf16.msra.mxu0 %v2178
    %3643 = vmatpush.bf16.msra.mxu0 %v2162
    %3644 = vmatmul.bf16.gmra.mxu0 %v604
    %v3645 = vpop.f32.mrf.mxu0
    %v3646 = vadd.f32 0.0, %v3645
    %v3647 = vpop.f32.mrf.mxu0
    %v3648 = vadd.f32 0.0, %v3647
    %3649 = vmatmul.bf16.gmra.mxu0 %v608
    %v3650 = vpop.f32.mrf.mxu0
    %v3651 = vadd.f32 0.0, %v3650
    %v3652 = vpop.f32.mrf.mxu0
    %v3653 = vadd.f32 0.0, %v3652
    %3654 = vdwg.mxu0
    %3655 = vmatpush.bf16.msra.mxu0 %v2402
    %3656 = vmatpush.bf16.msra.mxu0 %v2386
    %3657 = vmatpush.bf16.msra.mxu0 %v2370
    %3658 = vmatpush.bf16.msra.mxu0 %v2354
    %3659 = vmatpush.bf16.msra.mxu0 %v2338
    %3660 = vmatpush.bf16.msra.mxu0 %v2322
    %3661 = vmatpush.bf16.msra.mxu0 %v2306
    %3662 = vmatpush.bf16.msra.mxu0 %v2290
    %3663 = vmatmul.bf16.gmra.mxu0 %v605
    %v3664 = vpop.f32.mrf.mxu0
    %v3665 = vadd.f32 %v3646, %v3664
    %v3666 = vpop.f32.mrf.mxu0
    %v3667 = vadd.f32 %v3648, %v3666
    %3668 = vmatmul.bf16.gmra.mxu0 %v609
    %v3669 = vpop.f32.mrf.mxu0
    %v3670 = vadd.f32 %v3651, %v3669
    %v3671 = vpop.f32.mrf.mxu0
    %v3672 = vadd.f32 %v3653, %v3671
    %3673 = vdwg.mxu0
    %3674 = vmatpush.bf16.msra.mxu0 %v2530
    %3675 = vmatpush.bf16.msra.mxu0 %v2514
    %3676 = vmatpush.bf16.msra.mxu0 %v2498
    %3677 = vmatpush.bf16.msra.mxu0 %v2482
    %3678 = vmatpush.bf16.msra.mxu0 %v2466
    %3679 = vmatpush.bf16.msra.mxu0 %v2450
    %3680 = vmatpush.bf16.msra.mxu0 %v2434
    %3681 = vmatpush.bf16.msra.mxu0 %v2418
    %3682 = vmatmul.bf16.gmra.mxu0 %v606
    %v3683 = vpop.f32.mrf.mxu0
    %v3684 = vadd.f32 %v3665, %v3683
    %v3685 = vpop.f32.mrf.mxu0
    %v3686 = vadd.f32 %v3667, %v3685
    %3687 = vmatmul.bf16.gmra.mxu0 %v610
    %v3688 = vpop.f32.mrf.mxu0
    %v3689 = vadd.f32 %v3670, %v3688
    %v3690 = vpop.f32.mrf.mxu0
    %v3691 = vadd.f32 %v3672, %v3690
    %3692 = vdwg.mxu0
    %3693 = vmatpush.bf16.msra.mxu0 %v2658
    %3694 = vmatpush.bf16.msra.mxu0 %v2642
    %3695 = vmatpush.bf16.msra.mxu0 %v2626
    %3696 = vmatpush.bf16.msra.mxu0 %v2610
    %3697 = vmatpush.bf16.msra.mxu0 %v2594
    %3698 = vmatpush.bf16.msra.mxu0 %v2578
    %3699 = vmatpush.bf16.msra.mxu0 %v2562
    %3700 = vmatpush.bf16.msra.mxu0 %v2546
    %3701 = vmatmul.bf16.gmra.mxu0 %v607
    %v3702 = vpop.f32.mrf.mxu0
    %v3703 = vadd.f32 %v3684, %v3702
    %v3704 = vpop.f32.mrf.mxu0
    %v3705 = vadd.f32 %v3686, %v3704
    %3706 = vmatmul.bf16.gmra.mxu0 %v611
    %v3707 = vpop.f32.mrf.mxu0
    %v3708 = vadd.f32 %v3689, %v3707
    %v3709 = vpop.f32.mrf.mxu0
    %v3710 = vadd.f32 %v3691, %v3709
    %3711 = vdwg.mxu0
    %3712 = vmatpush.bf16.msra.mxu0 %v2275
    %3713 = vmatpush.bf16.msra.mxu0 %v2259
    %3714 = vmatpush.bf16.msra.mxu0 %v2243
    %3715 = vmatpush.bf16.msra.mxu0 %v2227
    %3716 = vmatpush.bf16.msra.mxu0 %v2211
    %3717 = vmatpush.bf16.msra.mxu0 %v2195
    %3718 = vmatpush.bf16.msra.mxu0 %v2179
    %3719 = vmatpush.bf16.msra.mxu0 %v2163
    %3720 = vmatmul.bf16.gmra.mxu0 %v604
    %v3721 = vpop.f32.mrf.mxu0
    %v3722 = vadd.f32 0.0, %v3721
    %v3723 = vpop.f32.mrf.mxu0
    %v3724 = vadd.f32 0.0, %v3723
    %3725 = vmatmul.bf16.gmra.mxu0 %v608
    %v3726 = vpop.f32.mrf.mxu0
    %v3727 = vadd.f32 0.0, %v3726
    %v3728 = vpop.f32.mrf.mxu0
    %v3729 = vadd.f32 0.0, %v3728
    %3730 = vdwg.mxu0
    %3731 = vmatpush.bf16.msra.mxu0 %v2403
    %3732 = vmatpush.bf16.msra.mxu0 %v2387
    %3733 = vmatpush.bf16.msra.mxu0 %v2371
    %3734 = vmatpush.bf16.msra.mxu0 %v2355
    %3735 = vmatpush.bf16.msra.mxu0 %v2339
    %3736 = vmatpush.bf16.msra.mxu0 %v2323
    %3737 = vmatpush.bf16.msra.mxu0 %v2307
    %3738 = vmatpush.bf16.msra.mxu0 %v2291
    %3739 = vmatmul.bf16.gmra.mxu0 %v605
    %v3740 = vpop.f32.mrf.mxu0
    %v3741 = vadd.f32 %v3722, %v3740
    %v3742 = vpop.f32.mrf.mxu0
    %v3743 = vadd.f32 %v3724, %v3742
    %3744 = vmatmul.bf16.gmra.mxu0 %v609
    %v3745 = vpop.f32.mrf.mxu0
    %v3746 = vadd.f32 %v3727, %v3745
    %v3747 = vpop.f32.mrf.mxu0
    %v3748 = vadd.f32 %v3729, %v3747
    %3749 = vdwg.mxu0
    %3750 = vmatpush.bf16.msra.mxu0 %v2531
    %3751 = vmatpush.bf16.msra.mxu0 %v2515
    %3752 = vmatpush.bf16.msra.mxu0 %v2499
    %3753 = vmatpush.bf16.msra.mxu0 %v2483
    %3754 = vmatpush.bf16.msra.mxu0 %v2467
    %3755 = vmatpush.bf16.msra.mxu0 %v2451
    %3756 = vmatpush.bf16.msra.mxu0 %v2435
    %3757 = vmatpush.bf16.msra.mxu0 %v2419
    %3758 = vmatmul.bf16.gmra.mxu0 %v606
    %v3759 = vpop.f32.mrf.mxu0
    %v3760 = vadd.f32 %v3741, %v3759
    %v3761 = vpop.f32.mrf.mxu0
    %v3762 = vadd.f32 %v3743, %v3761
    %3763 = vmatmul.bf16.gmra.mxu0 %v610
    %v3764 = vpop.f32.mrf.mxu0
    %v3765 = vadd.f32 %v3746, %v3764
    %v3766 = vpop.f32.mrf.mxu0
    %v3767 = vadd.f32 %v3748, %v3766
    %3768 = vdwg.mxu0
    %3769 = vmatpush.bf16.msra.mxu0 %v2659
    %3770 = vmatpush.bf16.msra.mxu0 %v2643
    %3771 = vmatpush.bf16.msra.mxu0 %v2627
    %3772 = vmatpush.bf16.msra.mxu0 %v2611
    %3773 = vmatpush.bf16.msra.mxu0 %v2595
    %3774 = vmatpush.bf16.msra.mxu0 %v2579
    %3775 = vmatpush.bf16.msra.mxu0 %v2563
    %3776 = vmatpush.bf16.msra.mxu0 %v2547
    %3777 = vmatmul.bf16.gmra.mxu0 %v607
    %v3778 = vpop.f32.mrf.mxu0
    %v3779 = vadd.f32 %v3760, %v3778
    %v3780 = vpop.f32.mrf.mxu0
    %v3781 = vadd.f32 %v3762, %v3780
    %3782 = vmatmul.bf16.gmra.mxu0 %v611
    %v3783 = vpop.f32.mrf.mxu0
    %v3784 = vadd.f32 %v3765, %v3783
    %v3785 = vpop.f32.mrf.mxu0
    %v3786 = vadd.f32 %v3767, %v3785
    %3787 = vdwg.mxu0
    %3788 = vmatpush.bf16.msra.mxu0 %v2276
    %3789 = vmatpush.bf16.msra.mxu0 %v2260
    %3790 = vmatpush.bf16.msra.mxu0 %v2244
    %3791 = vmatpush.bf16.msra.mxu0 %v2228
    %3792 = vmatpush.bf16.msra.mxu0 %v2212
    %3793 = vmatpush.bf16.msra.mxu0 %v2196
    %3794 = vmatpush.bf16.msra.mxu0 %v2180
    %3795 = vmatpush.bf16.msra.mxu0 %v2164
    %3796 = vmatmul.bf16.gmra.mxu0 %v604
    %v3797 = vpop.f32.mrf.mxu0
    %v3798 = vadd.f32 0.0, %v3797
    %v3799 = vpop.f32.mrf.mxu0
    %v3800 = vadd.f32 0.0, %v3799
    %3801 = vmatmul.bf16.gmra.mxu0 %v608
    %v3802 = vpop.f32.mrf.mxu0
    %v3803 = vadd.f32 0.0, %v3802
    %v3804 = vpop.f32.mrf.mxu0
    %v3805 = vadd.f32 0.0, %v3804
    %3806 = vdwg.mxu0
    %3807 = vmatpush.bf16.msra.mxu0 %v2404
    %3808 = vmatpush.bf16.msra.mxu0 %v2388
    %3809 = vmatpush.bf16.msra.mxu0 %v2372
    %3810 = vmatpush.bf16.msra.mxu0 %v2356
    %3811 = vmatpush.bf16.msra.mxu0 %v2340
    %3812 = vmatpush.bf16.msra.mxu0 %v2324
    %3813 = vmatpush.bf16.msra.mxu0 %v2308
    %3814 = vmatpush.bf16.msra.mxu0 %v2292
    %3815 = vmatmul.bf16.gmra.mxu0 %v605
    %v3816 = vpop.f32.mrf.mxu0
    %v3817 = vadd.f32 %v3798, %v3816
    %v3818 = vpop.f32.mrf.mxu0
    %v3819 = vadd.f32 %v3800, %v3818
    %3820 = vmatmul.bf16.gmra.mxu0 %v609
    %v3821 = vpop.f32.mrf.mxu0
    %v3822 = vadd.f32 %v3803, %v3821
    %v3823 = vpop.f32.mrf.mxu0
    %v3824 = vadd.f32 %v3805, %v3823
    %3825 = vdwg.mxu0
    %3826 = vmatpush.bf16.msra.mxu0 %v2532
    %3827 = vmatpush.bf16.msra.mxu0 %v2516
    %3828 = vmatpush.bf16.msra.mxu0 %v2500
    %3829 = vmatpush.bf16.msra.mxu0 %v2484
    %3830 = vmatpush.bf16.msra.mxu0 %v2468
    %3831 = vmatpush.bf16.msra.mxu0 %v2452
    %3832 = vmatpush.bf16.msra.mxu0 %v2436
    %3833 = vmatpush.bf16.msra.mxu0 %v2420
    %3834 = vmatmul.bf16.gmra.mxu0 %v606
    %v3835 = vpop.f32.mrf.mxu0
    %v3836 = vadd.f32 %v3817, %v3835
    %v3837 = vpop.f32.mrf.mxu0
    %v3838 = vadd.f32 %v3819, %v3837
    %3839 = vmatmul.bf16.gmra.mxu0 %v610
    %v3840 = vpop.f32.mrf.mxu0
    %v3841 = vadd.f32 %v3822, %v3840
    %v3842 = vpop.f32.mrf.mxu0
    %v3843 = vadd.f32 %v3824, %v3842
    %3844 = vdwg.mxu0
    %3845 = vmatpush.bf16.msra.mxu0 %v2660
    %3846 = vmatpush.bf16.msra.mxu0 %v2644
    %3847 = vmatpush.bf16.msra.mxu0 %v2628
    %3848 = vmatpush.bf16.msra.mxu0 %v2612
    %3849 = vmatpush.bf16.msra.mxu0 %v2596
    %3850 = vmatpush.bf16.msra.mxu0 %v2580
    %3851 = vmatpush.bf16.msra.mxu0 %v2564
    %3852 = vmatpush.bf16.msra.mxu0 %v2548
    %3853 = vmatmul.bf16.gmra.mxu0 %v607
    %v3854 = vpop.f32.mrf.mxu0
    %v3855 = vadd.f32 %v3836, %v3854
    %v3856 = vpop.f32.mrf.mxu0
    %v3857 = vadd.f32 %v3838, %v3856
    %3858 = vmatmul.bf16.gmra.mxu0 %v611
    %v3859 = vpop.f32.mrf.mxu0
    %v3860 = vadd.f32 %v3841, %v3859
    %v3861 = vpop.f32.mrf.mxu0
    %v3862 = vadd.f32 %v3843, %v3861
    %3863 = vdwg.mxu0
    %3864 = vmatpush.bf16.msra.mxu0 %v2277
    %3865 = vmatpush.bf16.msra.mxu0 %v2261
    %3866 = vmatpush.bf16.msra.mxu0 %v2245
    %3867 = vmatpush.bf16.msra.mxu0 %v2229
    %3868 = vmatpush.bf16.msra.mxu0 %v2213
    %3869 = vmatpush.bf16.msra.mxu0 %v2197
    %3870 = vmatpush.bf16.msra.mxu0 %v2181
    %3871 = vmatpush.bf16.msra.mxu0 %v2165
    %3872 = vmatmul.bf16.gmra.mxu0 %v604
    %v3873 = vpop.f32.mrf.mxu0
    %v3874 = vadd.f32 0.0, %v3873
    %v3875 = vpop.f32.mrf.mxu0
    %v3876 = vadd.f32 0.0, %v3875
    %3877 = vmatmul.bf16.gmra.mxu0 %v608
    %v3878 = vpop.f32.mrf.mxu0
    %v3879 = vadd.f32 0.0, %v3878
    %v3880 = vpop.f32.mrf.mxu0
    %v3881 = vadd.f32 0.0, %v3880
    %3882 = vdwg.mxu0
    %3883 = vmatpush.bf16.msra.mxu0 %v2405
    %3884 = vmatpush.bf16.msra.mxu0 %v2389
    %3885 = vmatpush.bf16.msra.mxu0 %v2373
    %3886 = vmatpush.bf16.msra.mxu0 %v2357
    %3887 = vmatpush.bf16.msra.mxu0 %v2341
    %3888 = vmatpush.bf16.msra.mxu0 %v2325
    %3889 = vmatpush.bf16.msra.mxu0 %v2309
    %3890 = vmatpush.bf16.msra.mxu0 %v2293
    %3891 = vmatmul.bf16.gmra.mxu0 %v605
    %v3892 = vpop.f32.mrf.mxu0
    %v3893 = vadd.f32 %v3874, %v3892
    %v3894 = vpop.f32.mrf.mxu0
    %v3895 = vadd.f32 %v3876, %v3894
    %3896 = vmatmul.bf16.gmra.mxu0 %v609
    %v3897 = vpop.f32.mrf.mxu0
    %v3898 = vadd.f32 %v3879, %v3897
    %v3899 = vpop.f32.mrf.mxu0
    %v3900 = vadd.f32 %v3881, %v3899
    %3901 = vdwg.mxu0
    %3902 = vmatpush.bf16.msra.mxu0 %v2533
    %3903 = vmatpush.bf16.msra.mxu0 %v2517
    %3904 = vmatpush.bf16.msra.mxu0 %v2501
    %3905 = vmatpush.bf16.msra.mxu0 %v2485
    %3906 = vmatpush.bf16.msra.mxu0 %v2469
    %3907 = vmatpush.bf16.msra.mxu0 %v2453
    %3908 = vmatpush.bf16.msra.mxu0 %v2437
    %3909 = vmatpush.bf16.msra.mxu0 %v2421
    %3910 = vmatmul.bf16.gmra.mxu0 %v606
    %v3911 = vpop.f32.mrf.mxu0
    %v3912 = vadd.f32 %v3893, %v3911
    %v3913 = vpop.f32.mrf.mxu0
    %v3914 = vadd.f32 %v3895, %v3913
    %3915 = vmatmul.bf16.gmra.mxu0 %v610
    %v3916 = vpop.f32.mrf.mxu0
    %v3917 = vadd.f32 %v3898, %v3916
    %v3918 = vpop.f32.mrf.mxu0
    %v3919 = vadd.f32 %v3900, %v3918
    %3920 = vdwg.mxu0
    %3921 = vmatpush.bf16.msra.mxu0 %v2661
    %3922 = vmatpush.bf16.msra.mxu0 %v2645
    %3923 = vmatpush.bf16.msra.mxu0 %v2629
    %3924 = vmatpush.bf16.msra.mxu0 %v2613
    %3925 = vmatpush.bf16.msra.mxu0 %v2597
    %3926 = vmatpush.bf16.msra.mxu0 %v2581
    %3927 = vmatpush.bf16.msra.mxu0 %v2565
    %3928 = vmatpush.bf16.msra.mxu0 %v2549
    %3929 = vmatmul.bf16.gmra.mxu0 %v607
    %v3930 = vpop.f32.mrf.mxu0
    %v3931 = vadd.f32 %v3912, %v3930
    %v3932 = vpop.f32.mrf.mxu0
    %v3933 = vadd.f32 %v3914, %v3932
    %3934 = vmatmul.bf16.gmra.mxu0 %v611
    %v3935 = vpop.f32.mrf.mxu0
    %v3936 = vadd.f32 %v3917, %v3935
    %v3937 = vpop.f32.mrf.mxu0
    %v3938 = vadd.f32 %v3919, %v3937
    %3939 = vdwg.mxu0
    %3940 = vmatpush.bf16.msra.mxu0 %v2278
    %3941 = vmatpush.bf16.msra.mxu0 %v2262
    %3942 = vmatpush.bf16.msra.mxu0 %v2246
    %3943 = vmatpush.bf16.msra.mxu0 %v2230
    %3944 = vmatpush.bf16.msra.mxu0 %v2214
    %3945 = vmatpush.bf16.msra.mxu0 %v2198
    %3946 = vmatpush.bf16.msra.mxu0 %v2182
    %3947 = vmatpush.bf16.msra.mxu0 %v2166
    %3948 = vmatmul.bf16.gmra.mxu0 %v604
    %v3949 = vpop.f32.mrf.mxu0
    %v3950 = vadd.f32 0.0, %v3949
    %v3951 = vpop.f32.mrf.mxu0
    %v3952 = vadd.f32 0.0, %v3951
    %3953 = vmatmul.bf16.gmra.mxu0 %v608
    %v3954 = vpop.f32.mrf.mxu0
    %v3955 = vadd.f32 0.0, %v3954
    %v3956 = vpop.f32.mrf.mxu0
    %v3957 = vadd.f32 0.0, %v3956
    %3958 = vdwg.mxu0
    %3959 = vmatpush.bf16.msra.mxu0 %v2406
    %3960 = vmatpush.bf16.msra.mxu0 %v2390
    %3961 = vmatpush.bf16.msra.mxu0 %v2374
    %3962 = vmatpush.bf16.msra.mxu0 %v2358
    %3963 = vmatpush.bf16.msra.mxu0 %v2342
    %3964 = vmatpush.bf16.msra.mxu0 %v2326
    %3965 = vmatpush.bf16.msra.mxu0 %v2310
    %3966 = vmatpush.bf16.msra.mxu0 %v2294
    %3967 = vmatmul.bf16.gmra.mxu0 %v605
    %v3968 = vpop.f32.mrf.mxu0
    %v3969 = vadd.f32 %v3950, %v3968
    %v3970 = vpop.f32.mrf.mxu0
    %v3971 = vadd.f32 %v3952, %v3970
    %3972 = vmatmul.bf16.gmra.mxu0 %v609
    %v3973 = vpop.f32.mrf.mxu0
    %v3974 = vadd.f32 %v3955, %v3973
    %v3975 = vpop.f32.mrf.mxu0
    %v3976 = vadd.f32 %v3957, %v3975
    %3977 = vdwg.mxu0
    %3978 = vmatpush.bf16.msra.mxu0 %v2534
    %3979 = vmatpush.bf16.msra.mxu0 %v2518
    %3980 = vmatpush.bf16.msra.mxu0 %v2502
    %3981 = vmatpush.bf16.msra.mxu0 %v2486
    %3982 = vmatpush.bf16.msra.mxu0 %v2470
    %3983 = vmatpush.bf16.msra.mxu0 %v2454
    %3984 = vmatpush.bf16.msra.mxu0 %v2438
    %3985 = vmatpush.bf16.msra.mxu0 %v2422
    %3986 = vmatmul.bf16.gmra.mxu0 %v606
    %v3987 = vpop.f32.mrf.mxu0
    %v3988 = vadd.f32 %v3969, %v3987
    %v3989 = vpop.f32.mrf.mxu0
    %v3990 = vadd.f32 %v3971, %v3989
    %3991 = vmatmul.bf16.gmra.mxu0 %v610
    %v3992 = vpop.f32.mrf.mxu0
    %v3993 = vadd.f32 %v3974, %v3992
    %v3994 = vpop.f32.mrf.mxu0
    %v3995 = vadd.f32 %v3976, %v3994
    %3996 = vdwg.mxu0
    %3997 = vmatpush.bf16.msra.mxu0 %v2662
    %3998 = vmatpush.bf16.msra.mxu0 %v2646
    %3999 = vmatpush.bf16.msra.mxu0 %v2630
    %4000 = vmatpush.bf16.msra.mxu0 %v2614
    %4001 = vmatpush.bf16.msra.mxu0 %v2598
    %4002 = vmatpush.bf16.msra.mxu0 %v2582
    %4003 = vmatpush.bf16.msra.mxu0 %v2566
    %4004 = vmatpush.bf16.msra.mxu0 %v2550
    %4005 = vmatmul.bf16.gmra.mxu0 %v607
    %v4006 = vpop.f32.mrf.mxu0
    %v4007 = vadd.f32 %v3988, %v4006
    %v4008 = vpop.f32.mrf.mxu0
    %v4009 = vadd.f32 %v3990, %v4008
    %4010 = vmatmul.bf16.gmra.mxu0 %v611
    %v4011 = vpop.f32.mrf.mxu0
    %v4012 = vadd.f32 %v3993, %v4011
    %v4013 = vpop.f32.mrf.mxu0
    %v4014 = vadd.f32 %v3995, %v4013
    %4015 = vdwg.mxu0
    %4016 = vmatpush.bf16.msra.mxu0 %v2279
    %4017 = vmatpush.bf16.msra.mxu0 %v2263
    %4018 = vmatpush.bf16.msra.mxu0 %v2247
    %4019 = vmatpush.bf16.msra.mxu0 %v2231
    %4020 = vmatpush.bf16.msra.mxu0 %v2215
    %4021 = vmatpush.bf16.msra.mxu0 %v2199
    %4022 = vmatpush.bf16.msra.mxu0 %v2183
    %4023 = vmatpush.bf16.msra.mxu0 %v2167
    %4024 = vmatmul.bf16.gmra.mxu0 %v604
    %v4025 = vpop.f32.mrf.mxu0
    %v4026 = vadd.f32 0.0, %v4025
    %v4027 = vpop.f32.mrf.mxu0
    %v4028 = vadd.f32 0.0, %v4027
    %4029 = vmatmul.bf16.gmra.mxu0 %v608
    %v4030 = vpop.f32.mrf.mxu0
    %v4031 = vadd.f32 0.0, %v4030
    %v4032 = vpop.f32.mrf.mxu0
    %v4033 = vadd.f32 0.0, %v4032
    %4034 = vdwg.mxu0
    %4035 = vmatpush.bf16.msra.mxu0 %v2407
    %4036 = vmatpush.bf16.msra.mxu0 %v2391
    %4037 = vmatpush.bf16.msra.mxu0 %v2375
    %4038 = vmatpush.bf16.msra.mxu0 %v2359
    %4039 = vmatpush.bf16.msra.mxu0 %v2343
    %4040 = vmatpush.bf16.msra.mxu0 %v2327
    %4041 = vmatpush.bf16.msra.mxu0 %v2311
    %4042 = vmatpush.bf16.msra.mxu0 %v2295
    %4043 = vmatmul.bf16.gmra.mxu0 %v605
    %v4044 = vpop.f32.mrf.mxu0
    %v4045 = vadd.f32 %v4026, %v4044
    %v4046 = vpop.f32.mrf.mxu0
    %v4047 = vadd.f32 %v4028, %v4046
    %4048 = vmatmul.bf16.gmra.mxu0 %v609
    %v4049 = vpop.f32.mrf.mxu0
    %v4050 = vadd.f32 %v4031, %v4049
    %v4051 = vpop.f32.mrf.mxu0
    %v4052 = vadd.f32 %v4033, %v4051
    %4053 = vdwg.mxu0
    %4054 = vmatpush.bf16.msra.mxu0 %v2535
    %4055 = vmatpush.bf16.msra.mxu0 %v2519
    %4056 = vmatpush.bf16.msra.mxu0 %v2503
    %4057 = vmatpush.bf16.msra.mxu0 %v2487
    %4058 = vmatpush.bf16.msra.mxu0 %v2471
    %4059 = vmatpush.bf16.msra.mxu0 %v2455
    %4060 = vmatpush.bf16.msra.mxu0 %v2439
    %4061 = vmatpush.bf16.msra.mxu0 %v2423
    %4062 = vmatmul.bf16.gmra.mxu0 %v606
    %v4063 = vpop.f32.mrf.mxu0
    %v4064 = vadd.f32 %v4045, %v4063
    %v4065 = vpop.f32.mrf.mxu0
    %v4066 = vadd.f32 %v4047, %v4065
    %4067 = vmatmul.bf16.gmra.mxu0 %v610
    %v4068 = vpop.f32.mrf.mxu0
    %v4069 = vadd.f32 %v4050, %v4068
    %v4070 = vpop.f32.mrf.mxu0
    %v4071 = vadd.f32 %v4052, %v4070
    %4072 = vdwg.mxu0
    %4073 = vmatpush.bf16.msra.mxu0 %v2663
    %4074 = vmatpush.bf16.msra.mxu0 %v2647
    %4075 = vmatpush.bf16.msra.mxu0 %v2631
    %4076 = vmatpush.bf16.msra.mxu0 %v2615
    %4077 = vmatpush.bf16.msra.mxu0 %v2599
    %4078 = vmatpush.bf16.msra.mxu0 %v2583
    %4079 = vmatpush.bf16.msra.mxu0 %v2567
    %4080 = vmatpush.bf16.msra.mxu0 %v2551
    %4081 = vmatmul.bf16.gmra.mxu0 %v607
    %v4082 = vpop.f32.mrf.mxu0
    %v4083 = vadd.f32 %v4064, %v4082
    %v4084 = vpop.f32.mrf.mxu0
    %v4085 = vadd.f32 %v4066, %v4084
    %4086 = vmatmul.bf16.gmra.mxu0 %v611
    %v4087 = vpop.f32.mrf.mxu0
    %v4088 = vadd.f32 %v4069, %v4087
    %v4089 = vpop.f32.mrf.mxu0
    %v4090 = vadd.f32 %v4071, %v4089
    %4091 = vdwg.mxu0
    %4092 = vmatpush.bf16.msra.mxu0 %v2280
    %4093 = vmatpush.bf16.msra.mxu0 %v2264
    %4094 = vmatpush.bf16.msra.mxu0 %v2248
    %4095 = vmatpush.bf16.msra.mxu0 %v2232
    %4096 = vmatpush.bf16.msra.mxu0 %v2216
    %4097 = vmatpush.bf16.msra.mxu0 %v2200
    %4098 = vmatpush.bf16.msra.mxu0 %v2184
    %4099 = vmatpush.bf16.msra.mxu0 %v2168
    %4100 = vmatmul.bf16.gmra.mxu0 %v604
    %v4101 = vpop.f32.mrf.mxu0
    %v4102 = vadd.f32 0.0, %v4101
    %v4103 = vpop.f32.mrf.mxu0
    %v4104 = vadd.f32 0.0, %v4103
    %4105 = vmatmul.bf16.gmra.mxu0 %v608
    %v4106 = vpop.f32.mrf.mxu0
    %v4107 = vadd.f32 0.0, %v4106
    %v4108 = vpop.f32.mrf.mxu0
    %v4109 = vadd.f32 0.0, %v4108
    %4110 = vdwg.mxu0
    %4111 = vmatpush.bf16.msra.mxu0 %v2408
    %4112 = vmatpush.bf16.msra.mxu0 %v2392
    %4113 = vmatpush.bf16.msra.mxu0 %v2376
    %4114 = vmatpush.bf16.msra.mxu0 %v2360
    %4115 = vmatpush.bf16.msra.mxu0 %v2344
    %4116 = vmatpush.bf16.msra.mxu0 %v2328
    %4117 = vmatpush.bf16.msra.mxu0 %v2312
    %4118 = vmatpush.bf16.msra.mxu0 %v2296
    %4119 = vmatmul.bf16.gmra.mxu0 %v605
    %v4120 = vpop.f32.mrf.mxu0
    %v4121 = vadd.f32 %v4102, %v4120
    %v4122 = vpop.f32.mrf.mxu0
    %v4123 = vadd.f32 %v4104, %v4122
    %4124 = vmatmul.bf16.gmra.mxu0 %v609
    %v4125 = vpop.f32.mrf.mxu0
    %v4126 = vadd.f32 %v4107, %v4125
    %v4127 = vpop.f32.mrf.mxu0
    %v4128 = vadd.f32 %v4109, %v4127
    %4129 = vdwg.mxu0
    %4130 = vmatpush.bf16.msra.mxu0 %v2536
    %4131 = vmatpush.bf16.msra.mxu0 %v2520
    %4132 = vmatpush.bf16.msra.mxu0 %v2504
    %4133 = vmatpush.bf16.msra.mxu0 %v2488
    %4134 = vmatpush.bf16.msra.mxu0 %v2472
    %4135 = vmatpush.bf16.msra.mxu0 %v2456
    %4136 = vmatpush.bf16.msra.mxu0 %v2440
    %4137 = vmatpush.bf16.msra.mxu0 %v2424
    %4138 = vmatmul.bf16.gmra.mxu0 %v606
    %v4139 = vpop.f32.mrf.mxu0
    %v4140 = vadd.f32 %v4121, %v4139
    %v4141 = vpop.f32.mrf.mxu0
    %v4142 = vadd.f32 %v4123, %v4141
    %4143 = vmatmul.bf16.gmra.mxu0 %v610
    %v4144 = vpop.f32.mrf.mxu0
    %v4145 = vadd.f32 %v4126, %v4144
    %v4146 = vpop.f32.mrf.mxu0
    %v4147 = vadd.f32 %v4128, %v4146
    %4148 = vdwg.mxu0
    %4149 = vmatpush.bf16.msra.mxu0 %v2664
    %4150 = vmatpush.bf16.msra.mxu0 %v2648
    %4151 = vmatpush.bf16.msra.mxu0 %v2632
    %4152 = vmatpush.bf16.msra.mxu0 %v2616
    %4153 = vmatpush.bf16.msra.mxu0 %v2600
    %4154 = vmatpush.bf16.msra.mxu0 %v2584
    %4155 = vmatpush.bf16.msra.mxu0 %v2568
    %4156 = vmatpush.bf16.msra.mxu0 %v2552
    %4157 = vmatmul.bf16.gmra.mxu0 %v607
    %v4158 = vpop.f32.mrf.mxu0
    %v4159 = vadd.f32 %v4140, %v4158
    %v4160 = vpop.f32.mrf.mxu0
    %v4161 = vadd.f32 %v4142, %v4160
    %4162 = vmatmul.bf16.gmra.mxu0 %v611
    %v4163 = vpop.f32.mrf.mxu0
    %v4164 = vadd.f32 %v4145, %v4163
    %v4165 = vpop.f32.mrf.mxu0
    %v4166 = vadd.f32 %v4147, %v4165
    %4167 = vdwg.mxu0
    %4168 = vmatpush.bf16.msra.mxu0 %v2281
    %4169 = vmatpush.bf16.msra.mxu0 %v2265
    %4170 = vmatpush.bf16.msra.mxu0 %v2249
    %4171 = vmatpush.bf16.msra.mxu0 %v2233
    %4172 = vmatpush.bf16.msra.mxu0 %v2217
    %4173 = vmatpush.bf16.msra.mxu0 %v2201
    %4174 = vmatpush.bf16.msra.mxu0 %v2185
    %4175 = vmatpush.bf16.msra.mxu0 %v2169
    %4176 = vmatmul.bf16.gmra.mxu0 %v604
    %v4177 = vpop.f32.mrf.mxu0
    %v4178 = vadd.f32 0.0, %v4177
    %v4179 = vpop.f32.mrf.mxu0
    %v4180 = vadd.f32 0.0, %v4179
    %4181 = vmatmul.bf16.gmra.mxu0 %v608
    %v4182 = vpop.f32.mrf.mxu0
    %v4183 = vadd.f32 0.0, %v4182
    %v4184 = vpop.f32.mrf.mxu0
    %v4185 = vadd.f32 0.0, %v4184
    %4186 = vdwg.mxu0
    %4187 = vmatpush.bf16.msra.mxu0 %v2409
    %4188 = vmatpush.bf16.msra.mxu0 %v2393
    %4189 = vmatpush.bf16.msra.mxu0 %v2377
    %4190 = vmatpush.bf16.msra.mxu0 %v2361
    %4191 = vmatpush.bf16.msra.mxu0 %v2345
    %4192 = vmatpush.bf16.msra.mxu0 %v2329
    %4193 = vmatpush.bf16.msra.mxu0 %v2313
    %4194 = vmatpush.bf16.msra.mxu0 %v2297
    %4195 = vmatmul.bf16.gmra.mxu0 %v605
    %v4196 = vpop.f32.mrf.mxu0
    %v4197 = vadd.f32 %v4178, %v4196
    %v4198 = vpop.f32.mrf.mxu0
    %v4199 = vadd.f32 %v4180, %v4198
    %4200 = vmatmul.bf16.gmra.mxu0 %v609
    %v4201 = vpop.f32.mrf.mxu0
    %v4202 = vadd.f32 %v4183, %v4201
    %v4203 = vpop.f32.mrf.mxu0
    %v4204 = vadd.f32 %v4185, %v4203
    %4205 = vdwg.mxu0
    %4206 = vmatpush.bf16.msra.mxu0 %v2537
    %4207 = vmatpush.bf16.msra.mxu0 %v2521
    %4208 = vmatpush.bf16.msra.mxu0 %v2505
    %4209 = vmatpush.bf16.msra.mxu0 %v2489
    %4210 = vmatpush.bf16.msra.mxu0 %v2473
    %4211 = vmatpush.bf16.msra.mxu0 %v2457
    %4212 = vmatpush.bf16.msra.mxu0 %v2441
    %4213 = vmatpush.bf16.msra.mxu0 %v2425
    %4214 = vmatmul.bf16.gmra.mxu0 %v606
    %v4215 = vpop.f32.mrf.mxu0
    %v4216 = vadd.f32 %v4197, %v4215
    %v4217 = vpop.f32.mrf.mxu0
    %v4218 = vadd.f32 %v4199, %v4217
    %4219 = vmatmul.bf16.gmra.mxu0 %v610
    %v4220 = vpop.f32.mrf.mxu0
    %v4221 = vadd.f32 %v4202, %v4220
    %v4222 = vpop.f32.mrf.mxu0
    %v4223 = vadd.f32 %v4204, %v4222
    %4224 = vdwg.mxu0
    %4225 = vmatpush.bf16.msra.mxu0 %v2665
    %4226 = vmatpush.bf16.msra.mxu0 %v2649
    %4227 = vmatpush.bf16.msra.mxu0 %v2633
    %4228 = vmatpush.bf16.msra.mxu0 %v2617
    %4229 = vmatpush.bf16.msra.mxu0 %v2601
    %4230 = vmatpush.bf16.msra.mxu0 %v2585
    %4231 = vmatpush.bf16.msra.mxu0 %v2569
    %4232 = vmatpush.bf16.msra.mxu0 %v2553
    %4233 = vmatmul.bf16.gmra.mxu0 %v607
    %v4234 = vpop.f32.mrf.mxu0
    %v4235 = vadd.f32 %v4216, %v4234
    %v4236 = vpop.f32.mrf.mxu0
    %v4237 = vadd.f32 %v4218, %v4236
    %4238 = vmatmul.bf16.gmra.mxu0 %v611
    %v4239 = vpop.f32.mrf.mxu0
    %v4240 = vadd.f32 %v4221, %v4239
    %v4241 = vpop.f32.mrf.mxu0
    %v4242 = vadd.f32 %v4223, %v4241
    %4243 = vdwg.mxu0
    %4244 = vmatpush.bf16.msra.mxu0 %v2282
    %4245 = vmatpush.bf16.msra.mxu0 %v2266
    %4246 = vmatpush.bf16.msra.mxu0 %v2250
    %4247 = vmatpush.bf16.msra.mxu0 %v2234
    %4248 = vmatpush.bf16.msra.mxu0 %v2218
    %4249 = vmatpush.bf16.msra.mxu0 %v2202
    %4250 = vmatpush.bf16.msra.mxu0 %v2186
    %4251 = vmatpush.bf16.msra.mxu0 %v2170
    %4252 = vmatmul.bf16.gmra.mxu0 %v604
    %v4253 = vpop.f32.mrf.mxu0
    %v4254 = vadd.f32 0.0, %v4253
    %v4255 = vpop.f32.mrf.mxu0
    %v4256 = vadd.f32 0.0, %v4255
    %4257 = vmatmul.bf16.gmra.mxu0 %v608
    %v4258 = vpop.f32.mrf.mxu0
    %v4259 = vadd.f32 0.0, %v4258
    %v4260 = vpop.f32.mrf.mxu0
    %v4261 = vadd.f32 0.0, %v4260
    %4262 = vdwg.mxu0
    %4263 = vmatpush.bf16.msra.mxu0 %v2410
    %4264 = vmatpush.bf16.msra.mxu0 %v2394
    %4265 = vmatpush.bf16.msra.mxu0 %v2378
    %4266 = vmatpush.bf16.msra.mxu0 %v2362
    %4267 = vmatpush.bf16.msra.mxu0 %v2346
    %4268 = vmatpush.bf16.msra.mxu0 %v2330
    %4269 = vmatpush.bf16.msra.mxu0 %v2314
    %4270 = vmatpush.bf16.msra.mxu0 %v2298
    %4271 = vmatmul.bf16.gmra.mxu0 %v605
    %v4272 = vpop.f32.mrf.mxu0
    %v4273 = vadd.f32 %v4254, %v4272
    %v4274 = vpop.f32.mrf.mxu0
    %v4275 = vadd.f32 %v4256, %v4274
    %4276 = vmatmul.bf16.gmra.mxu0 %v609
    %v4277 = vpop.f32.mrf.mxu0
    %v4278 = vadd.f32 %v4259, %v4277
    %v4279 = vpop.f32.mrf.mxu0
    %v4280 = vadd.f32 %v4261, %v4279
    %4281 = vdwg.mxu0
    %4282 = vmatpush.bf16.msra.mxu0 %v2538
    %4283 = vmatpush.bf16.msra.mxu0 %v2522
    %4284 = vmatpush.bf16.msra.mxu0 %v2506
    %4285 = vmatpush.bf16.msra.mxu0 %v2490
    %4286 = vmatpush.bf16.msra.mxu0 %v2474
    %4287 = vmatpush.bf16.msra.mxu0 %v2458
    %4288 = vmatpush.bf16.msra.mxu0 %v2442
    %4289 = vmatpush.bf16.msra.mxu0 %v2426
    %4290 = vmatmul.bf16.gmra.mxu0 %v606
    %v4291 = vpop.f32.mrf.mxu0
    %v4292 = vadd.f32 %v4273, %v4291
    %v4293 = vpop.f32.mrf.mxu0
    %v4294 = vadd.f32 %v4275, %v4293
    %4295 = vmatmul.bf16.gmra.mxu0 %v610
    %v4296 = vpop.f32.mrf.mxu0
    %v4297 = vadd.f32 %v4278, %v4296
    %v4298 = vpop.f32.mrf.mxu0
    %v4299 = vadd.f32 %v4280, %v4298
    %4300 = vdwg.mxu0
    %4301 = vmatpush.bf16.msra.mxu0 %v2666
    %4302 = vmatpush.bf16.msra.mxu0 %v2650
    %4303 = vmatpush.bf16.msra.mxu0 %v2634
    %4304 = vmatpush.bf16.msra.mxu0 %v2618
    %4305 = vmatpush.bf16.msra.mxu0 %v2602
    %4306 = vmatpush.bf16.msra.mxu0 %v2586
    %4307 = vmatpush.bf16.msra.mxu0 %v2570
    %4308 = vmatpush.bf16.msra.mxu0 %v2554
    %4309 = vmatmul.bf16.gmra.mxu0 %v607
    %v4310 = vpop.f32.mrf.mxu0
    %v4311 = vadd.f32 %v4292, %v4310
    %v4312 = vpop.f32.mrf.mxu0
    %v4313 = vadd.f32 %v4294, %v4312
    %4314 = vmatmul.bf16.gmra.mxu0 %v611
    %v4315 = vpop.f32.mrf.mxu0
    %v4316 = vadd.f32 %v4297, %v4315
    %v4317 = vpop.f32.mrf.mxu0
    %v4318 = vadd.f32 %v4299, %v4317
    %4319 = vdwg.mxu0
    %4320 = vmatpush.bf16.msra.mxu0 %v2283
    %4321 = vmatpush.bf16.msra.mxu0 %v2267
    %4322 = vmatpush.bf16.msra.mxu0 %v2251
    %4323 = vmatpush.bf16.msra.mxu0 %v2235
    %4324 = vmatpush.bf16.msra.mxu0 %v2219
    %4325 = vmatpush.bf16.msra.mxu0 %v2203
    %4326 = vmatpush.bf16.msra.mxu0 %v2187
    %4327 = vmatpush.bf16.msra.mxu0 %v2171
    %4328 = vmatmul.bf16.gmra.mxu0 %v604
    %v4329 = vpop.f32.mrf.mxu0
    %v4330 = vadd.f32 0.0, %v4329
    %v4331 = vpop.f32.mrf.mxu0
    %v4332 = vadd.f32 0.0, %v4331
    %4333 = vmatmul.bf16.gmra.mxu0 %v608
    %v4334 = vpop.f32.mrf.mxu0
    %v4335 = vadd.f32 0.0, %v4334
    %v4336 = vpop.f32.mrf.mxu0
    %v4337 = vadd.f32 0.0, %v4336
    %4338 = vdwg.mxu0
    %4339 = vmatpush.bf16.msra.mxu0 %v2411
    %4340 = vmatpush.bf16.msra.mxu0 %v2395
    %4341 = vmatpush.bf16.msra.mxu0 %v2379
    %4342 = vmatpush.bf16.msra.mxu0 %v2363
    %4343 = vmatpush.bf16.msra.mxu0 %v2347
    %4344 = vmatpush.bf16.msra.mxu0 %v2331
    %4345 = vmatpush.bf16.msra.mxu0 %v2315
    %4346 = vmatpush.bf16.msra.mxu0 %v2299
    %4347 = vmatmul.bf16.gmra.mxu0 %v605
    %v4348 = vpop.f32.mrf.mxu0
    %v4349 = vadd.f32 %v4330, %v4348
    %v4350 = vpop.f32.mrf.mxu0
    %v4351 = vadd.f32 %v4332, %v4350
    %4352 = vmatmul.bf16.gmra.mxu0 %v609
    %v4353 = vpop.f32.mrf.mxu0
    %v4354 = vadd.f32 %v4335, %v4353
    %v4355 = vpop.f32.mrf.mxu0
    %v4356 = vadd.f32 %v4337, %v4355
    %4357 = vdwg.mxu0
    %4358 = vmatpush.bf16.msra.mxu0 %v2539
    %4359 = vmatpush.bf16.msra.mxu0 %v2523
    %4360 = vmatpush.bf16.msra.mxu0 %v2507
    %4361 = vmatpush.bf16.msra.mxu0 %v2491
    %4362 = vmatpush.bf16.msra.mxu0 %v2475
    %4363 = vmatpush.bf16.msra.mxu0 %v2459
    %4364 = vmatpush.bf16.msra.mxu0 %v2443
    %4365 = vmatpush.bf16.msra.mxu0 %v2427
    %4366 = vmatmul.bf16.gmra.mxu0 %v606
    %v4367 = vpop.f32.mrf.mxu0
    %v4368 = vadd.f32 %v4349, %v4367
    %v4369 = vpop.f32.mrf.mxu0
    %v4370 = vadd.f32 %v4351, %v4369
    %4371 = vmatmul.bf16.gmra.mxu0 %v610
    %v4372 = vpop.f32.mrf.mxu0
    %v4373 = vadd.f32 %v4354, %v4372
    %v4374 = vpop.f32.mrf.mxu0
    %v4375 = vadd.f32 %v4356, %v4374
    %4376 = vdwg.mxu0
    %4377 = vmatpush.bf16.msra.mxu0 %v2667
    %4378 = vmatpush.bf16.msra.mxu0 %v2651
    %4379 = vmatpush.bf16.msra.mxu0 %v2635
    %4380 = vmatpush.bf16.msra.mxu0 %v2619
    %4381 = vmatpush.bf16.msra.mxu0 %v2603
    %4382 = vmatpush.bf16.msra.mxu0 %v2587
    %4383 = vmatpush.bf16.msra.mxu0 %v2571
    %4384 = vmatpush.bf16.msra.mxu0 %v2555
    %4385 = vmatmul.bf16.gmra.mxu0 %v607
    %v4386 = vpop.f32.mrf.mxu0
    %v4387 = vadd.f32 %v4368, %v4386
    %v4388 = vpop.f32.mrf.mxu0
    %v4389 = vadd.f32 %v4370, %v4388
    %4390 = vmatmul.bf16.gmra.mxu0 %v611
    %v4391 = vpop.f32.mrf.mxu0
    %v4392 = vadd.f32 %v4373, %v4391
    %v4393 = vpop.f32.mrf.mxu0
    %v4394 = vadd.f32 %v4375, %v4393
    %4395 = vdwg.mxu0
    %4396 = vst [vmem:[#allocation2] sm:$0xff] %v3247
    %4397 = vst [vmem:[#allocation2 + $0x8] sm:$0xff] %v3323
    %4398 = vst [vmem:[#allocation2 + $0x10] sm:$0xff] %v3399
    %4399 = vst [vmem:[#allocation2 + $0x18] sm:$0xff] %v3475
    %4400 = vst [vmem:[#allocation2 + $0x20] sm:$0xff] %v3551
    %4401 = vst [vmem:[#allocation2 + $0x28] sm:$0xff] %v3627
    %4402 = vst [vmem:[#allocation2 + $0x30] sm:$0xff] %v3703
    %4403 = vst [vmem:[#allocation2 + $0x38] sm:$0xff] %v3779
    %4404 = vst [vmem:[#allocation2 + $0x40] sm:$0xff] %v3855
    %4405 = vst [vmem:[#allocation2 + $0x48] sm:$0xff] %v3931
    %4406 = vst [vmem:[#allocation2 + $0x50] sm:$0xff] %v4007
    %4407 = vst [vmem:[#allocation2 + $0x58] sm:$0xff] %v4083
    %4408 = vst [vmem:[#allocation2 + $0x60] sm:$0xff] %v4159
    %4409 = vst [vmem:[#allocation2 + $0x68] sm:$0xff] %v4235
    %4410 = vst [vmem:[#allocation2 + $0x70] sm:$0xff] %v4311
    %4411 = vst [vmem:[#allocation2 + $0x78] sm:$0xff] %v4387
    %4412 = vst [vmem:[#allocation2 + $0x80] sm:$0xff] %v3249
    %4413 = vst [vmem:[#allocation2 + $0x88] sm:$0xff] %v3325
    %4414 = vst [vmem:[#allocation2 + $0x90] sm:$0xff] %v3401
    %4415 = vst [vmem:[#allocation2 + $0x98] sm:$0xff] %v3477
    %4416 = vst [vmem:[#allocation2 + $0xa0] sm:$0xff] %v3553
    %4417 = vst [vmem:[#allocation2 + $0xa8] sm:$0xff] %v3629
    %4418 = vst [vmem:[#allocation2 + $0xb0] sm:$0xff] %v3705
    %4419 = vst [vmem:[#allocation2 + $0xb8] sm:$0xff] %v3781
    %4420 = vst [vmem:[#allocation2 + $0xc0] sm:$0xff] %v3857
    %4421 = vst [vmem:[#allocation2 + $0xc8] sm:$0xff] %v3933
    %4422 = vst [vmem:[#allocation2 + $0xd0] sm:$0xff] %v4009
    %4423 = vst [vmem:[#allocation2 + $0xd8] sm:$0xff] %v4085
    %4424 = vst [vmem:[#allocation2 + $0xe0] sm:$0xff] %v4161
    %4425 = vst [vmem:[#allocation2 + $0xe8] sm:$0xff] %v4237
    %4426 = vst [vmem:[#allocation2 + $0xf0] sm:$0xff] %v4313
    %4427 = vst [vmem:[#allocation2 + $0xf8] sm:$0xff] %v4389
    %4428 = vst [vmem:[#allocation2 + $0x100] sm:$0xff] %v3252
    %4429 = vst [vmem:[#allocation2 + $0x108] sm:$0xff] %v3328
    %4430 = vst [vmem:[#allocation2 + $0x110] sm:$0xff] %v3404
    %4431 = vst [vmem:[#allocation2 + $0x118] sm:$0xff] %v3480
    %4432 = vst [vmem:[#allocation2 + $0x120] sm:$0xff] %v3556
    %4433 = vst [vmem:[#allocation2 + $0x128] sm:$0xff] %v3632
    %4434 = vst [vmem:[#allocation2 + $0x130] sm:$0xff] %v3708
    %4435 = vst [vmem:[#allocation2 + $0x138] sm:$0xff] %v3784
    %4436 = vst [vmem:[#allocation2 + $0x140] sm:$0xff] %v3860
    %4437 = vst [vmem:[#allocation2 + $0x148] sm:$0xff] %v3936
    %4438 = vst [vmem:[#allocation2 + $0x150] sm:$0xff] %v4012
    %4439 = vst [vmem:[#allocation2 + $0x158] sm:$0xff] %v4088
    %4440 = vst [vmem:[#allocation2 + $0x160] sm:$0xff] %v4164
    %4441 = vst [vmem:[#allocation2 + $0x168] sm:$0xff] %v4240
    %4442 = vst [vmem:[#allocation2 + $0x170] sm:$0xff] %v4316
    %4443 = vst [vmem:[#allocation2 + $0x178] sm:$0xff] %v4392
    %4444 = vst [vmem:[#allocation2 + $0x180] sm:$0xff] %v3254
    %4445 = vst [vmem:[#allocation2 + $0x188] sm:$0xff] %v3330
    %4446 = vst [vmem:[#allocation2 + $0x190] sm:$0xff] %v3406
    %4447 = vst [vmem:[#allocation2 + $0x198] sm:$0xff] %v3482
    %4448 = vst [vmem:[#allocation2 + $0x1a0] sm:$0xff] %v3558
    %4449 = vst [vmem:[#allocation2 + $0x1a8] sm:$0xff] %v3634
    %4450 = vst [vmem:[#allocation2 + $0x1b0] sm:$0xff] %v3710
    %4451 = vst [vmem:[#allocation2 + $0x1b8] sm:$0xff] %v3786
    %4452 = vst [vmem:[#allocation2 + $0x1c0] sm:$0xff] %v3862
    %4453 = vst [vmem:[#allocation2 + $0x1c8] sm:$0xff] %v3938
    %4454 = vst [vmem:[#allocation2 + $0x1d0] sm:$0xff] %v4014
    %4455 = vst [vmem:[#allocation2 + $0x1d8] sm:$0xff] %v4090
    %4456 = vst [vmem:[#allocation2 + $0x1e0] sm:$0xff] %v4166
    %4457 = vst [vmem:[#allocation2 + $0x1e8] sm:$0xff] %v4242
    %4458 = vst [vmem:[#allocation2 + $0x1f0] sm:$0xff] %v4318
    %4459 = vst [vmem:[#allocation2 + $0x1f8] sm:$0xff] %v4394
    %v4460 = vld [vmem:[#allocation2] sm:$0xff]
    %v4461 = vld [vmem:[#allocation2 + $0x8] sm:$0xff]
    %v4462 = vld [vmem:[#allocation2 + $0x10] sm:$0xff]
    %v4463 = vld [vmem:[#allocation2 + $0x18] sm:$0xff]
    %v4464 = vld [vmem:[#allocation2 + $0x80] sm:$0xff]
    %v4465 = vld [vmem:[#allocation2 + $0x88] sm:$0xff]
    %v4466 = vld [vmem:[#allocation2 + $0x90] sm:$0xff]
    %v4467 = vld [vmem:[#allocation2 + $0x98] sm:$0xff]
    %v4468 = vld [vmem:[#allocation2 + $0x100] sm:$0xff]
    %v4469 = vld [vmem:[#allocation2 + $0x108] sm:$0xff]
    %v4470 = vld [vmem:[#allocation2 + $0x110] sm:$0xff]
    %v4471 = vld [vmem:[#allocation2 + $0x118] sm:$0xff]
    %v4472 = vld [vmem:[#allocation2 + $0x180] sm:$0xff]
    %v4473 = vld [vmem:[#allocation2 + $0x188] sm:$0xff]
    %v4474 = vld [vmem:[#allocation2 + $0x190] sm:$0xff]
    %v4475 = vld [vmem:[#allocation2 + $0x198] sm:$0xff]
    %v4476 = vadd.f32 %v4460, %v4464
    %v4477 = vadd.f32 %v4476, %v4468
    %v4478 = vadd.f32 %v4477, %v4472
    %v4479 = vrot.slane %v4478, 4
    %v4480 = vadd.f32 %v4478, %v4479
    %v4481 = vrot.slane %v4480, 2
    %v4482 = vadd.f32 %v4480, %v4481
    %v4483 = vrot.slane %v4482, 1
    %v4484 = vadd.f32 %v4482, %v4483
    %v4485 = vadd.f32 %v4461, %v4465
    %v4486 = vadd.f32 %v4485, %v4469
    %v4487 = vadd.f32 %v4486, %v4473
    %v4488 = vrot.slane %v4487, 4
    %v4489 = vadd.f32 %v4487, %v4488
    %v4490 = vrot.slane %v4489, 2
    %v4491 = vadd.f32 %v4489, %v4490
    %v4492 = vrot.slane %v4491, 1
    %v4493 = vadd.f32 %v4491, %v4492
    %v4494 = vadd.f32 %v4462, %v4466
    %v4495 = vadd.f32 %v4494, %v4470
    %v4496 = vadd.f32 %v4495, %v4474
    %v4497 = vrot.slane %v4496, 4
    %v4498 = vadd.f32 %v4496, %v4497
    %v4499 = vrot.slane %v4498, 2
    %v4500 = vadd.f32 %v4498, %v4499
    %v4501 = vrot.slane %v4500, 1
    %v4502 = vadd.f32 %v4500, %v4501
    %v4503 = vadd.f32 %v4463, %v4467
    %v4504 = vadd.f32 %v4503, %v4471
    %v4505 = vadd.f32 %v4504, %v4475
    %v4506 = vrot.slane %v4505, 4
    %v4507 = vadd.f32 %v4505, %v4506
    %v4508 = vrot.slane %v4507, 2
    %v4509 = vadd.f32 %v4507, %v4508
    %v4510 = vrot.slane %v4509, 1
    %v4511 = vadd.f32 %v4509, %v4510
    %v4512 = vadd.f32 %v4484, 0.0
    %v4513 = vadd.f32 %v4493, 0.0
    %v4514 = vadd.f32 %v4502, 0.0
    %v4515 = vadd.f32 %v4511, 0.0
    %v4516 = vmul.f32 %v4460, %v4460
    %v4517 = vmul.f32 %v4461, %v4461
    %v4518 = vmul.f32 %v4462, %v4462
    %v4519 = vmul.f32 %v4463, %v4463
    %v4520 = vmul.f32 %v4464, %v4464
    %v4521 = vmul.f32 %v4465, %v4465
    %v4522 = vmul.f32 %v4466, %v4466
    %v4523 = vmul.f32 %v4467, %v4467
    %v4524 = vmul.f32 %v4468, %v4468
    %v4525 = vmul.f32 %v4469, %v4469
    %v4526 = vmul.f32 %v4470, %v4470
    %v4527 = vmul.f32 %v4471, %v4471
    %v4528 = vmul.f32 %v4472, %v4472
    %v4529 = vmul.f32 %v4473, %v4473
    %v4530 = vmul.f32 %v4474, %v4474
    %v4531 = vmul.f32 %v4475, %v4475
    %v4532 = vadd.f32 %v4516, %v4520
    %v4533 = vadd.f32 %v4532, %v4524
    %v4534 = vadd.f32 %v4533, %v4528
    %v4535 = vrot.slane %v4534, 4
    %v4536 = vadd.f32 %v4534, %v4535
    %v4537 = vrot.slane %v4536, 2
    %v4538 = vadd.f32 %v4536, %v4537
    %v4539 = vrot.slane %v4538, 1
    %v4540 = vadd.f32 %v4538, %v4539
    %v4541 = vadd.f32 %v4517, %v4521
    %v4542 = vadd.f32 %v4541, %v4525
    %v4543 = vadd.f32 %v4542, %v4529
    %v4544 = vrot.slane %v4543, 4
    %v4545 = vadd.f32 %v4543, %v4544
    %v4546 = vrot.slane %v4545, 2
    %v4547 = vadd.f32 %v4545, %v4546
    %v4548 = vrot.slane %v4547, 1
    %v4549 = vadd.f32 %v4547, %v4548
    %v4550 = vadd.f32 %v4518, %v4522
    %v4551 = vadd.f32 %v4550, %v4526
    %v4552 = vadd.f32 %v4551, %v4530
    %v4553 = vrot.slane %v4552, 4
    %v4554 = vadd.f32 %v4552, %v4553
    %v4555 = vrot.slane %v4554, 2
    %v4556 = vadd.f32 %v4554, %v4555
    %v4557 = vrot.slane %v4556, 1
    %v4558 = vadd.f32 %v4556, %v4557
    %v4559 = vadd.f32 %v4519, %v4523
    %v4560 = vadd.f32 %v4559, %v4527
    %v4561 = vadd.f32 %v4560, %v4531
    %v4562 = vrot.slane %v4561, 4
    %v4563 = vadd.f32 %v4561, %v4562
    %v4564 = vrot.slane %v4563, 2
    %v4565 = vadd.f32 %v4563, %v4564
    %v4566 = vrot.slane %v4565, 1
    %v4567 = vadd.f32 %v4565, %v4566
    %v4568 = vadd.f32 %v4540, 0.0
    %v4569 = vadd.f32 %v4549, 0.0
    %v4570 = vadd.f32 %v4558, 0.0
    %v4571 = vadd.f32 %v4567, 0.0
    %v4572 = vld [vmem:[#allocation2 + $0x20] sm:$0xff]
    %v4573 = vld [vmem:[#allocation2 + $0x28] sm:$0xff]
    %v4574 = vld [vmem:[#allocation2 + $0x30] sm:$0xff]
    %v4575 = vld [vmem:[#allocation2 + $0x38] sm:$0xff]
    %v4576 = vld [vmem:[#allocation2 + $0xa0] sm:$0xff]
    %v4577 = vld [vmem:[#allocation2 + $0xa8] sm:$0xff]
    %v4578 = vld [vmem:[#allocation2 + $0xb0] sm:$0xff]
    %v4579 = vld [vmem:[#allocation2 + $0xb8] sm:$0xff]
    %v4580 = vld [vmem:[#allocation2 + $0x120] sm:$0xff]
    %v4581 = vld [vmem:[#allocation2 + $0x128] sm:$0xff]
    %v4582 = vld [vmem:[#allocation2 + $0x130] sm:$0xff]
    %v4583 = vld [vmem:[#allocation2 + $0x138] sm:$0xff]
    %v4584 = vld [vmem:[#allocation2 + $0x1a0] sm:$0xff]
    %v4585 = vld [vmem:[#allocation2 + $0x1a8] sm:$0xff]
    %v4586 = vld [vmem:[#allocation2 + $0x1b0] sm:$0xff]
    %v4587 = vld [vmem:[#allocation2 + $0x1b8] sm:$0xff]
    %v4588 = vadd.f32 %v4572, %v4576
    %v4589 = vadd.f32 %v4588, %v4580
    %v4590 = vadd.f32 %v4589, %v4584
    %v4591 = vrot.slane %v4590, 4
    %v4592 = vadd.f32 %v4590, %v4591
    %v4593 = vrot.slane %v4592, 2
    %v4594 = vadd.f32 %v4592, %v4593
    %v4595 = vrot.slane %v4594, 1
    %v4596 = vadd.f32 %v4594, %v4595
    %v4597 = vadd.f32 %v4573, %v4577
    %v4598 = vadd.f32 %v4597, %v4581
    %v4599 = vadd.f32 %v4598, %v4585
    %v4600 = vrot.slane %v4599, 4
    %v4601 = vadd.f32 %v4599, %v4600
    %v4602 = vrot.slane %v4601, 2
    %v4603 = vadd.f32 %v4601, %v4602
    %v4604 = vrot.slane %v4603, 1
    %v4605 = vadd.f32 %v4603, %v4604
    %v4606 = vadd.f32 %v4574, %v4578
    %v4607 = vadd.f32 %v4606, %v4582
    %v4608 = vadd.f32 %v4607, %v4586
    %v4609 = vrot.slane %v4608, 4
    %v4610 = vadd.f32 %v4608, %v4609
    %v4611 = vrot.slane %v4610, 2
    %v4612 = vadd.f32 %v4610, %v4611
    %v4613 = vrot.slane %v4612, 1
    %v4614 = vadd.f32 %v4612, %v4613
    %v4615 = vadd.f32 %v4575, %v4579
    %v4616 = vadd.f32 %v4615, %v4583
    %v4617 = vadd.f32 %v4616, %v4587
    %v4618 = vrot.slane %v4617, 4
    %v4619 = vadd.f32 %v4617, %v4618
    %v4620 = vrot.slane %v4619, 2
    %v4621 = vadd.f32 %v4619, %v4620
    %v4622 = vrot.slane %v4621, 1
    %v4623 = vadd.f32 %v4621, %v4622
    %v4624 = vadd.f32 %v4512, %v4596
    %v4625 = vadd.f32 %v4513, %v4605
    %v4626 = vadd.f32 %v4514, %v4614
    %v4627 = vadd.f32 %v4515, %v4623
    %v4628 = vmul.f32 %v4572, %v4572
    %v4629 = vmul.f32 %v4573, %v4573
    %v4630 = vmul.f32 %v4574, %v4574
    %v4631 = vmul.f32 %v4575, %v4575
    %v4632 = vmul.f32 %v4576, %v4576
    %v4633 = vmul.f32 %v4577, %v4577
    %v4634 = vmul.f32 %v4578, %v4578
    %v4635 = vmul.f32 %v4579, %v4579
    %v4636 = vmul.f32 %v4580, %v4580
    %v4637 = vmul.f32 %v4581, %v4581
    %v4638 = vmul.f32 %v4582, %v4582
    %v4639 = vmul.f32 %v4583, %v4583
    %v4640 = vmul.f32 %v4584, %v4584
    %v4641 = vmul.f32 %v4585, %v4585
    %v4642 = vmul.f32 %v4586, %v4586
    %v4643 = vmul.f32 %v4587, %v4587
    %v4644 = vadd.f32 %v4628, %v4632
    %v4645 = vadd.f32 %v4644, %v4636
    %v4646 = vadd.f32 %v4645, %v4640
    %v4647 = vrot.slane %v4646, 4
    %v4648 = vadd.f32 %v4646, %v4647
    %v4649 = vrot.slane %v4648, 2
    %v4650 = vadd.f32 %v4648, %v4649
    %v4651 = vrot.slane %v4650, 1
    %v4652 = vadd.f32 %v4650, %v4651
    %v4653 = vadd.f32 %v4629, %v4633
    %v4654 = vadd.f32 %v4653, %v4637
    %v4655 = vadd.f32 %v4654, %v4641
    %v4656 = vrot.slane %v4655, 4
    %v4657 = vadd.f32 %v4655, %v4656
    %v4658 = vrot.slane %v4657, 2
    %v4659 = vadd.f32 %v4657, %v4658
    %v4660 = vrot.slane %v4659, 1
    %v4661 = vadd.f32 %v4659, %v4660
    %v4662 = vadd.f32 %v4630, %v4634
    %v4663 = vadd.f32 %v4662, %v4638
    %v4664 = vadd.f32 %v4663, %v4642
    %v4665 = vrot.slane %v4664, 4
    %v4666 = vadd.f32 %v4664, %v4665
    %v4667 = vrot.slane %v4666, 2
    %v4668 = vadd.f32 %v4666, %v4667
    %v4669 = vrot.slane %v4668, 1
    %v4670 = vadd.f32 %v4668, %v4669
    %v4671 = vadd.f32 %v4631, %v4635
    %v4672 = vadd.f32 %v4671, %v4639
    %v4673 = vadd.f32 %v4672, %v4643
    %v4674 = vrot.slane %v4673, 4
    %v4675 = vadd.f32 %v4673, %v4674
    %v4676 = vrot.slane %v4675, 2
    %v4677 = vadd.f32 %v4675, %v4676
    %v4678 = vrot.slane %v4677, 1
    %v4679 = vadd.f32 %v4677, %v4678
    %v4680 = vadd.f32 %v4568, %v4652
    %v4681 = vadd.f32 %v4569, %v4661
    %v4682 = vadd.f32 %v4570, %v4670
    %v4683 = vadd.f32 %v4571, %v4679
    %v4684 = vld [vmem:[#allocation2 + $0x40] sm:$0xff]
    %v4685 = vld [vmem:[#allocation2 + $0x48] sm:$0xff]
    %v4686 = vld [vmem:[#allocation2 + $0x50] sm:$0xff]
    %v4687 = vld [vmem:[#allocation2 + $0x58] sm:$0xff]
    %v4688 = vld [vmem:[#allocation2 + $0xc0] sm:$0xff]
    %v4689 = vld [vmem:[#allocation2 + $0xc8] sm:$0xff]
    %v4690 = vld [vmem:[#allocation2 + $0xd0] sm:$0xff]
    %v4691 = vld [vmem:[#allocation2 + $0xd8] sm:$0xff]
    %v4692 = vld [vmem:[#allocation2 + $0x140] sm:$0xff]
    %v4693 = vld [vmem:[#allocation2 + $0x148] sm:$0xff]
    %v4694 = vld [vmem:[#allocation2 + $0x150] sm:$0xff]
    %v4695 = vld [vmem:[#allocation2 + $0x158] sm:$0xff]
    %v4696 = vld [vmem:[#allocation2 + $0x1c0] sm:$0xff]
    %v4697 = vld [vmem:[#allocation2 + $0x1c8] sm:$0xff]
    %v4698 = vld [vmem:[#allocation2 + $0x1d0] sm:$0xff]
    %v4699 = vld [vmem:[#allocation2 + $0x1d8] sm:$0xff]
    %v4700 = vadd.f32 %v4684, %v4688
    %v4701 = vadd.f32 %v4700, %v4692
    %v4702 = vadd.f32 %v4701, %v4696
    %v4703 = vrot.slane %v4702, 4
    %v4704 = vadd.f32 %v4702, %v4703
    %v4705 = vrot.slane %v4704, 2
    %v4706 = vadd.f32 %v4704, %v4705
    %v4707 = vrot.slane %v4706, 1
    %v4708 = vadd.f32 %v4706, %v4707
    %v4709 = vadd.f32 %v4685, %v4689
    %v4710 = vadd.f32 %v4709, %v4693
    %v4711 = vadd.f32 %v4710, %v4697
    %v4712 = vrot.slane %v4711, 4
    %v4713 = vadd.f32 %v4711, %v4712
    %v4714 = vrot.slane %v4713, 2
    %v4715 = vadd.f32 %v4713, %v4714
    %v4716 = vrot.slane %v4715, 1
    %v4717 = vadd.f32 %v4715, %v4716
    %v4718 = vadd.f32 %v4686, %v4690
    %v4719 = vadd.f32 %v4718, %v4694
    %v4720 = vadd.f32 %v4719, %v4698
    %v4721 = vrot.slane %v4720, 4
    %v4722 = vadd.f32 %v4720, %v4721
    %v4723 = vrot.slane %v4722, 2
    %v4724 = vadd.f32 %v4722, %v4723
    %v4725 = vrot.slane %v4724, 1
    %v4726 = vadd.f32 %v4724, %v4725
    %v4727 = vadd.f32 %v4687, %v4691
    %v4728 = vadd.f32 %v4727, %v4695
    %v4729 = vadd.f32 %v4728, %v4699
    %v4730 = vrot.slane %v4729, 4
    %v4731 = vadd.f32 %v4729, %v4730
    %v4732 = vrot.slane %v4731, 2
    %v4733 = vadd.f32 %v4731, %v4732
    %v4734 = vrot.slane %v4733, 1
    %v4735 = vadd.f32 %v4733, %v4734
    %v4736 = vadd.f32 %v4624, %v4708
    %v4737 = vadd.f32 %v4625, %v4717
    %v4738 = vadd.f32 %v4626, %v4726
    %v4739 = vadd.f32 %v4627, %v4735
    %v4740 = vmul.f32 %v4684, %v4684
    %v4741 = vmul.f32 %v4685, %v4685
    %v4742 = vmul.f32 %v4686, %v4686
    %v4743 = vmul.f32 %v4687, %v4687
    %v4744 = vmul.f32 %v4688, %v4688
    %v4745 = vmul.f32 %v4689, %v4689
    %v4746 = vmul.f32 %v4690, %v4690
    %v4747 = vmul.f32 %v4691, %v4691
    %v4748 = vmul.f32 %v4692, %v4692
    %v4749 = vmul.f32 %v4693, %v4693
    %v4750 = vmul.f32 %v4694, %v4694
    %v4751 = vmul.f32 %v4695, %v4695
    %v4752 = vmul.f32 %v4696, %v4696
    %v4753 = vmul.f32 %v4697, %v4697
    %v4754 = vmul.f32 %v4698, %v4698
    %v4755 = vmul.f32 %v4699, %v4699
    %v4756 = vadd.f32 %v4740, %v4744
    %v4757 = vadd.f32 %v4756, %v4748
    %v4758 = vadd.f32 %v4757, %v4752
    %v4759 = vrot.slane %v4758, 4
    %v4760 = vadd.f32 %v4758, %v4759
    %v4761 = vrot.slane %v4760, 2
    %v4762 = vadd.f32 %v4760, %v4761
    %v4763 = vrot.slane %v4762, 1
    %v4764 = vadd.f32 %v4762, %v4763
    %v4765 = vadd.f32 %v4741, %v4745
    %v4766 = vadd.f32 %v4765, %v4749
    %v4767 = vadd.f32 %v4766, %v4753
    %v4768 = vrot.slane %v4767, 4
    %v4769 = vadd.f32 %v4767, %v4768
    %v4770 = vrot.slane %v4769, 2
    %v4771 = vadd.f32 %v4769, %v4770
    %v4772 = vrot.slane %v4771, 1
    %v4773 = vadd.f32 %v4771, %v4772
    %v4774 = vadd.f32 %v4742, %v4746
    %v4775 = vadd.f32 %v4774, %v4750
    %v4776 = vadd.f32 %v4775, %v4754
    %v4777 = vrot.slane %v4776, 4
    %v4778 = vadd.f32 %v4776, %v4777
    %v4779 = vrot.slane %v4778, 2
    %v4780 = vadd.f32 %v4778, %v4779
    %v4781 = vrot.slane %v4780, 1
    %v4782 = vadd.f32 %v4780, %v4781
    %v4783 = vadd.f32 %v4743, %v4747
    %v4784 = vadd.f32 %v4783, %v4751
    %v4785 = vadd.f32 %v4784, %v4755
    %v4786 = vrot.slane %v4785, 4
    %v4787 = vadd.f32 %v4785, %v4786
    %v4788 = vrot.slane %v4787, 2
    %v4789 = vadd.f32 %v4787, %v4788
    %v4790 = vrot.slane %v4789, 1
    %v4791 = vadd.f32 %v4789, %v4790
    %v4792 = vadd.f32 %v4680, %v4764
    %v4793 = vadd.f32 %v4681, %v4773
    %v4794 = vadd.f32 %v4682, %v4782
    %v4795 = vadd.f32 %v4683, %v4791
    %v4796 = vld [vmem:[#allocation2 + $0x60] sm:$0xff]
    %v4797 = vld [vmem:[#allocation2 + $0x68] sm:$0xff]
    %v4798 = vld [vmem:[#allocation2 + $0x70] sm:$0xff]
    %v4799 = vld [vmem:[#allocation2 + $0x78] sm:$0xff]
    %v4800 = vld [vmem:[#allocation2 + $0xe0] sm:$0xff]
    %v4801 = vld [vmem:[#allocation2 + $0xe8] sm:$0xff]
    %v4802 = vld [vmem:[#allocation2 + $0xf0] sm:$0xff]
    %v4803 = vld [vmem:[#allocation2 + $0xf8] sm:$0xff]
    %v4804 = vld [vmem:[#allocation2 + $0x160] sm:$0xff]
    %v4805 = vld [vmem:[#allocation2 + $0x168] sm:$0xff]
    %v4806 = vld [vmem:[#allocation2 + $0x170] sm:$0xff]
    %v4807 = vld [vmem:[#allocation2 + $0x178] sm:$0xff]
    %v4808 = vld [vmem:[#allocation2 + $0x1e0] sm:$0xff]
    %v4809 = vld [vmem:[#allocation2 + $0x1e8] sm:$0xff]
    %v4810 = vld [vmem:[#allocation2 + $0x1f0] sm:$0xff]
    %v4811 = vld [vmem:[#allocation2 + $0x1f8] sm:$0xff]
    %v4812 = vadd.f32 %v4796, %v4800
    %v4813 = vadd.f32 %v4812, %v4804
    %v4814 = vadd.f32 %v4813, %v4808
    %v4815 = vrot.slane %v4814, 4
    %v4816 = vadd.f32 %v4814, %v4815
    %v4817 = vrot.slane %v4816, 2
    %v4818 = vadd.f32 %v4816, %v4817
    %v4819 = vrot.slane %v4818, 1
    %v4820 = vadd.f32 %v4818, %v4819
    %v4821 = vadd.f32 %v4797, %v4801
    %v4822 = vadd.f32 %v4821, %v4805
    %v4823 = vadd.f32 %v4822, %v4809
    %v4824 = vrot.slane %v4823, 4
    %v4825 = vadd.f32 %v4823, %v4824
    %v4826 = vrot.slane %v4825, 2
    %v4827 = vadd.f32 %v4825, %v4826
    %v4828 = vrot.slane %v4827, 1
    %v4829 = vadd.f32 %v4827, %v4828
    %v4830 = vadd.f32 %v4798, %v4802
    %v4831 = vadd.f32 %v4830, %v4806
    %v4832 = vadd.f32 %v4831, %v4810
    %v4833 = vrot.slane %v4832, 4
    %v4834 = vadd.f32 %v4832, %v4833
    %v4835 = vrot.slane %v4834, 2
    %v4836 = vadd.f32 %v4834, %v4835
    %v4837 = vrot.slane %v4836, 1
    %v4838 = vadd.f32 %v4836, %v4837
    %v4839 = vadd.f32 %v4799, %v4803
    %v4840 = vadd.f32 %v4839, %v4807
    %v4841 = vadd.f32 %v4840, %v4811
    %v4842 = vrot.slane %v4841, 4
    %v4843 = vadd.f32 %v4841, %v4842
    %v4844 = vrot.slane %v4843, 2
    %v4845 = vadd.f32 %v4843, %v4844
    %v4846 = vrot.slane %v4845, 1
    %v4847 = vadd.f32 %v4845, %v4846
    %v4848 = vadd.f32 %v4736, %v4820
    %v4849 = vadd.f32 %v4737, %v4829
    %v4850 = vadd.f32 %v4738, %v4838
    %v4851 = vadd.f32 %v4739, %v4847
    %v4852 = vmul.f32 %v4796, %v4796
    %v4853 = vmul.f32 %v4797, %v4797
    %v4854 = vmul.f32 %v4798, %v4798
    %v4855 = vmul.f32 %v4799, %v4799
    %v4856 = vmul.f32 %v4800, %v4800
    %v4857 = vmul.f32 %v4801, %v4801
    %v4858 = vmul.f32 %v4802, %v4802
    %v4859 = vmul.f32 %v4803, %v4803
    %v4860 = vmul.f32 %v4804, %v4804
    %v4861 = vmul.f32 %v4805, %v4805
    %v4862 = vmul.f32 %v4806, %v4806
    %v4863 = vmul.f32 %v4807, %v4807
    %v4864 = vmul.f32 %v4808, %v4808
    %v4865 = vmul.f32 %v4809, %v4809
    %v4866 = vmul.f32 %v4810, %v4810
    %v4867 = vmul.f32 %v4811, %v4811
    %v4868 = vadd.f32 %v4852, %v4856
    %v4869 = vadd.f32 %v4868, %v4860
    %v4870 = vadd.f32 %v4869, %v4864
    %v4871 = vrot.slane %v4870, 4
    %v4872 = vadd.f32 %v4870, %v4871
    %v4873 = vrot.slane %v4872, 2
    %v4874 = vadd.f32 %v4872, %v4873
    %v4875 = vrot.slane %v4874, 1
    %v4876 = vadd.f32 %v4874, %v4875
    %v4877 = vadd.f32 %v4853, %v4857
    %v4878 = vadd.f32 %v4877, %v4861
    %v4879 = vadd.f32 %v4878, %v4865
    %v4880 = vrot.slane %v4879, 4
    %v4881 = vadd.f32 %v4879, %v4880
    %v4882 = vrot.slane %v4881, 2
    %v4883 = vadd.f32 %v4881, %v4882
    %v4884 = vrot.slane %v4883, 1
    %v4885 = vadd.f32 %v4883, %v4884
    %v4886 = vadd.f32 %v4854, %v4858
    %v4887 = vadd.f32 %v4886, %v4862
    %v4888 = vadd.f32 %v4887, %v4866
    %v4889 = vrot.slane %v4888, 4
    %v4890 = vadd.f32 %v4888, %v4889
    %v4891 = vrot.slane %v4890, 2
    %v4892 = vadd.f32 %v4890, %v4891
    %v4893 = vrot.slane %v4892, 1
    %v4894 = vadd.f32 %v4892, %v4893
    %v4895 = vadd.f32 %v4855, %v4859
    %v4896 = vadd.f32 %v4895, %v4863
    %v4897 = vadd.f32 %v4896, %v4867
    %v4898 = vrot.slane %v4897, 4
    %v4899 = vadd.f32 %v4897, %v4898
    %v4900 = vrot.slane %v4899, 2
    %v4901 = vadd.f32 %v4899, %v4900
    %v4902 = vrot.slane %v4901, 1
    %v4903 = vadd.f32 %v4901, %v4902
    %v4904 = vadd.f32 %v4792, %v4876
    %v4905 = vadd.f32 %v4793, %v4885
    %v4906 = vadd.f32 %v4794, %v4894
    %v4907 = vadd.f32 %v4795, %v4903
    %v4908 = vmul.f32 %v4848, 0.0078125
    %v4909 = vmul.f32 %v4849, 0.0078125
    %v4910 = vmul.f32 %v4850, 0.0078125
    %v4911 = vmul.f32 %v4851, 0.0078125
    %v4912 = vmul.f32 %v4904, 0.0078125
    %v4913 = vmul.f32 %v4905, 0.0078125
    %v4914 = vmul.f32 %v4906, 0.0078125
    %v4915 = vmul.f32 %v4907, 0.0078125
    %v4916 = vmul.f32 %v4908, %v4908
    %v4917 = vmul.f32 %v4909, %v4909
    %v4918 = vmul.f32 %v4910, %v4910
    %v4919 = vmul.f32 %v4911, %v4911
    %v4920 = vsub.f32 %v4912, %v4916
    %v4921 = vsub.f32 %v4913, %v4917
    %v4922 = vsub.f32 %v4914, %v4918
    %v4923 = vsub.f32 %v4915, %v4919
    %v4924 = vmax.f32 %v4920, 0.0
    %v4925 = vmax.f32 %v4921, 0.0
    %v4926 = vmax.f32 %v4922, 0.0
    %v4927 = vmax.f32 %v4923, 0.0
    %v4928 = vadd.f32 %v4924, 1e-05
    %v4929 = vadd.f32 %v4925, 1e-05
    %v4930 = vadd.f32 %v4926, 1e-05
    %v4931 = vadd.f32 %v4927, 1e-05
    %v4932 = vrsqrt.pop %v4928
    %v4933 = vmul.f32 %v4932, %v4928
    %v4934 = vmul.f32 %v4933, %v4932
    %v4935 = vmul.f32 0.5, %v4934
    %v4936 = vsub.f32 1.5, %v4935
    %v4937 = vmul.f32 %v4932, %v4936
    %vm4938 = vweird.f32 %v4928
    %vm4939 = vweird.f32 %v4932
    %vm4940 = vmor %vm4938, %vm4939
    %v4941 = vsel %vm4940, %v4932, %v4937
    %v4942 = vrsqrt.pop %v4929
    %v4943 = vmul.f32 %v4942, %v4929
    %v4944 = vmul.f32 %v4943, %v4942
    %v4945 = vmul.f32 0.5, %v4944
    %v4946 = vsub.f32 1.5, %v4945
    %v4947 = vmul.f32 %v4942, %v4946
    %vm4948 = vweird.f32 %v4929
    %vm4949 = vweird.f32 %v4942
    %vm4950 = vmor %vm4948, %vm4949
    %v4951 = vsel %vm4950, %v4942, %v4947
    %v4952 = vrsqrt.pop %v4930
    %v4953 = vmul.f32 %v4952, %v4930
    %v4954 = vmul.f32 %v4953, %v4952
    %v4955 = vmul.f32 0.5, %v4954
    %v4956 = vsub.f32 1.5, %v4955
    %v4957 = vmul.f32 %v4952, %v4956
    %vm4958 = vweird.f32 %v4930
    %vm4959 = vweird.f32 %v4952
    %vm4960 = vmor %vm4958, %vm4959
    %v4961 = vsel %vm4960, %v4952, %v4957
    %v4962 = vrsqrt.pop %v4931
    %v4963 = vmul.f32 %v4962, %v4931
    %v4964 = vmul.f32 %v4963, %v4962
    %v4965 = vmul.f32 0.5, %v4964
    %v4966 = vsub.f32 1.5, %v4965
    %v4967 = vmul.f32 %v4962, %v4966
    %vm4968 = vweird.f32 %v4931
    %vm4969 = vweird.f32 %v4962
    %vm4970 = vmor %vm4968, %vm4969
    %v4971 = vsel %vm4970, %v4962, %v4967
    %v4972 = vld [vmem:[#allocation5] sm:$0xf]
    %v4977 = vrot.slane %v4951, 7
    %v4978 = vrot.slane %v4961, 6
    %v4979 = vrot.slane %v4971, 5
    %vm4980 = vcmask 1040384
    %v4981 = vsel %vm4980, %v4941, %v4977
    %vm4982 = vcmask 1042434
    %v4983 = vsel %vm4982, %v4978, %v4979
    %vm4984 = vcmask 1041408
    %v4985 = vsel %vm4984, %v4981, %v4983
    %v4987 = vmul.f32 %v4972, %v4985
    %v4988 = vld [vmem:[#allocation7] sm:$0xf]
    %v4990 = vperm.slane %v4987, 0
    %v4991 = vperm.slane %v4987, 1
    %v4992 = vperm.slane %v4987, 2
    %v4993 = vperm.slane %v4987, 3
    %v4998 = vmul.f32 %v4908, %v4990
    %v4999 = vmul.f32 %v4909, %v4991
    %v5000 = vmul.f32 %v4910, %v4992
    %v5001 = vmul.f32 %v4911, %v4993
    %v5006 = vrot.slane %v4999, 7
    %v5007 = vrot.slane %v5000, 6
    %v5008 = vrot.slane %v5001, 5
    %v5009 = vsel %vm4980, %v4998, %v5006
    %v5010 = vsel %vm4982, %v5007, %v5008
    %v5011 = vsel %vm4984, %v5009, %v5010
    %v5013 = vsub.f32 %v4988, %v5011
    %v5014 = vmul.f32 %v4460, %v4990
    %v5015 = vmul.f32 %v4461, %v4991
    %v5016 = vmul.f32 %v4462, %v4992
    %v5017 = vmul.f32 %v4463, %v4993
    %v5018 = vmul.f32 %v4464, %v4990
    %v5019 = vmul.f32 %v4465, %v4991
    %v5020 = vmul.f32 %v4466, %v4992
    %v5021 = vmul.f32 %v4467, %v4993
    %v5022 = vmul.f32 %v4468, %v4990
    %v5023 = vmul.f32 %v4469, %v4991
    %v5024 = vmul.f32 %v4470, %v4992
    %v5025 = vmul.f32 %v4471, %v4993
    %v5026 = vmul.f32 %v4472, %v4990
    %v5027 = vmul.f32 %v4473, %v4991
    %v5028 = vmul.f32 %v4474, %v4992
    %v5029 = vmul.f32 %v4475, %v4993
    %v5031 = vperm.slane %v5013, 0
    %v5032 = vperm.slane %v5013, 1
    %v5033 = vperm.slane %v5013, 2
    %v5034 = vperm.slane %v5013, 3
    %v5039 = vadd.f32 %v5014, %v5031
    %v5040 = vadd.f32 %v5015, %v5032
    %v5041 = vadd.f32 %v5016, %v5033
    %v5042 = vadd.f32 %v5017, %v5034
    %v5043 = vadd.f32 %v5018, %v5031
    %v5044 = vadd.f32 %v5019, %v5032
    %v5045 = vadd.f32 %v5020, %v5033
    %v5046 = vadd.f32 %v5021, %v5034
    %v5047 = vadd.f32 %v5022, %v5031
    %v5048 = vadd.f32 %v5023, %v5032
    %v5049 = vadd.f32 %v5024, %v5033
    %v5050 = vadd.f32 %v5025, %v5034
    %v5051 = vadd.f32 %v5026, %v5031
    %v5052 = vadd.f32 %v5027, %v5032
    %v5053 = vadd.f32 %v5028, %v5033
    %v5054 = vadd.f32 %v5029, %v5034
    %v5055 = vmax.f32 %v5039, 0.0
    %v5056 = vmax.f32 %v5040, 0.0
    %v5057 = vmax.f32 %v5041, 0.0
    %v5058 = vmax.f32 %v5042, 0.0
    %v5059 = vmax.f32 %v5043, 0.0
    %v5060 = vmax.f32 %v5044, 0.0
    %v5061 = vmax.f32 %v5045, 0.0
    %v5062 = vmax.f32 %v5046, 0.0
    %v5063 = vmax.f32 %v5047, 0.0
    %v5064 = vmax.f32 %v5048, 0.0
    %v5065 = vmax.f32 %v5049, 0.0
    %v5066 = vmax.f32 %v5050, 0.0
    %v5067 = vmax.f32 %v5051, 0.0
    %v5068 = vmax.f32 %v5052, 0.0
    %v5069 = vmax.f32 %v5053, 0.0
    %v5070 = vmax.f32 %v5054, 0.0
    %5071 = vst [vmem:[%s4] sm:$0xff] %v5055
    %5072 = vst [vmem:[%s4 + $0x8] sm:$0xff] %v5056
    %5073 = vst [vmem:[%s4 + $0x10] sm:$0xff] %v5057
    %5074 = vst [vmem:[%s4 + $0x18] sm:$0xff] %v5058
    %5075 = vst [vmem:[%s4 + $0x80] sm:$0xff] %v5059
    %5076 = vst [vmem:[%s4 + $0x88] sm:$0xff] %v5060
    %5077 = vst [vmem:[%s4 + $0x90] sm:$0xff] %v5061
    %5078 = vst [vmem:[%s4 + $0x98] sm:$0xff] %v5062
    %5079 = vst [vmem:[%s4 + $0x100] sm:$0xff] %v5063
    %5080 = vst [vmem:[%s4 + $0x108] sm:$0xff] %v5064
    %5081 = vst [vmem:[%s4 + $0x110] sm:$0xff] %v5065
    %5082 = vst [vmem:[%s4 + $0x118] sm:$0xff] %v5066
    %5083 = vst [vmem:[%s4 + $0x180] sm:$0xff] %v5067
    %5084 = vst [vmem:[%s4 + $0x188] sm:$0xff] %v5068
    %5085 = vst [vmem:[%s4 + $0x190] sm:$0xff] %v5069
    %5086 = vst [vmem:[%s4 + $0x198] sm:$0xff] %v5070
    %v5087 = vld [vmem:[#allocation2 + $0x20] sm:$0xff]
    %v5088 = vld [vmem:[#allocation2 + $0x28] sm:$0xff]
    %v5089 = vld [vmem:[#allocation2 + $0x30] sm:$0xff]
    %v5090 = vld [vmem:[#allocation2 + $0x38] sm:$0xff]
    %v5091 = vld [vmem:[#allocation2 + $0xa0] sm:$0xff]
    %v5092 = vld [vmem:[#allocation2 + $0xa8] sm:$0xff]
    %v5093 = vld [vmem:[#allocation2 + $0xb0] sm:$0xff]
    %v5094 = vld [vmem:[#allocation2 + $0xb8] sm:$0xff]
    %v5095 = vld [vmem:[#allocation2 + $0x120] sm:$0xff]
    %v5096 = vld [vmem:[#allocation2 + $0x128] sm:$0xff]
    %v5097 = vld [vmem:[#allocation2 + $0x130] sm:$0xff]
    %v5098 = vld [vmem:[#allocation2 + $0x138] sm:$0xff]
    %v5099 = vld [vmem:[#allocation2 + $0x1a0] sm:$0xff]
    %v5100 = vld [vmem:[#allocation2 + $0x1a8] sm:$0xff]
    %v5101 = vld [vmem:[#allocation2 + $0x1b0] sm:$0xff]
    %v5102 = vld [vmem:[#allocation2 + $0x1b8] sm:$0xff]
    %v5103 = vmul.f32 %v5087, %v4990
    %v5104 = vmul.f32 %v5088, %v4991
    %v5105 = vmul.f32 %v5089, %v4992
    %v5106 = vmul.f32 %v5090, %v4993
    %v5107 = vmul.f32 %v5091, %v4990
    %v5108 = vmul.f32 %v5092, %v4991
    %v5109 = vmul.f32 %v5093, %v4992
    %v5110 = vmul.f32 %v5094, %v4993
    %v5111 = vmul.f32 %v5095, %v4990
    %v5112 = vmul.f32 %v5096, %v4991
    %v5113 = vmul.f32 %v5097, %v4992
    %v5114 = vmul.f32 %v5098, %v4993
    %v5115 = vmul.f32 %v5099, %v4990
    %v5116 = vmul.f32 %v5100, %v4991
    %v5117 = vmul.f32 %v5101, %v4992
    %v5118 = vmul.f32 %v5102, %v4993
    %v5119 = vadd.f32 %v5103, %v5031
    %v5120 = vadd.f32 %v5104, %v5032
    %v5121 = vadd.f32 %v5105, %v5033
    %v5122 = vadd.f32 %v5106, %v5034
    %v5123 = vadd.f32 %v5107, %v5031
    %v5124 = vadd.f32 %v5108, %v5032
    %v5125 = vadd.f32 %v5109, %v5033
    %v5126 = vadd.f32 %v5110, %v5034
    %v5127 = vadd.f32 %v5111, %v5031
    %v5128 = vadd.f32 %v5112, %v5032
    %v5129 = vadd.f32 %v5113, %v5033
    %v5130 = vadd.f32 %v5114, %v5034
    %v5131 = vadd.f32 %v5115, %v5031
    %v5132 = vadd.f32 %v5116, %v5032
    %v5133 = vadd.f32 %v5117, %v5033
    %v5134 = vadd.f32 %v5118, %v5034
    %v5135 = vmax.f32 %v5119, 0.0
    %v5136 = vmax.f32 %v5120, 0.0
    %v5137 = vmax.f32 %v5121, 0.0
    %v5138 = vmax.f32 %v5122, 0.0
    %v5139 = vmax.f32 %v5123, 0.0
    %v5140 = vmax.f32 %v5124, 0.0
    %v5141 = vmax.f32 %v5125, 0.0
    %v5142 = vmax.f32 %v5126, 0.0
    %v5143 = vmax.f32 %v5127, 0.0
    %v5144 = vmax.f32 %v5128, 0.0
    %v5145 = vmax.f32 %v5129, 0.0
    %v5146 = vmax.f32 %v5130, 0.0
    %v5147 = vmax.f32 %v5131, 0.0
    %v5148 = vmax.f32 %v5132, 0.0
    %v5149 = vmax.f32 %v5133, 0.0
    %v5150 = vmax.f32 %v5134, 0.0
    %5151 = vst [vmem:[%s4 + $0x20] sm:$0xff] %v5135
    %5152 = vst [vmem:[%s4 + $0x28] sm:$0xff] %v5136
    %5153 = vst [vmem:[%s4 + $0x30] sm:$0xff] %v5137
    %5154 = vst [vmem:[%s4 + $0x38] sm:$0xff] %v5138
    %5155 = vst [vmem:[%s4 + $0xa0] sm:$0xff] %v5139
    %5156 = vst [vmem:[%s4 + $0xa8] sm:$0xff] %v5140
    %5157 = vst [vmem:[%s4 + $0xb0] sm:$0xff] %v5141
    %5158 = vst [vmem:[%s4 + $0xb8] sm:$0xff] %v5142
    %5159 = vst [vmem:[%s4 + $0x120] sm:$0xff] %v5143
    %5160 = vst [vmem:[%s4 + $0x128] sm:$0xff] %v5144
    %5161 = vst [vmem:[%s4 + $0x130] sm:$0xff] %v5145
    %5162 = vst [vmem:[%s4 + $0x138] sm:$0xff] %v5146
    %5163 = vst [vmem:[%s4 + $0x1a0] sm:$0xff] %v5147
    %5164 = vst [vmem:[%s4 + $0x1a8] sm:$0xff] %v5148
    %5165 = vst [vmem:[%s4 + $0x1b0] sm:$0xff] %v5149
    %5166 = vst [vmem:[%s4 + $0x1b8] sm:$0xff] %v5150
    %v5167 = vld [vmem:[#allocation2 + $0x40] sm:$0xff]
    %v5168 = vld [vmem:[#allocation2 + $0x48] sm:$0xff]
    %v5169 = vld [vmem:[#allocation2 + $0x50] sm:$0xff]
    %v5170 = vld [vmem:[#allocation2 + $0x58] sm:$0xff]
    %v5171 = vld [vmem:[#allocation2 + $0xc0] sm:$0xff]
    %v5172 = vld [vmem:[#allocation2 + $0xc8] sm:$0xff]
    %v5173 = vld [vmem:[#allocation2 + $0xd0] sm:$0xff]
    %v5174 = vld [vmem:[#allocation2 + $0xd8] sm:$0xff]
    %v5175 = vld [vmem:[#allocation2 + $0x140] sm:$0xff]
    %v5176 = vld [vmem:[#allocation2 + $0x148] sm:$0xff]
    %v5177 = vld [vmem:[#allocation2 + $0x150] sm:$0xff]
    %v5178 = vld [vmem:[#allocation2 + $0x158] sm:$0xff]
    %v5179 = vld [vmem:[#allocation2 + $0x1c0] sm:$0xff]
    %v5180 = vld [vmem:[#allocation2 + $0x1c8] sm:$0xff]
    %v5181 = vld [vmem:[#allocation2 + $0x1d0] sm:$0xff]
    %v5182 = vld [vmem:[#allocation2 + $0x1d8] sm:$0xff]
    %v5183 = vmul.f32 %v5167, %v4990
    %v5184 = vmul.f32 %v5168, %v4991
    %v5185 = vmul.f32 %v5169, %v4992
    %v5186 = vmul.f32 %v5170, %v4993
    %v5187 = vmul.f32 %v5171, %v4990
    %v5188 = vmul.f32 %v5172, %v4991
    %v5189 = vmul.f32 %v5173, %v4992
    %v5190 = vmul.f32 %v5174, %v4993
    %v5191 = vmul.f32 %v5175, %v4990
    %v5192 = vmul.f32 %v5176, %v4991
    %v5193 = vmul.f32 %v5177, %v4992
    %v5194 = vmul.f32 %v5178, %v4993
    %v5195 = vmul.f32 %v5179, %v4990
    %v5196 = vmul.f32 %v5180, %v4991
    %v5197 = vmul.f32 %v5181, %v4992
    %v5198 = vmul.f32 %v5182, %v4993
    %v5199 = vadd.f32 %v5183, %v5031
    %v5200 = vadd.f32 %v5184, %v5032
    %v5201 = vadd.f32 %v5185, %v5033
    %v5202 = vadd.f32 %v5186, %v5034
    %v5203 = vadd.f32 %v5187, %v5031
    %v5204 = vadd.f32 %v5188, %v5032
    %v5205 = vadd.f32 %v5189, %v5033
    %v5206 = vadd.f32 %v5190, %v5034
    %v5207 = vadd.f32 %v5191, %v5031
    %v5208 = vadd.f32 %v5192, %v5032
    %v5209 = vadd.f32 %v5193, %v5033
    %v5210 = vadd.f32 %v5194, %v5034
    %v5211 = vadd.f32 %v5195, %v5031
    %v5212 = vadd.f32 %v5196, %v5032
    %v5213 = vadd.f32 %v5197, %v5033
    %v5214 = vadd.f32 %v5198, %v5034
    %v5215 = vmax.f32 %v5199, 0.0
    %v5216 = vmax.f32 %v5200, 0.0
    %v5217 = vmax.f32 %v5201, 0.0
    %v5218 = vmax.f32 %v5202, 0.0
    %v5219 = vmax.f32 %v5203, 0.0
    %v5220 = vmax.f32 %v5204, 0.0
    %v5221 = vmax.f32 %v5205, 0.0
    %v5222 = vmax.f32 %v5206, 0.0
    %v5223 = vmax.f32 %v5207, 0.0
    %v5224 = vmax.f32 %v5208, 0.0
    %v5225 = vmax.f32 %v5209, 0.0
    %v5226 = vmax.f32 %v5210, 0.0
    %v5227 = vmax.f32 %v5211, 0.0
    %v5228 = vmax.f32 %v5212, 0.0
    %v5229 = vmax.f32 %v5213, 0.0
    %v5230 = vmax.f32 %v5214, 0.0
    %5231 = vst [vmem:[%s4 + $0x40] sm:$0xff] %v5215
    %5232 = vst [vmem:[%s4 + $0x48] sm:$0xff] %v5216
    %5233 = vst [vmem:[%s4 + $0x50] sm:$0xff] %v5217
    %5234 = vst [vmem:[%s4 + $0x58] sm:$0xff] %v5218
    %5235 = vst [vmem:[%s4 + $0xc0] sm:$0xff] %v5219
    %5236 = vst [vmem:[%s4 + $0xc8] sm:$0xff] %v5220
    %5237 = vst [vmem:[%s4 + $0xd0] sm:$0xff] %v5221
    %5238 = vst [vmem:[%s4 + $0xd8] sm:$0xff] %v5222
    %5239 = vst [vmem:[%s4 + $0x140] sm:$0xff] %v5223
    %5240 = vst [vmem:[%s4 + $0x148] sm:$0xff] %v5224
    %5241 = vst [vmem:[%s4 + $0x150] sm:$0xff] %v5225
    %5242 = vst [vmem:[%s4 + $0x158] sm:$0xff] %v5226
    %5243 = vst [vmem:[%s4 + $0x1c0] sm:$0xff] %v5227
    %5244 = vst [vmem:[%s4 + $0x1c8] sm:$0xff] %v5228
    %5245 = vst [vmem:[%s4 + $0x1d0] sm:$0xff] %v5229
    %5246 = vst [vmem:[%s4 + $0x1d8] sm:$0xff] %v5230
    %v5247 = vld [vmem:[#allocation2 + $0x60] sm:$0xff]
    %v5248 = vld [vmem:[#allocation2 + $0x68] sm:$0xff]
    %v5249 = vld [vmem:[#allocation2 + $0x70] sm:$0xff]
    %v5250 = vld [vmem:[#allocation2 + $0x78] sm:$0xff]
    %v5251 = vld [vmem:[#allocation2 + $0xe0] sm:$0xff]
    %v5252 = vld [vmem:[#allocation2 + $0xe8] sm:$0xff]
    %v5253 = vld [vmem:[#allocation2 + $0xf0] sm:$0xff]
    %v5254 = vld [vmem:[#allocation2 + $0xf8] sm:$0xff]
    %v5255 = vld [vmem:[#allocation2 + $0x160] sm:$0xff]
    %v5256 = vld [vmem:[#allocation2 + $0x168] sm:$0xff]
    %v5257 = vld [vmem:[#allocation2 + $0x170] sm:$0xff]
    %v5258 = vld [vmem:[#allocation2 + $0x178] sm:$0xff]
    %v5259 = vld [vmem:[#allocation2 + $0x1e0] sm:$0xff]
    %v5260 = vld [vmem:[#allocation2 + $0x1e8] sm:$0xff]
    %v5261 = vld [vmem:[#allocation2 + $0x1f0] sm:$0xff]
    %v5262 = vld [vmem:[#allocation2 + $0x1f8] sm:$0xff]
    %v5263 = vmul.f32 %v5247, %v4990
    %v5264 = vmul.f32 %v5248, %v4991
    %v5265 = vmul.f32 %v5249, %v4992
    %v5266 = vmul.f32 %v5250, %v4993
    %v5267 = vmul.f32 %v5251, %v4990
    %v5268 = vmul.f32 %v5252, %v4991
    %v5269 = vmul.f32 %v5253, %v4992
    %v5270 = vmul.f32 %v5254, %v4993
    %v5271 = vmul.f32 %v5255, %v4990
    %v5272 = vmul.f32 %v5256, %v4991
    %v5273 = vmul.f32 %v5257, %v4992
    %v5274 = vmul.f32 %v5258, %v4993
    %v5275 = vmul.f32 %v5259, %v4990
    %v5276 = vmul.f32 %v5260, %v4991
    %v5277 = vmul.f32 %v5261, %v4992
    %v5278 = vmul.f32 %v5262, %v4993
    %v5279 = vadd.f32 %v5263, %v5031
    %v5280 = vadd.f32 %v5264, %v5032
    %v5281 = vadd.f32 %v5265, %v5033
    %v5282 = vadd.f32 %v5266, %v5034
    %v5283 = vadd.f32 %v5267, %v5031
    %v5284 = vadd.f32 %v5268, %v5032
    %v5285 = vadd.f32 %v5269, %v5033
    %v5286 = vadd.f32 %v5270, %v5034
    %v5287 = vadd.f32 %v5271, %v5031
    %v5288 = vadd.f32 %v5272, %v5032
    %v5289 = vadd.f32 %v5273, %v5033
    %v5290 = vadd.f32 %v5274, %v5034
    %v5291 = vadd.f32 %v5275, %v5031
    %v5292 = vadd.f32 %v5276, %v5032
    %v5293 = vadd.f32 %v5277, %v5033
    %v5294 = vadd.f32 %v5278, %v5034
    %v5295 = vmax.f32 %v5279, 0.0
    %v5296 = vmax.f32 %v5280, 0.0
    %v5297 = vmax.f32 %v5281, 0.0
    %v5298 = vmax.f32 %v5282, 0.0
    %v5299 = vmax.f32 %v5283, 0.0
    %v5300 = vmax.f32 %v5284, 0.0
    %v5301 = vmax.f32 %v5285, 0.0
    %v5302 = vmax.f32 %v5286, 0.0
    %v5303 = vmax.f32 %v5287, 0.0
    %v5304 = vmax.f32 %v5288, 0.0
    %v5305 = vmax.f32 %v5289, 0.0
    %v5306 = vmax.f32 %v5290, 0.0
    %v5307 = vmax.f32 %v5291, 0.0
    %v5308 = vmax.f32 %v5292, 0.0
    %v5309 = vmax.f32 %v5293, 0.0
    %v5310 = vmax.f32 %v5294, 0.0
    %5311 = vst [vmem:[%s4 + $0x60] sm:$0xff] %v5295
    %5312 = vst [vmem:[%s4 + $0x68] sm:$0xff] %v5296
    %5313 = vst [vmem:[%s4 + $0x70] sm:$0xff] %v5297
    %5314 = vst [vmem:[%s4 + $0x78] sm:$0xff] %v5298
    %5315 = vst [vmem:[%s4 + $0xe0] sm:$0xff] %v5299
    %5316 = vst [vmem:[%s4 + $0xe8] sm:$0xff] %v5300
    %5317 = vst [vmem:[%s4 + $0xf0] sm:$0xff] %v5301
    %5318 = vst [vmem:[%s4 + $0xf8] sm:$0xff] %v5302
    %5319 = vst [vmem:[%s4 + $0x160] sm:$0xff] %v5303
    %5320 = vst [vmem:[%s4 + $0x168] sm:$0xff] %v5304
    %5321 = vst [vmem:[%s4 + $0x170] sm:$0xff] %v5305
    %5322 = vst [vmem:[%s4 + $0x178] sm:$0xff] %v5306
    %5323 = vst [vmem:[%s4 + $0x1e0] sm:$0xff] %v5307
    %5324 = vst [vmem:[%s4 + $0x1e8] sm:$0xff] %v5308
    %5325 = vst [vmem:[%s4 + $0x1f0] sm:$0xff] %v5309
    %5326 = vst [vmem:[%s4 + $0x1f8] sm:$0xff] %v5310
    // Predicated region
    $region30: #{img_feature_decoder_forward.1} parent=1 // pred_check
      _
    $region31: #{img_feature_decoder_forward.1} parent=1 // pred_check_branch
      %5328 = sbr.rel (0) target = $region33
    $region32: #{img_feature_decoder_forward.1} parent=1 // pred_region
      _
    $region33: #{img_feature_decoder_forward.1} parent=1 // pred_fallthru
      _
    // Predicated region
    $region34: #{img_feature_decoder_forward.1} parent=1 // pred_check
      _
    $region35: #{img_feature_decoder_forward.1} parent=1 // pred_check_branch
      %5330 = sbr.rel (0) target = $region37
    $region36: #{img_feature_decoder_forward.1} parent=1 // pred_region
      _
    $region37: #{img_feature_decoder_forward.1} parent=1 // pred_fallthru
      _
    %5331 = vsyncpa [#allocation4], 1
    %5332 = vsyncpa [#allocation6], 1

</llo_original>
